<compile_context>
chip_gen: v7x
topology: tpu7x:2x2x1
jax: 0.10.0
libtpu: 0.0.40
codegen_flags: <defaults>
</compile_context>

<pallas_src>
import jax
import jax.numpy as jnp
import numpy as np
from jax.experimental import pallas as pl
from jax.experimental.pallas import tpu as pltpu


def _make_sana_kernel(att_layers: int, temperature: float):
    inv_temp2 = 1.0 / (float(temperature) ** 2)

    def kernel(*refs):
        # refs: h1, h2, w0a, w0b, b0, (w_i, b_i)*, watt_z, watt_h, batt,
        #       ln_w, ln_b, out
        h1_ref, h2_ref = refs[0], refs[1]
        idx = 2
        w0a_ref, w0b_ref, b0_ref = refs[idx], refs[idx + 1], refs[idx + 2]
        idx += 3
        hidden = []
        for _ in range(att_layers - 1):
            hidden.append((refs[idx], refs[idx + 1]))
            idx += 2
        watt_z_ref, watt_h_ref, batt_ref = refs[idx], refs[idx + 1], refs[idx + 2]
        idx += 3
        ln_w_ref, ln_b_ref = refs[idx], refs[idx + 1]
        out_ref = refs[idx + 2]

        h1 = h1_ref[...]                      # [tm, d_in] f32 (kept f32 for LN path)
        h2 = h2_ref[...]
        h1b = h1.astype(jnp.bfloat16)
        h2b = h2.astype(jnp.bfloat16)

        # Linear(2*d_in, h_dim) on cat([h1, h2], -1) as split bf16 MXU matmuls
        # with f32 accumulation.
        z = (jnp.dot(h1b, w0a_ref[...], preferred_element_type=jnp.float32)
             + jnp.dot(h2b, w0b_ref[...], preferred_element_type=jnp.float32)
             + b0_ref[...])
        z = jnp.maximum(z, 0.0)               # relu(dropout(lin)) with dropout==id

        for w_ref, b_ref in hidden:
            z = jnp.dot(z.astype(jnp.bfloat16), w_ref[...],
                        preferred_element_type=jnp.float32) + b_ref[...]
            z = jnp.maximum(z, 0.0)

        # att_lin(cat([z, h_i])) -> shared z-part reduction (hoisted) plus
        # per-input h-part reductions.
        zw = jnp.sum(z * watt_z_ref[...], axis=-1, keepdims=True)   # [tm, 1]
        watt_h = watt_h_ref[...]                                    # [1, d_in]
        h1w = jnp.sum(h1 * watt_h, axis=-1, keepdims=True)
        h2w = jnp.sum(h2 * watt_h, axis=-1, keepdims=True)
        batt = batt_ref[0, 0]                                       # SMEM scalar

        a1 = (zw + h1w + batt) * inv_temp2 + 1e-8
        a2 = (zw + h2w + batt) * inv_temp2 + 1e-8
        m = jnp.maximum(a1, a2)
        e1 = jnp.exp(a1 - m)
        e2 = jnp.exp(a2 - m)
        # EUP reciprocal; any uniform scale error cancels in the LayerNorm below.
        inv = pl.reciprocal(e1 + e2, approx=True)
        att0 = e1 * inv   # [tm, 1]
        att1 = e2 * inv   # [tm, 1]

        comb = att0 * h1 + att1 * h2          # [tm, d_in], f32

        # LayerNorm over d_in, eps=1e-6 (biased variance, matching torch).
        mean = jnp.mean(comb, axis=-1, keepdims=True)
        cen = comb - mean
        var = jnp.mean(cen * cen, axis=-1, keepdims=True)
        normed = cen * jax.lax.rsqrt(var + 1e-6)
        out_ref[...] = (normed * ln_w_ref[...] + ln_b_ref[...]).astype(out_ref.dtype)

    return kernel


def init_sana_params(key, h_dim, d_in, att_layers):
    """Deterministic synthetic parameters (shapes follow the PyTorch module).

    Matmul weights are stored bf16 (MXU native) and pre-transposed to
    [in, out]; biases / attention vectors / LayerNorm affine stay f32.
    """
    keys = jax.random.split(key, 4 + 2 * att_layers)
    params = {}
    # trans_lin[0]: Linear(2*d_in, h_dim) split into the h1-part and h2-part.
    params["w0a"] = (jax.random.normal(keys[0], (d_in, h_dim), jnp.float32) * 0.1
                     ).astype(jnp.bfloat16)
    params["w0b"] = (jax.random.normal(keys[1], (d_in, h_dim), jnp.float32) * 0.1
                     ).astype(jnp.bfloat16)
    params["b0"] = jax.random.normal(keys[2], (1, h_dim), jnp.float32) * 0.05
    params["hidden"] = []
    for i in range(att_layers - 1):
        w = (jax.random.normal(keys[3 + 2 * i], (h_dim, h_dim), jnp.float32) * 0.1
             ).astype(jnp.bfloat16)
        b = jax.random.normal(keys[4 + 2 * i], (1, h_dim), jnp.float32) * 0.05
        params["hidden"].append((w, b))
    k = 3 + 2 * (att_layers - 1)
    # att_lin: Linear(h_dim + d_in, 1) split into z-part and h-part row vectors.
    params["watt_z"] = jax.random.normal(keys[k], (1, h_dim), jnp.float32) * 0.1
    params["watt_h"] = jax.random.normal(keys[k + 1], (1, d_in), jnp.float32) * 0.1
    params["batt"] = jnp.full((1, 1), 0.02, jnp.float32)
    # LayerNorm affine.
    params["ln_w"] = jnp.ones((1, d_in), jnp.float32) * 1.1
    params["ln_b"] = jnp.ones((1, d_in), jnp.float32) * 0.01
    return params


def _round_up(x, m):
    return ((x + m - 1) // m) * m


def _pick_tm(N, d_in, h_dim, budget_bytes=24 << 20):
    """Largest row tile whose double-buffered f32 I/O blocks + intermediates fit
    a conservative VMEM budget (safe on v5e/v6e 128 MiB and v7x 64 MiB).
    Capped so the grid has >= 2 steps (lets the second TensorCore take work)."""
    cap = _round_up(max(pl.cdiv(N, 2), 8), 8)
    tm = 8
    for cand in (1024, 512, 256, 128, 64, 32, 16, 8):
        need = 2 * 3 * cand * d_in * 4 + 8 * cand * max(d_in, h_dim) * 4
        if need <= budget_bytes:
            tm = cand
            break
    return max(8, min(tm, cap))


def sana_forward_pallas(h1, h2, params, att_layers, temperature=1.0, tm=None):
    N, d_in = h1.shape
    h_dim = params["w0a"].shape[1]
    if tm is None:
        tm = _pick_tm(N, d_in, h_dim)

    flat_params = [params["w0a"], params["w0b"], params["b0"]]
    for w, b in params["hidden"]:
        flat_params += [w, b]
    flat_params += [params["watt_z"], params["watt_h"], params["batt"],
                    params["ln_w"], params["ln_b"]]

    row_spec = pl.BlockSpec((tm, d_in), lambda i: (i, 0))
    param_specs = []
    for p in flat_params:
        if p is params["batt"]:
            # tiny scalar -> SMEM (avoids a padded VMEM vreg tile)
            param_specs.append(pl.BlockSpec(memory_space=pltpu.MemorySpace.SMEM))
        else:
            param_specs.append(pl.BlockSpec(p.shape, lambda i: (0, 0)))

    kernel = _make_sana_kernel(att_layers, temperature)

    # Explicit VMEM budget: double-buffered f32 I/O blocks + intermediates +
    # params, 2x slack, capped below v7x's 64 MiB physical VMEM.
    io_bytes = 2 * 3 * tm * d_in * 4
    interm_bytes = 8 * tm * max(d_in, h_dim) * 4
    param_bytes = sum(int(np.prod(p.shape)) * p.dtype.itemsize for p in flat_params)
    vmem_limit = int(min(max(2 * (io_bytes + interm_bytes + param_bytes), 16 << 20),
                         48 << 20))

    return pl.pallas_call(
        kernel,
        out_shape=jax.ShapeDtypeStruct((N, d_in), jnp.float32),
        grid_spec=pltpu.PrefetchScalarGridSpec(
            num_scalar_prefetch=0,
            grid=(pl.cdiv(N, tm),),
            in_specs=[row_spec, row_spec] + param_specs,
            out_specs=pl.BlockSpec((tm, d_in), lambda i: (i, 0)),
        ),
        compiler_params=pltpu.CompilerParams(
            dimension_semantics=("parallel",),
            vmem_limit_bytes=vmem_limit),
    )(h1, h2, *flat_params)


def sana_forward_ref(h1, h2, params, att_layers, temperature=1.0):
    """Pure-JAX reference mirroring the PyTorch forward (dropout=identity).
    Uses the same bf16-in / f32-accumulate matmul precision as the kernel so
    the tolerance check stays tight."""
    temp2 = float(temperature) ** 2
    bf = lambda x: x.astype(jnp.bfloat16)
    z = jax.nn.relu(
        jnp.dot(bf(h1), params["w0a"], preferred_element_type=jnp.float32)
        + jnp.dot(bf(h2), params["w0b"], preferred_element_type=jnp.float32)
        + params["b0"])
    for w, b in params["hidden"]:
        z = jax.nn.relu(jnp.dot(bf(z), w, preferred_element_type=jnp.float32) + b)
    al1 = (z * params["watt_z"]).sum(-1, keepdims=True) + \
          (h1 * params["watt_h"]).sum(-1, keepdims=True) + params["batt"]
    al2 = (z * params["watt_z"]).sum(-1, keepdims=True) + \
          (h2 * params["watt_h"]).sum(-1, keepdims=True) + params["batt"]
    logits = jnp.concatenate([al1 / temp2 + 1e-8, al2 / temp2 + 1e-8], axis=1)
    att = jax.nn.softmax(logits, axis=1)
    comb = att[:, 0:1] * h1 + att[:, 1:2] * h2
    mean = comb.mean(-1, keepdims=True)
    var = ((comb - mean) ** 2).mean(-1, keepdims=True)
    normed = (comb - mean) * jax.lax.rsqrt(var + 1e-6)
    return normed * params["ln_w"] + params["ln_b"]


if __name__ == "__main__":
    # Lane-dense feature dims (multiples of 128); N large enough for 2 grid steps.
    N, d_in, h_dim, att_layers = 512, 128, 128, 2
    temperature = 1.5

    key = jax.random.PRNGKey(0)
    k1, k2, kp = jax.random.split(key, 3)
    h_l = jax.random.normal(k1, (N, d_in), jnp.float32)
    s_l = jax.random.normal(k2, (N, d_in), jnp.float32)
    params = init_sana_params(kp, h_dim, d_in, att_layers)

    out = sana_forward_pallas(h_l, s_l, params, att_layers, temperature)
    out = jax.block_until_ready(out)

    ref = sana_forward_ref(h_l, s_l, params, att_layers, temperature)
    np.testing.assert_allclose(np.asarray(out), np.asarray(ref), rtol=5e-3, atol=5e-3)

    print("KERNEL_OK")
</pallas_src>

<mosaic_0001>
module attributes {stable_mosaic.version = 11 : i64} {
  func.func @kernel(%arg0: i32, %arg1: memref<256x128xf32, #tpu.memory_space<vmem>>, %arg2: memref<256x128xf32, #tpu.memory_space<vmem>>, %arg3: memref<128x128xbf16, #tpu.memory_space<vmem>>, %arg4: memref<128x128xbf16, #tpu.memory_space<vmem>>, %arg5: memref<1x128xf32, #tpu.memory_space<vmem>>, %arg6: memref<128x128xbf16, #tpu.memory_space<vmem>>, %arg7: memref<1x128xf32, #tpu.memory_space<vmem>>, %arg8: memref<1x128xf32, #tpu.memory_space<vmem>>, %arg9: memref<1x128xf32, #tpu.memory_space<vmem>>, %arg10: memref<1x1xf32, #tpu.memory_space<smem>>, %arg11: memref<1x128xf32, #tpu.memory_space<vmem>>, %arg12: memref<1x128xf32, #tpu.memory_space<vmem>>, %arg13: memref<256x128xf32, #tpu.memory_space<vmem>>) attributes {dimension_semantics = [#tpu.dimension_semantics<parallel>], iteration_bounds = array<i64: 2>, scalar_prefetch = 0 : i64, scratch_operands = 0 : i64, tpu.core_type = #tpu.core_type<tc>, window_params = [{transform_indices = @transform_0, window_bounds = array<i64: 256, 128>}, {transform_indices = @transform_1, window_bounds = array<i64: 256, 128>}, {pipeline_mode = #tpu.pipeline_mode<synchronous>, transform_indices = @transform_2, window_bounds = array<i64: 128, 128>}, {pipeline_mode = #tpu.pipeline_mode<synchronous>, transform_indices = @transform_3, window_bounds = array<i64: 128, 128>}, {pipeline_mode = #tpu.pipeline_mode<synchronous>, transform_indices = @transform_4, window_bounds = array<i64: 1, 128>}, {pipeline_mode = #tpu.pipeline_mode<synchronous>, transform_indices = @transform_5, window_bounds = array<i64: 128, 128>}, {pipeline_mode = #tpu.pipeline_mode<synchronous>, transform_indices = @transform_6, window_bounds = array<i64: 1, 128>}, {pipeline_mode = #tpu.pipeline_mode<synchronous>, transform_indices = @transform_7, window_bounds = array<i64: 1, 128>}, {pipeline_mode = #tpu.pipeline_mode<synchronous>, transform_indices = @transform_8, window_bounds = array<i64: 1, 128>}, {transform_indices = @transform_9, window_bounds = array<i64: 1, 1>}, {pipeline_mode = #tpu.pipeline_mode<synchronous>, transform_indices = @transform_10, window_bounds = array<i64: 1, 128>}, {pipeline_mode = #tpu.pipeline_mode<synchronous>, transform_indices = @transform_11, window_bounds = array<i64: 1, 128>}, {transform_indices = @transform_12, window_bounds = array<i64: 256, 128>}]} {
    %c0 = arith.constant 0 : index
    %c0_0 = arith.constant 0 : index
    %0 = vector.load %arg1[%c0, %c0_0] : memref<256x128xf32, #tpu.memory_space<vmem>>, vector<256x128xf32>
    %c0_1 = arith.constant 0 : index
    %c0_2 = arith.constant 0 : index
    %1 = vector.load %arg2[%c0_1, %c0_2] : memref<256x128xf32, #tpu.memory_space<vmem>>, vector<256x128xf32>
    %2 = arith.truncf %0 : vector<256x128xf32> to vector<256x128xbf16>
    %3 = arith.truncf %1 : vector<256x128xf32> to vector<256x128xbf16>
    %c0_3 = arith.constant 0 : index
    %c0_4 = arith.constant 0 : index
    %4 = vector.load %arg3[%c0_3, %c0_4] : memref<128x128xbf16, #tpu.memory_space<vmem>>, vector<128x128xbf16>
    %cst = arith.constant dense<0.000000e+00> : vector<256x128xf32>
    %5 = tpu.matmul %2, %4, %cst {dimension_numbers = #tpu.dot_dimension_numbers<[1], [0], [0], [1], [0, 0, 1, 1], [], []>} : vector<256x128xbf16>, vector<128x128xbf16>, vector<256x128xf32> -> vector<256x128xf32>
    %c0_5 = arith.constant 0 : index
    %c0_6 = arith.constant 0 : index
    %6 = vector.load %arg4[%c0_5, %c0_6] : memref<128x128xbf16, #tpu.memory_space<vmem>>, vector<128x128xbf16>
    %cst_7 = arith.constant dense<0.000000e+00> : vector<256x128xf32>
    %7 = tpu.matmul %3, %6, %cst_7 {dimension_numbers = #tpu.dot_dimension_numbers<[1], [0], [0], [1], [0, 0, 1, 1], [], []>} : vector<256x128xbf16>, vector<128x128xbf16>, vector<256x128xf32> -> vector<256x128xf32>
    %8 = arith.addf %5, %7 : vector<256x128xf32>
    %c0_8 = arith.constant 0 : index
    %c0_9 = arith.constant 0 : index
    %9 = vector.load %arg5[%c0_8, %c0_9] : memref<1x128xf32, #tpu.memory_space<vmem>>, vector<1x128xf32>
    %10 = vector.broadcast %9 : vector<1x128xf32> to vector<256x128xf32>
    %11 = arith.addf %8, %10 : vector<256x128xf32>
    %cst_10 = arith.constant 0.000000e+00 : f32
    %12 = vector.broadcast %cst_10 : f32 to vector<256x128xf32>
    %13 = arith.maximumf %11, %12 : vector<256x128xf32>
    %14 = arith.truncf %13 : vector<256x128xf32> to vector<256x128xbf16>
    %c0_11 = arith.constant 0 : index
    %c0_12 = arith.constant 0 : index
    %15 = vector.load %arg6[%c0_11, %c0_12] : memref<128x128xbf16, #tpu.memory_space<vmem>>, vector<128x128xbf16>
    %cst_13 = arith.constant dense<0.000000e+00> : vector<256x128xf32>
    %16 = tpu.matmul %14, %15, %cst_13 {dimension_numbers = #tpu.dot_dimension_numbers<[1], [0], [0], [1], [0, 0, 1, 1], [], []>} : vector<256x128xbf16>, vector<128x128xbf16>, vector<256x128xf32> -> vector<256x128xf32>
    %c0_14 = arith.constant 0 : index
    %c0_15 = arith.constant 0 : index
    %17 = vector.load %arg7[%c0_14, %c0_15] : memref<1x128xf32, #tpu.memory_space<vmem>>, vector<1x128xf32>
    %18 = vector.broadcast %17 : vector<1x128xf32> to vector<256x128xf32>
    %19 = arith.addf %16, %18 : vector<256x128xf32>
    %cst_16 = arith.constant 0.000000e+00 : f32
    %20 = vector.broadcast %cst_16 : f32 to vector<256x128xf32>
    %21 = arith.maximumf %19, %20 : vector<256x128xf32>
    %c0_17 = arith.constant 0 : index
    %c0_18 = arith.constant 0 : index
    %22 = vector.load %arg8[%c0_17, %c0_18] : memref<1x128xf32, #tpu.memory_space<vmem>>, vector<1x128xf32>
    %23 = vector.broadcast %22 : vector<1x128xf32> to vector<256x128xf32>
    %24 = arith.mulf %21, %23 : vector<256x128xf32>
    %cst_19 = arith.constant dense<0.000000e+00> : vector<256xf32>
    %25 = vector.multi_reduction <add>, %24, %cst_19 [1] : vector<256x128xf32> to vector<256xf32>
    %26 = vector.shape_cast %25 : vector<256xf32> to vector<256x1xf32>
    %c0_20 = arith.constant 0 : index
    %c0_21 = arith.constant 0 : index
    %27 = vector.load %arg9[%c0_20, %c0_21] : memref<1x128xf32, #tpu.memory_space<vmem>>, vector<1x128xf32>
    %28 = vector.broadcast %27 : vector<1x128xf32> to vector<256x128xf32>
    %29 = arith.mulf %0, %28 : vector<256x128xf32>
    %cst_22 = arith.constant dense<0.000000e+00> : vector<256xf32>
    %30 = vector.multi_reduction <add>, %29, %cst_22 [1] : vector<256x128xf32> to vector<256xf32>
    %31 = vector.shape_cast %30 : vector<256xf32> to vector<256x1xf32>
    %32 = vector.broadcast %27 : vector<1x128xf32> to vector<256x128xf32>
    %33 = arith.mulf %1, %32 : vector<256x128xf32>
    %cst_23 = arith.constant dense<0.000000e+00> : vector<256xf32>
    %34 = vector.multi_reduction <add>, %33, %cst_23 [1] : vector<256x128xf32> to vector<256xf32>
    %35 = vector.shape_cast %34 : vector<256xf32> to vector<256x1xf32>
    %c0_24 = arith.constant 0 : index
    %c0_25 = arith.constant 0 : index
    %36 = memref.load %arg10[%c0_24, %c0_25] : memref<1x1xf32, #tpu.memory_space<smem>>
    %37 = arith.addf %26, %31 : vector<256x1xf32>
    %38 = vector.broadcast %36 : f32 to vector<256x1xf32>
    %39 = arith.addf %37, %38 : vector<256x1xf32>
    %cst_26 = arith.constant 0.444444448 : f32
    %40 = vector.broadcast %cst_26 : f32 to vector<256x1xf32>
    %41 = arith.mulf %39, %40 : vector<256x1xf32>
    %cst_27 = arith.constant 9.99999993E-9 : f32
    %42 = vector.broadcast %cst_27 : f32 to vector<256x1xf32>
    %43 = arith.addf %41, %42 : vector<256x1xf32>
    %44 = arith.addf %26, %35 : vector<256x1xf32>
    %45 = vector.broadcast %36 : f32 to vector<256x1xf32>
    %46 = arith.addf %44, %45 : vector<256x1xf32>
    %cst_28 = arith.constant 0.444444448 : f32
    %47 = vector.broadcast %cst_28 : f32 to vector<256x1xf32>
    %48 = arith.mulf %46, %47 : vector<256x1xf32>
    %cst_29 = arith.constant 9.99999993E-9 : f32
    %49 = vector.broadcast %cst_29 : f32 to vector<256x1xf32>
    %50 = arith.addf %48, %49 : vector<256x1xf32>
    %51 = arith.maximumf %43, %50 : vector<256x1xf32>
    %52 = arith.subf %43, %51 : vector<256x1xf32>
    %53 = math.exp %52 : vector<256x1xf32>
    %54 = arith.subf %50, %51 : vector<256x1xf32>
    %55 = math.exp %54 : vector<256x1xf32>
    %56 = arith.addf %53, %55 : vector<256x1xf32>
    %57 = tpu.reciprocal %56 {approx = true} : vector<256x1xf32> -> vector<256x1xf32>
    %58 = arith.mulf %53, %57 : vector<256x1xf32>
    %59 = arith.mulf %55, %57 : vector<256x1xf32>
    %60 = vector.broadcast %58 : vector<256x1xf32> to vector<256x128xf32>
    %61 = arith.mulf %60, %0 : vector<256x128xf32>
    %62 = vector.broadcast %59 : vector<256x1xf32> to vector<256x128xf32>
    %63 = arith.mulf %62, %1 : vector<256x128xf32>
    %64 = arith.addf %61, %63 : vector<256x128xf32>
    %cst_30 = arith.constant dense<0.000000e+00> : vector<256xf32>
    %65 = vector.multi_reduction <add>, %64, %cst_30 [1] : vector<256x128xf32> to vector<256xf32>
    %66 = vector.shape_cast %65 : vector<256xf32> to vector<256x1xf32>
    %cst_31 = arith.constant 1.280000e+02 : f32
    %67 = vector.broadcast %cst_31 : f32 to vector<256x1xf32>
    %68 = arith.divf %66, %67 : vector<256x1xf32>
    %69 = vector.broadcast %68 : vector<256x1xf32> to vector<256x128xf32>
    %70 = arith.subf %64, %69 : vector<256x128xf32>
    %71 = arith.mulf %70, %70 : vector<256x128xf32>
    %cst_32 = arith.constant dense<0.000000e+00> : vector<256xf32>
    %72 = vector.multi_reduction <add>, %71, %cst_32 [1] : vector<256x128xf32> to vector<256xf32>
    %73 = vector.shape_cast %72 : vector<256xf32> to vector<256x1xf32>
    %cst_33 = arith.constant 1.280000e+02 : f32
    %74 = vector.broadcast %cst_33 : f32 to vector<256x1xf32>
    %75 = arith.divf %73, %74 : vector<256x1xf32>
    %cst_34 = arith.constant 9.99999997E-7 : f32
    %76 = vector.broadcast %cst_34 : f32 to vector<256x1xf32>
    %77 = arith.addf %75, %76 : vector<256x1xf32>
    %78 = math.rsqrt %77 : vector<256x1xf32>
    %79 = vector.broadcast %78 : vector<256x1xf32> to vector<256x128xf32>
    %80 = arith.mulf %70, %79 : vector<256x128xf32>
    %c0_35 = arith.constant 0 : index
    %c0_36 = arith.constant 0 : index
    %81 = vector.load %arg11[%c0_35, %c0_36] : memref<1x128xf32, #tpu.memory_space<vmem>>, vector<1x128xf32>
    %82 = vector.broadcast %81 : vector<1x128xf32> to vector<256x128xf32>
    %83 = arith.mulf %80, %82 : vector<256x128xf32>
    %c0_37 = arith.constant 0 : index
    %c0_38 = arith.constant 0 : index
    %84 = vector.load %arg12[%c0_37, %c0_38] : memref<1x128xf32, #tpu.memory_space<vmem>>, vector<1x128xf32>
    %85 = vector.broadcast %84 : vector<1x128xf32> to vector<256x128xf32>
    %86 = arith.addf %83, %85 : vector<256x128xf32>
    %c0_39 = arith.constant 0 : index
    %c0_40 = arith.constant 0 : index
    %87 = vector.load %arg13[%c0_39, %c0_40] : memref<256x128xf32, #tpu.memory_space<vmem>>, vector<256x128xf32>
    tpu.vector_store %arg13[%c0_39, %c0_40], %86 {strides = array<i32>} : memref<256x128xf32, #tpu.memory_space<vmem>>, vector<256x128xf32>,
    return
  }
  func.func @transform_0(%arg0: i32) -> (i32, i32) {
    %c0_i32 = arith.constant 0 : i32
    %c0_i32_0 = arith.constant 0 : i32
    return %arg0, %c0_i32 : i32, i32
  }
  func.func @transform_1(%arg0: i32) -> (i32, i32) {
    %c0_i32 = arith.constant 0 : i32
    %c0_i32_0 = arith.constant 0 : i32
    return %arg0, %c0_i32 : i32, i32
  }
  func.func @transform_2(%arg0: i32) -> (i32, i32) {
    %c0_i32 = arith.constant 0 : i32
    %c0_i32_0 = arith.constant 0 : i32
    %c0_i32_1 = arith.constant 0 : i32
    return %c0_i32, %c0_i32_0 : i32, i32
  }
  func.func @transform_3(%arg0: i32) -> (i32, i32) {
    %c0_i32 = arith.constant 0 : i32
    %c0_i32_0 = arith.constant 0 : i32
    %c0_i32_1 = arith.constant 0 : i32
    return %c0_i32, %c0_i32_0 : i32, i32
  }
  func.func @transform_4(%arg0: i32) -> (i32, i32) {
    %c0_i32 = arith.constant 0 : i32
    %c0_i32_0 = arith.constant 0 : i32
    %c0_i32_1 = arith.constant 0 : i32
    return %c0_i32, %c0_i32_0 : i32, i32
  }
  func.func @transform_5(%arg0: i32) -> (i32, i32) {
    %c0_i32 = arith.constant 0 : i32
    %c0_i32_0 = arith.constant 0 : i32
    %c0_i32_1 = arith.constant 0 : i32
    return %c0_i32, %c0_i32_0 : i32, i32
  }
  func.func @transform_6(%arg0: i32) -> (i32, i32) {
    %c0_i32 = arith.constant 0 : i32
    %c0_i32_0 = arith.constant 0 : i32
    %c0_i32_1 = arith.constant 0 : i32
    return %c0_i32, %c0_i32_0 : i32, i32
  }
  func.func @transform_7(%arg0: i32) -> (i32, i32) {
    %c0_i32 = arith.constant 0 : i32
    %c0_i32_0 = arith.constant 0 : i32
    %c0_i32_1 = arith.constant 0 : i32
    return %c0_i32, %c0_i32_0 : i32, i32
  }
  func.func @transform_8(%arg0: i32) -> (i32, i32) {
    %c0_i32 = arith.constant 0 : i32
    %c0_i32_0 = arith.constant 0 : i32
    %c0_i32_1 = arith.constant 0 : i32
    return %c0_i32, %c0_i32_0 : i32, i32
  }
  func.func @transform_9(%arg0: i32) -> (i32, i32) {
    %c0_i32 = arith.constant 0 : i32
    %c0_i32_0 = arith.constant 0 : i32
    %c0_i32_1 = arith.constant 0 : i32
    return %c0_i32, %c0_i32_0 : i32, i32
  }
  func.func @transform_10(%arg0: i32) -> (i32, i32) {
    %c0_i32 = arith.constant 0 : i32
    %c0_i32_0 = arith.constant 0 : i32
    %c0_i32_1 = arith.constant 0 : i32
    return %c0_i32, %c0_i32_0 : i32, i32
  }
  func.func @transform_11(%arg0: i32) -> (i32, i32) {
    %c0_i32 = arith.constant 0 : i32
    %c0_i32_0 = arith.constant 0 : i32
    %c0_i32_1 = arith.constant 0 : i32
    return %c0_i32, %c0_i32_0 : i32, i32
  }
  func.func @transform_12(%arg0: i32) -> (i32, i32) {
    %c0_i32 = arith.constant 0 : i32
    %c0_i32_0 = arith.constant 0 : i32
    return %arg0, %c0_i32 : i32, i32
  }
}

</mosaic_0001>

<llo_original>
// kernel: tpu_custom_call.1
$region0: #{tpu_custom_call.1}
  #allocation0 [shape = 'u32[]', space=smem, size = 0x4, offset = 0x4, fixed_abs, tag = 'smem constant byte address 0x4 - core index']
  #allocation1 [shape = 'u32[144,128]{1,0:T(1,128)}', space=vmem, size = 0x12000, scoped, tag = 'internal scratch']
  #allocation2 [shape = 'f32[1,1]{1,0:T(1,128)S(6)}', space=smem, size = 0x200, scoped, tag = 'scoped memory for tpu_custom_call.1']
  %s0 = inlined_call_operand.hbm [shape: f32[512,128], index: 0, kind: input, shape index: {}]
  %s1 = inlined_call_operand.hbm [shape: f32[512,128], index: 1, kind: input, shape index: {}]
  %s2 = inlined_call_operand.hbm [shape: bf16[128,128], index: 2, kind: input, shape index: {}]
  %s3 = inlined_call_operand.hbm [shape: bf16[128,128], index: 3, kind: input, shape index: {}]
  %s4 = inlined_call_operand.vmem [shape: f32[1,128], index: 4, kind: input, shape index: {}]
  %s5 = inlined_call_operand.hbm [shape: bf16[128,128], index: 5, kind: input, shape index: {}]
  %s6 = inlined_call_operand.vmem [shape: f32[1,128], index: 6, kind: input, shape index: {}]
  %s7 = inlined_call_operand.vmem [shape: f32[1,128], index: 7, kind: input, shape index: {}]
  %s8 = inlined_call_operand.vmem [shape: f32[1,128], index: 8, kind: input, shape index: {}]
  %s9 = inlined_call_operand.<no memory space> [shape: f32[1,1], index: 9, kind: input, shape index: {}]
  %s10 = inlined_call_operand.vmem [shape: f32[1,128], index: 10, kind: input, shape index: {}]
  %s11 = inlined_call_operand.vmem [shape: f32[1,128], index: 11, kind: input, shape index: {}]
  %s12 = inlined_call_operand.hbm [shape: f32[512,128], index: 12, kind: output, shape index: {}]
  %s13 = sld [smem:[#allocation0]]
  $region101: #{tpu_custom_call.1} parent=0
    _
  %s15 = ssub.s32 1, %s13
  %s16 = scalar_select 0, %s15, %s13
  %17 = sst [smem:[#allocation2]] %s9
  $region1: #{tpu_custom_call.1} parent=0
    #allocation3 [shape = 'u8[262144]{0}', space=vmem, size = 0x40000, scoped, tag = 'input window, operand 0']
    #allocation4 [shape = 's32[2]{0}', space=sflag, size = 0x8, scoped, tag = 'scoped memory for tpu_custom_call.1']
    #allocation5 [shape = 's32[2]{0}', space=sflag, size = 0x8, scoped, tag = 'scoped memory for tpu_custom_call.1']
    #allocation6 [shape = 'u8[262144]{0}', space=vmem, size = 0x40000, scoped, tag = 'input window, operand 1']
    #allocation7 [shape = 's32[2]{0}', space=sflag, size = 0x8, scoped, tag = 'scoped memory for tpu_custom_call.1']
    #allocation8 [shape = 'u8[32768]{0}', space=vmem, size = 0x8000, scoped, tag = 'input window, operand 2, single buffered']
    #allocation9 [shape = 'u8[32768]{0}', space=vmem, size = 0x8000, scoped, tag = 'input window, operand 3, single buffered']
    #allocation10 [shape = 's32[1]{0}', space=sflag, size = 0x4, scoped, tag = 'scoped memory for tpu_custom_call.1']
    #allocation11 [shape = 'u8[32768]{0}', space=vmem, size = 0x8000, scoped, tag = 'input window, operand 5, single buffered']
    #allocation12 [shape = 'u8[262144]{0}', space=vmem, size = 0x40000, scoped, tag = 'output window, operand 0']
    %18 = vsyncpa [#allocation4], 0
    %s19 = scalar_lea.sflag [#allocation4], 1
    %20 = vsyncpa %s19, 0
    %21 = vsyncpa [#allocation7], 0
    %s22 = scalar_lea.sflag [#allocation7], 1
    %23 = vsyncpa %s22, 0
    %24 = vsyncpa [#allocation10], 0
    %25 = vsyncpa [#allocation5], 0
    %s26 = scalar_lea.sflag [#allocation5], 1
    %27 = vsyncpa %s26, 0
    loop: start=0, step=1, limit=4
    $region2: #{tpu_custom_call.1} parent=1 // loop_pre_header
      _
    $region3: #{tpu_custom_call.1} parent=1 // loop_header
      %s29 = sphi 0, %s33
      %p30 = scmp.ge.s32.totalorder %s29, 4
      %s39 = sphi 0, %s41
      %s42 = sphi 0, %s39
      %s43 = sphi 0, %s42
      %s59 = sphi 0, %s43
      %s65 = sphi 0, %s67
      %s68 = sphi 0, %s65
      %s69 = sphi 0, %s68
      %s85 = sphi 0, %s69
      %s89 = sphi 0, %s89
      %s91 = sphi 0, %s89
      %s92 = sphi 0, %s91
      %s106 = sphi 0, %s92
      %s110 = sphi 0, %s110
      %s112 = sphi 0, %s110
      %s113 = sphi 0, %s112
      %s127 = sphi 0, %s113
      %s131 = sphi 0, %s131
      %s133 = sphi 0, %s131
      %s134 = sphi 0, %s133
      %s148 = sphi 0, %s134
      %s152 = sphi 0, %s152
      %s154 = sphi 0, %s152
      %s155 = sphi 0, %s154
      %s169 = sphi 0, %s155
      %s173 = sphi 0, %s173
      %s175 = sphi 0, %s173
      %s176 = sphi 0, %s175
      %s190 = sphi 0, %s176
      %s194 = sphi 0, %s194
      %s196 = sphi 0, %s194
      %s197 = sphi 0, %s196
      %s211 = sphi 0, %s197
      %s215 = sphi 0, %s215
      %s217 = sphi 0, %s215
      %s218 = sphi 0, %s217
      %s232 = sphi 0, %s218
      %s236 = sphi 0, %s236
      %s238 = sphi 0, %s236
      %s239 = sphi 0, %s238
      %s253 = sphi 0, %s239
      %s257 = sphi 0, %s257
      %s259 = sphi 0, %s257
      %s260 = sphi 0, %s259
      %s274 = sphi 0, %s260
      %s278 = sphi 0, %s278
      %s280 = sphi 0, %s278
      %s281 = sphi 0, %s280
      %s295 = sphi 0, %s281
      %s301 = sphi 0, %s303
      %s304 = sphi 0, %s301
      %s305 = sphi 0, %s304
      %s321 = sphi 0, %s305
    $region4: #{tpu_custom_call.1} parent=1 // loop_header_branch
      %32 = sbr.rel (%p30) target = $region8
    $region5: #{tpu_custom_call.1} parent=1 // loop_body
      %s34 = ssub.s32 %s29, 1
      %s35 = ssub.s32 %s29, 2
      %s36 = sadd.s32 %s29, 1
      %s37 = ssub.s32 %s29, %s36
      %p38 = scmp.eq.s32.totalorder %s37, 0
      %s40 = sadd.s32 %s39, 1
      %s41 = scalar_select %p38, %s39, %s40
      %p44 = pneg %p38
      %p45 = scmp.eq.s32.totalorder %s29, 1
      %p46 = por %p44, %p45
      %p47 = scmp.ne.s32.totalorder %s39, %s42
      %p48 = scmp.eq.s32.totalorder %s29, 0
      %p49 = por %p47, %p48
      %p50 = scmp.ne.s32.totalorder %s39, %s42
      %p51 = scmp.eq.s32.totalorder %s34, 1
      %p52 = por %p50, %p51
      %p53 = scmp.ne.s32.totalorder %s42, %s43
      %p54 = scmp.eq.s32.totalorder %s34, 0
      %p55 = por %p53, %p54
      %p56 = scmp.ne.s32.totalorder %s42, %s43
      %p57 = scmp.eq.s32.totalorder %s35, 1
      %p58 = por %p56, %p57
      %p60 = scmp.ne.s32.totalorder %s43, %s59
      %p61 = scmp.eq.s32.totalorder %s35, 0
      %p62 = por %p60, %p61
      %s63 = ssub.s32 %s29, %s36
      %p64 = scmp.eq.s32.totalorder %s63, 0
      %s66 = sadd.s32 %s65, 1
      %s67 = scalar_select %p64, %s65, %s66
      %p70 = pneg %p64
      %p71 = scmp.eq.s32.totalorder %s29, 1
      %p72 = por %p70, %p71
      %p73 = scmp.ne.s32.totalorder %s65, %s68
      %p74 = scmp.eq.s32.totalorder %s29, 0
      %p75 = por %p73, %p74
      %p76 = scmp.ne.s32.totalorder %s65, %s68
      %p77 = scmp.eq.s32.totalorder %s34, 1
      %p78 = por %p76, %p77
      %p79 = scmp.ne.s32.totalorder %s68, %s69
      %p80 = scmp.eq.s32.totalorder %s34, 0
      %p81 = por %p79, %p80
      %p82 = scmp.ne.s32.totalorder %s68, %s69
      %p83 = scmp.eq.s32.totalorder %s35, 1
      %p84 = por %p82, %p83
      %p86 = scmp.ne.s32.totalorder %s69, %s85
      %p87 = scmp.eq.s32.totalorder %s35, 0
      %p88 = por %p86, %p87
      %s90 = sadd.s32 %s89, 1
      %p93 = scmp.eq.s32.totalorder %s29, 1
      %p94 = scmp.ne.s32.totalorder %s89, %s91
      %p95 = scmp.eq.s32.totalorder %s29, 0
      %p96 = por %p94, %p95
      %p97 = scmp.ne.s32.totalorder %s89, %s91
      %p98 = scmp.eq.s32.totalorder %s34, 1
      %p99 = por %p97, %p98
      %p100 = scmp.ne.s32.totalorder %s91, %s92
      %p101 = scmp.eq.s32.totalorder %s34, 0
      %p102 = por %p100, %p101
      %p103 = scmp.ne.s32.totalorder %s91, %s92
      %p104 = scmp.eq.s32.totalorder %s35, 1
      %p105 = por %p103, %p104
      %p107 = scmp.ne.s32.totalorder %s92, %s106
      %p108 = scmp.eq.s32.totalorder %s35, 0
      %p109 = por %p107, %p108
      %s111 = sadd.s32 %s110, 1
      %p114 = scmp.eq.s32.totalorder %s29, 1
      %p115 = scmp.ne.s32.totalorder %s110, %s112
      %p116 = scmp.eq.s32.totalorder %s29, 0
      %p117 = por %p115, %p116
      %p118 = scmp.ne.s32.totalorder %s110, %s112
      %p119 = scmp.eq.s32.totalorder %s34, 1
      %p120 = por %p118, %p119
      %p121 = scmp.ne.s32.totalorder %s112, %s113
      %p122 = scmp.eq.s32.totalorder %s34, 0
      %p123 = por %p121, %p122
      %p124 = scmp.ne.s32.totalorder %s112, %s113
      %p125 = scmp.eq.s32.totalorder %s35, 1
      %p126 = por %p124, %p125
      %p128 = scmp.ne.s32.totalorder %s113, %s127
      %p129 = scmp.eq.s32.totalorder %s35, 0
      %p130 = por %p128, %p129
      %s132 = sadd.s32 %s131, 1
      %p135 = scmp.eq.s32.totalorder %s29, 1
      %p136 = scmp.ne.s32.totalorder %s131, %s133
      %p137 = scmp.eq.s32.totalorder %s29, 0
      %p138 = por %p136, %p137
      %p139 = scmp.ne.s32.totalorder %s131, %s133
      %p140 = scmp.eq.s32.totalorder %s34, 1
      %p141 = por %p139, %p140
      %p142 = scmp.ne.s32.totalorder %s133, %s134
      %p143 = scmp.eq.s32.totalorder %s34, 0
      %p144 = por %p142, %p143
      %p145 = scmp.ne.s32.totalorder %s133, %s134
      %p146 = scmp.eq.s32.totalorder %s35, 1
      %p147 = por %p145, %p146
      %p149 = scmp.ne.s32.totalorder %s134, %s148
      %p150 = scmp.eq.s32.totalorder %s35, 0
      %p151 = por %p149, %p150
      %s153 = sadd.s32 %s152, 1
      %p156 = scmp.eq.s32.totalorder %s29, 1
      %p157 = scmp.ne.s32.totalorder %s152, %s154
      %p158 = scmp.eq.s32.totalorder %s29, 0
      %p159 = por %p157, %p158
      %p160 = scmp.ne.s32.totalorder %s152, %s154
      %p161 = scmp.eq.s32.totalorder %s34, 1
      %p162 = por %p160, %p161
      %p163 = scmp.ne.s32.totalorder %s154, %s155
      %p164 = scmp.eq.s32.totalorder %s34, 0
      %p165 = por %p163, %p164
      %p166 = scmp.ne.s32.totalorder %s154, %s155
      %p167 = scmp.eq.s32.totalorder %s35, 1
      %p168 = por %p166, %p167
      %p170 = scmp.ne.s32.totalorder %s155, %s169
      %p171 = scmp.eq.s32.totalorder %s35, 0
      %p172 = por %p170, %p171
      %s174 = sadd.s32 %s173, 1
      %p177 = scmp.eq.s32.totalorder %s29, 1
      %p178 = scmp.ne.s32.totalorder %s173, %s175
      %p179 = scmp.eq.s32.totalorder %s29, 0
      %p180 = por %p178, %p179
      %p181 = scmp.ne.s32.totalorder %s173, %s175
      %p182 = scmp.eq.s32.totalorder %s34, 1
      %p183 = por %p181, %p182
      %p184 = scmp.ne.s32.totalorder %s175, %s176
      %p185 = scmp.eq.s32.totalorder %s34, 0
      %p186 = por %p184, %p185
      %p187 = scmp.ne.s32.totalorder %s175, %s176
      %p188 = scmp.eq.s32.totalorder %s35, 1
      %p189 = por %p187, %p188
      %p191 = scmp.ne.s32.totalorder %s176, %s190
      %p192 = scmp.eq.s32.totalorder %s35, 0
      %p193 = por %p191, %p192
      %s195 = sadd.s32 %s194, 1
      %p198 = scmp.eq.s32.totalorder %s29, 1
      %p199 = scmp.ne.s32.totalorder %s194, %s196
      %p200 = scmp.eq.s32.totalorder %s29, 0
      %p201 = por %p199, %p200
      %p202 = scmp.ne.s32.totalorder %s194, %s196
      %p203 = scmp.eq.s32.totalorder %s34, 1
      %p204 = por %p202, %p203
      %p205 = scmp.ne.s32.totalorder %s196, %s197
      %p206 = scmp.eq.s32.totalorder %s34, 0
      %p207 = por %p205, %p206
      %p208 = scmp.ne.s32.totalorder %s196, %s197
      %p209 = scmp.eq.s32.totalorder %s35, 1
      %p210 = por %p208, %p209
      %p212 = scmp.ne.s32.totalorder %s197, %s211
      %p213 = scmp.eq.s32.totalorder %s35, 0
      %p214 = por %p212, %p213
      %s216 = sadd.s32 %s215, 1
      %p219 = scmp.eq.s32.totalorder %s29, 1
      %p220 = scmp.ne.s32.totalorder %s215, %s217
      %p221 = scmp.eq.s32.totalorder %s29, 0
      %p222 = por %p220, %p221
      %p223 = scmp.ne.s32.totalorder %s215, %s217
      %p224 = scmp.eq.s32.totalorder %s34, 1
      %p225 = por %p223, %p224
      %p226 = scmp.ne.s32.totalorder %s217, %s218
      %p227 = scmp.eq.s32.totalorder %s34, 0
      %p228 = por %p226, %p227
      %p229 = scmp.ne.s32.totalorder %s217, %s218
      %p230 = scmp.eq.s32.totalorder %s35, 1
      %p231 = por %p229, %p230
      %p233 = scmp.ne.s32.totalorder %s218, %s232
      %p234 = scmp.eq.s32.totalorder %s35, 0
      %p235 = por %p233, %p234
      %s237 = sadd.s32 %s236, 1
      %p240 = scmp.eq.s32.totalorder %s29, 1
      %p241 = scmp.ne.s32.totalorder %s236, %s238
      %p242 = scmp.eq.s32.totalorder %s29, 0
      %p243 = por %p241, %p242
      %p244 = scmp.ne.s32.totalorder %s236, %s238
      %p245 = scmp.eq.s32.totalorder %s34, 1
      %p246 = por %p244, %p245
      %p247 = scmp.ne.s32.totalorder %s238, %s239
      %p248 = scmp.eq.s32.totalorder %s34, 0
      %p249 = por %p247, %p248
      %p250 = scmp.ne.s32.totalorder %s238, %s239
      %p251 = scmp.eq.s32.totalorder %s35, 1
      %p252 = por %p250, %p251
      %p254 = scmp.ne.s32.totalorder %s239, %s253
      %p255 = scmp.eq.s32.totalorder %s35, 0
      %p256 = por %p254, %p255
      %s258 = sadd.s32 %s257, 1
      %p261 = scmp.eq.s32.totalorder %s29, 1
      %p262 = scmp.ne.s32.totalorder %s257, %s259
      %p263 = scmp.eq.s32.totalorder %s29, 0
      %p264 = por %p262, %p263
      %p265 = scmp.ne.s32.totalorder %s257, %s259
      %p266 = scmp.eq.s32.totalorder %s34, 1
      %p267 = por %p265, %p266
      %p268 = scmp.ne.s32.totalorder %s259, %s260
      %p269 = scmp.eq.s32.totalorder %s34, 0
      %p270 = por %p268, %p269
      %p271 = scmp.ne.s32.totalorder %s259, %s260
      %p272 = scmp.eq.s32.totalorder %s35, 1
      %p273 = por %p271, %p272
      %p275 = scmp.ne.s32.totalorder %s260, %s274
      %p276 = scmp.eq.s32.totalorder %s35, 0
      %p277 = por %p275, %p276
      %s279 = sadd.s32 %s278, 1
      %p282 = scmp.eq.s32.totalorder %s29, 1
      %p283 = scmp.ne.s32.totalorder %s278, %s280
      %p284 = scmp.eq.s32.totalorder %s29, 0
      %p285 = por %p283, %p284
      %p286 = scmp.ne.s32.totalorder %s278, %s280
      %p287 = scmp.eq.s32.totalorder %s34, 1
      %p288 = por %p286, %p287
      %p289 = scmp.ne.s32.totalorder %s280, %s281
      %p290 = scmp.eq.s32.totalorder %s34, 0
      %p291 = por %p289, %p290
      %p292 = scmp.ne.s32.totalorder %s280, %s281
      %p293 = scmp.eq.s32.totalorder %s35, 1
      %p294 = por %p292, %p293
      %p296 = scmp.ne.s32.totalorder %s281, %s295
      %p297 = scmp.eq.s32.totalorder %s35, 0
      %p298 = por %p296, %p297
      %s299 = ssub.s32 %s29, %s36
      %p300 = scmp.eq.s32.totalorder %s299, 0
      %s302 = sadd.s32 %s301, 1
      %s303 = scalar_select %p300, %s301, %s302
      %p306 = pneg %p300
      %p307 = scmp.eq.s32.totalorder %s29, 1
      %p308 = por %p306, %p307
      %p309 = scmp.ne.s32.totalorder %s301, %s304
      %p310 = scmp.eq.s32.totalorder %s29, 0
      %p311 = por %p309, %p310
      %p312 = scmp.ne.s32.totalorder %s301, %s304
      %p313 = scmp.eq.s32.totalorder %s34, 1
      %p314 = por %p312, %p313
      %p315 = scmp.ne.s32.totalorder %s304, %s305
      %p316 = scmp.eq.s32.totalorder %s34, 0
      %p317 = por %p315, %p316
      %p318 = scmp.ne.s32.totalorder %s304, %s305
      %p319 = scmp.eq.s32.totalorder %s35, 1
      %p320 = por %p318, %p319
      %p322 = scmp.ne.s32.totalorder %s305, %s321
      %p323 = scmp.eq.s32.totalorder %s35, 0
      %p324 = por %p322, %p323
      %p325 = scmp.le.s32.totalorder 1, %s29
      %p326 = scmp.lt.s32.totalorder %s29, 3
      %p327 = pnand %p325, %p326
      %p328 = pneg %p327
      // Predicated region
      $region9: #{tpu_custom_call.1} parent=5 // pred_check
        _
      $region10: #{tpu_custom_call.1} parent=5 // pred_check_branch
        %330 = sbr.rel (%p327) target = $region12
      $region11: #{tpu_custom_call.1} parent=5 // pred_region
        %s331 = ssub.s32 %s29, 1
        // Predicated region
        $region13: #{tpu_custom_call.1} parent=11 // pred_check
          %p332 = pneg %p102
        $region14: #{tpu_custom_call.1} parent=11 // pred_check_branch
          %334 = sbr.rel (%p332) target = $region16
        $region15: #{tpu_custom_call.1} parent=11 // pred_region
          %s336 = ssub.s32 1024, 1024
          %337 = vsyncadd [#allocation7], %s336
          %s338 = sshll.u32 [#allocation8], 4
          %s339 = int_to_ptr.vmem [resolvable:$true] %s338
          %344 = dma.hbm_to_vmem [thread:$0]  %s2, 1024, %s339, [#allocation7], 64, 64, 4
        $region16: #{tpu_custom_call.1} parent=11 // pred_fallthru
          _
        // Predicated region
        $region17: #{tpu_custom_call.1} parent=11 // pred_check
          %p345 = pneg %p123
        $region18: #{tpu_custom_call.1} parent=11 // pred_check_branch
          %347 = sbr.rel (%p345) target = $region20
        $region19: #{tpu_custom_call.1} parent=11 // pred_region
          %s349 = ssub.s32 1024, 1024
          %350 = vsyncadd [#allocation10], %s349
          %s351 = sshll.u32 [#allocation9], 4
          %s352 = int_to_ptr.vmem [resolvable:$true] %s351
          %357 = dma.hbm_to_vmem [thread:$0]  %s3, 1024, %s352, [#allocation10], 64, 64, 4
        $region20: #{tpu_custom_call.1} parent=11 // pred_fallthru
          _
        // Predicated region
        $region21: #{tpu_custom_call.1} parent=11 // pred_check
          %p358 = pneg %p144
        $region22: #{tpu_custom_call.1} parent=11 // pred_check_branch
          %360 = sbr.rel (%p358) target = $region24
        $region23: #{tpu_custom_call.1} parent=11 // pred_region
          _
        $region24: #{tpu_custom_call.1} parent=11 // pred_fallthru
          _
        // Predicated region
        $region25: #{tpu_custom_call.1} parent=11 // pred_check
          %p361 = pneg %p165
        $region26: #{tpu_custom_call.1} parent=11 // pred_check_branch
          %363 = sbr.rel (%p361) target = $region28
        $region27: #{tpu_custom_call.1} parent=11 // pred_region
          %s365 = ssub.s32 1024, 1024
          %366 = vsyncadd [#allocation10], %s365
          %s367 = sshll.u32 [#allocation11], 4
          %s368 = int_to_ptr.vmem [resolvable:$true] %s367
          %373 = dma.hbm_to_vmem [thread:$0]  %s5, 1024, %s368, [#allocation10], 64, 64, 4
        $region28: #{tpu_custom_call.1} parent=11 // pred_fallthru
          _
        // Predicated region
        $region29: #{tpu_custom_call.1} parent=11 // pred_check
          %p374 = pneg %p186
        $region30: #{tpu_custom_call.1} parent=11 // pred_check_branch
          %376 = sbr.rel (%p374) target = $region32
        $region31: #{tpu_custom_call.1} parent=11 // pred_region
          _
        $region32: #{tpu_custom_call.1} parent=11 // pred_fallthru
          _
        // Predicated region
        $region33: #{tpu_custom_call.1} parent=11 // pred_check
          %p377 = pneg %p207
        $region34: #{tpu_custom_call.1} parent=11 // pred_check_branch
          %379 = sbr.rel (%p377) target = $region36
        $region35: #{tpu_custom_call.1} parent=11 // pred_region
          _
        $region36: #{tpu_custom_call.1} parent=11 // pred_fallthru
          _
        // Predicated region
        $region37: #{tpu_custom_call.1} parent=11 // pred_check
          %p380 = pneg %p228
        $region38: #{tpu_custom_call.1} parent=11 // pred_check_branch
          %382 = sbr.rel (%p380) target = $region40
        $region39: #{tpu_custom_call.1} parent=11 // pred_region
          _
        $region40: #{tpu_custom_call.1} parent=11 // pred_fallthru
          _
        // Predicated region
        $region41: #{tpu_custom_call.1} parent=11 // pred_check
          %p383 = pneg %p249
        $region42: #{tpu_custom_call.1} parent=11 // pred_check_branch
          %385 = sbr.rel (%p383) target = $region44
        $region43: #{tpu_custom_call.1} parent=11 // pred_region
          _
        $region44: #{tpu_custom_call.1} parent=11 // pred_fallthru
          _
        // Predicated region
        $region45: #{tpu_custom_call.1} parent=11 // pred_check
          %p386 = pneg %p270
        $region46: #{tpu_custom_call.1} parent=11 // pred_check_branch
          %388 = sbr.rel (%p386) target = $region48
        $region47: #{tpu_custom_call.1} parent=11 // pred_region
          _
        $region48: #{tpu_custom_call.1} parent=11 // pred_fallthru
          _
        // Predicated region
        $region49: #{tpu_custom_call.1} parent=11 // pred_check
          %p389 = pneg %p291
        $region50: #{tpu_custom_call.1} parent=11 // pred_check_branch
          %391 = sbr.rel (%p389) target = $region52
        $region51: #{tpu_custom_call.1} parent=11 // pred_region
          _
        $region52: #{tpu_custom_call.1} parent=11 // pred_fallthru
          _
      $region12: #{tpu_custom_call.1} parent=5 // pred_fallthru
        _
      %p392 = scmp.lt.s32.totalorder %s29, 2
      // Predicated region
      $region53: #{tpu_custom_call.1} parent=5 // pred_check
        %p393 = pneg %p392
      $region54: #{tpu_custom_call.1} parent=5 // pred_check_branch
        %395 = sbr.rel (%p393) target = $region56
      $region55: #{tpu_custom_call.1} parent=5 // pred_region
        // Predicated region
        $region57: #{tpu_custom_call.1} parent=55 // pred_check
          %p396 = pneg %p49
        $region58: #{tpu_custom_call.1} parent=55 // pred_check_branch
          %398 = sbr.rel (%p396) target = $region60
        $region59: #{tpu_custom_call.1} parent=55 // pred_region
          %s399 = sand.u32 %s39, 1
          %s400 = scalar_lea.sflag [#allocation4], %s399
          %s401 = sand.u32 %s39, 1
          %s402 = smul.addr %s401, 256
          %s403 = scalar_lea.vmem [#allocation3], %s402
          %s404 = smul.u32 32, %s29
          %s406 = ssub.s32 4096, 4096
          %407 = vsyncadd %s400, %s406
          %s408 = smul.addr %s404, 128
          %s409 = scalar_lea.hbm %s0, %s408
          %s410 = sshll.u32 %s403, 4
          %s411 = int_to_ptr.vmem [resolvable:$true] %s410
          %416 = dma.hbm_to_vmem [thread:$0]  %s409, 4096, %s411, %s400, 128, 128, 8
        $region60: #{tpu_custom_call.1} parent=55 // pred_fallthru
          _
        // Predicated region
        $region61: #{tpu_custom_call.1} parent=55 // pred_check
          %p417 = pneg %p75
        $region62: #{tpu_custom_call.1} parent=55 // pred_check_branch
          %419 = sbr.rel (%p417) target = $region64
        $region63: #{tpu_custom_call.1} parent=55 // pred_region
          %s420 = sand.u32 %s29, 1
          %s421 = scalar_lea.sflag [#allocation7], %s420
          %s422 = sand.u32 %s65, 1
          %s423 = smul.addr %s422, 256
          %s424 = scalar_lea.vmem [#allocation6], %s423
          %s425 = smul.u32 32, %s29
          %s427 = ssub.s32 4096, 4096
          %428 = vsyncadd %s421, %s427
          %s429 = smul.addr %s425, 128
          %s430 = scalar_lea.hbm %s1, %s429
          %s431 = sshll.u32 %s424, 4
          %s432 = int_to_ptr.vmem [resolvable:$true] %s431
          %437 = dma.hbm_to_vmem [thread:$0]  %s430, 4096, %s432, %s421, 128, 128, 8
        $region64: #{tpu_custom_call.1} parent=55 // pred_fallthru
          _
      $region56: #{tpu_custom_call.1} parent=5 // pred_fallthru
        _
      %p438 = scmp.le.s32.totalorder 1, %s29
      %p439 = scmp.lt.s32.totalorder %s29, 3
      %p440 = pnand %p438, %p439
      %p441 = pneg %p440
      // Predicated region
      $region65: #{tpu_custom_call.1} parent=5 // pred_check
        _
      $region66: #{tpu_custom_call.1} parent=5 // pred_check_branch
        %443 = sbr.rel (%p440) target = $region68
      $region67: #{tpu_custom_call.1} parent=5 // pred_region
        %s444 = ssub.s32 %s29, 1
        %s445 = sand.u32 %s42, 1
        %s446 = scalar_lea.sflag [#allocation4], %s445
        %s447 = sand.u32 %s42, 1
        %s448 = smul.addr %s447, 256
        %s449 = scalar_lea.vmem [#allocation3], %s448
        // Predicated region
        $region69: #{tpu_custom_call.1} parent=67 // pred_check
          %p450 = pneg %p55
        $region70: #{tpu_custom_call.1} parent=67 // pred_check_branch
          %452 = sbr.rel (%p450) target = $region72
        $region71: #{tpu_custom_call.1} parent=67 // pred_region
          %453 = dma.done %s446, 4096
        $region72: #{tpu_custom_call.1} parent=67 // pred_fallthru
          _
        %s454 = sand.u32 %s34, 1
        %s455 = scalar_lea.sflag [#allocation7], %s454
        %s456 = sand.u32 %s68, 1
        %s457 = smul.addr %s456, 256
        %s458 = scalar_lea.vmem [#allocation6], %s457
        // Predicated region
        $region73: #{tpu_custom_call.1} parent=67 // pred_check
          %p459 = pneg %p81
        $region74: #{tpu_custom_call.1} parent=67 // pred_check_branch
          %461 = sbr.rel (%p459) target = $region76
        $region75: #{tpu_custom_call.1} parent=67 // pred_region
          %462 = dma.done %s455, 4096
        $region76: #{tpu_custom_call.1} parent=67 // pred_fallthru
          _
        // Predicated region
        $region77: #{tpu_custom_call.1} parent=67 // pred_check
          %p463 = pneg %p102
        $region78: #{tpu_custom_call.1} parent=67 // pred_check_branch
          %465 = sbr.rel (%p463) target = $region80
        $region79: #{tpu_custom_call.1} parent=67 // pred_region
          %466 = dma.done [#allocation7], 1024
        $region80: #{tpu_custom_call.1} parent=67 // pred_fallthru
          _
        // Predicated region
        $region81: #{tpu_custom_call.1} parent=67 // pred_check
          %p467 = pneg %p123
        $region82: #{tpu_custom_call.1} parent=67 // pred_check_branch
          %469 = sbr.rel (%p467) target = $region84
        $region83: #{tpu_custom_call.1} parent=67 // pred_region
          %470 = dma.done [#allocation10], 1024
        $region84: #{tpu_custom_call.1} parent=67 // pred_fallthru
          _
        // Predicated region
        $region85: #{tpu_custom_call.1} parent=67 // pred_check
          %p471 = pneg %p165
        $region86: #{tpu_custom_call.1} parent=67 // pred_check_branch
          %473 = sbr.rel (%p471) target = $region88
        $region87: #{tpu_custom_call.1} parent=67 // pred_region
          %474 = dma.done [#allocation10], 1024
        $region88: #{tpu_custom_call.1} parent=67 // pred_fallthru
          _
        %s475 = sand.u32 %s42, 1
        %s476 = scalar_lea.sflag [#allocation4], %s475
        %s477 = sand.u32 %s42, 1
        %s478 = smul.addr %s477, 256
        %s479 = scalar_lea.vmem [#allocation3], %s478
        %p480 = pneg %p55
        %p481 = pneg %p52
        %s482 = sand.u32 %s34, 1
        %s483 = scalar_lea.sflag [#allocation7], %s482
        %s484 = sand.u32 %s68, 1
        %s485 = smul.addr %s484, 256
        %s486 = scalar_lea.vmem [#allocation6], %s485
        %p487 = pneg %p81
        %p488 = pneg %p78
        %p489 = pneg %p102
        %p490 = pneg %p99
        %p491 = pneg %p123
        %p492 = pneg %p120
        %p493 = pneg %p144
        %p494 = pneg %p141
        %p495 = pneg %p165
        %p496 = pneg %p162
        %p497 = pneg %p186
        %p498 = pneg %p183
        %p499 = pneg %p207
        %p500 = pneg %p204
        %p501 = pneg %p228
        %p502 = pneg %p225
        %p503 = pneg %p249
        %p504 = pneg %p246
        %p505 = pneg %p270
        %p506 = pneg %p267
        %p507 = pneg %p291
        %p508 = pneg %p288
        %p509 = pneg %p317
        %p510 = pneg %p314
        %s511 = sand.u32 %s304, 1
        %s512 = scalar_lea.sflag [#allocation5], %s511
        %s513 = sand.u32 %s304, 1
        %s514 = smul.addr %s513, 256
        %s515 = scalar_lea.vmem [#allocation12], %s514
        %s516 = smul.u32 32, %s34
        %s517 = smul.u32 32, %s34
        %s518 = smul.u32 32, %s34
        %v520 = vld [vmem:[%s449] sm:$0xff]
        %v521 = vld [vmem:[%s449 + $0x8] sm:$0xff]
        %v522 = vld [vmem:[%s449 + $0x10] sm:$0xff]
        %v523 = vld [vmem:[%s449 + $0x18] sm:$0xff]
        %v524 = vld [vmem:[%s449 + $0x20] sm:$0xff]
        %v525 = vld [vmem:[%s449 + $0x28] sm:$0xff]
        %v526 = vld [vmem:[%s449 + $0x30] sm:$0xff]
        %v527 = vld [vmem:[%s449 + $0x38] sm:$0xff]
        %v528 = vld [vmem:[%s449 + $0x40] sm:$0xff]
        %v529 = vld [vmem:[%s449 + $0x48] sm:$0xff]
        %v530 = vld [vmem:[%s449 + $0x50] sm:$0xff]
        %v531 = vld [vmem:[%s449 + $0x58] sm:$0xff]
        %v532 = vld [vmem:[%s449 + $0x60] sm:$0xff]
        %v533 = vld [vmem:[%s449 + $0x68] sm:$0xff]
        %v534 = vld [vmem:[%s449 + $0x70] sm:$0xff]
        %v535 = vld [vmem:[%s449 + $0x78] sm:$0xff]
        %v536 = vld [vmem:[%s449 + $0x80] sm:$0xff]
        %v537 = vld [vmem:[%s449 + $0x88] sm:$0xff]
        %v538 = vld [vmem:[%s449 + $0x90] sm:$0xff]
        %v539 = vld [vmem:[%s449 + $0x98] sm:$0xff]
        %v540 = vld [vmem:[%s449 + $0xa0] sm:$0xff]
        %v541 = vld [vmem:[%s449 + $0xa8] sm:$0xff]
        %v542 = vld [vmem:[%s449 + $0xb0] sm:$0xff]
        %v543 = vld [vmem:[%s449 + $0xb8] sm:$0xff]
        %v544 = vld [vmem:[%s449 + $0xc0] sm:$0xff]
        %v545 = vld [vmem:[%s449 + $0xc8] sm:$0xff]
        %v546 = vld [vmem:[%s449 + $0xd0] sm:$0xff]
        %v547 = vld [vmem:[%s449 + $0xd8] sm:$0xff]
        %v548 = vld [vmem:[%s449 + $0xe0] sm:$0xff]
        %v549 = vld [vmem:[%s449 + $0xe8] sm:$0xff]
        %v550 = vld [vmem:[%s449 + $0xf0] sm:$0xff]
        %v551 = vld [vmem:[%s449 + $0xf8] sm:$0xff]
        %v552 = vld [vmem:[%s458] sm:$0xff]
        %v553 = vld [vmem:[%s458 + $0x8] sm:$0xff]
        %v554 = vld [vmem:[%s458 + $0x10] sm:$0xff]
        %v555 = vld [vmem:[%s458 + $0x18] sm:$0xff]
        %v556 = vld [vmem:[%s458 + $0x20] sm:$0xff]
        %v557 = vld [vmem:[%s458 + $0x28] sm:$0xff]
        %v558 = vld [vmem:[%s458 + $0x30] sm:$0xff]
        %v559 = vld [vmem:[%s458 + $0x38] sm:$0xff]
        %v560 = vld [vmem:[%s458 + $0x40] sm:$0xff]
        %v561 = vld [vmem:[%s458 + $0x48] sm:$0xff]
        %v562 = vld [vmem:[%s458 + $0x50] sm:$0xff]
        %v563 = vld [vmem:[%s458 + $0x58] sm:$0xff]
        %v564 = vld [vmem:[%s458 + $0x60] sm:$0xff]
        %v565 = vld [vmem:[%s458 + $0x68] sm:$0xff]
        %v566 = vld [vmem:[%s458 + $0x70] sm:$0xff]
        %v567 = vld [vmem:[%s458 + $0x78] sm:$0xff]
        %v568 = vld [vmem:[%s458 + $0x80] sm:$0xff]
        %v569 = vld [vmem:[%s458 + $0x88] sm:$0xff]
        %v570 = vld [vmem:[%s458 + $0x90] sm:$0xff]
        %v571 = vld [vmem:[%s458 + $0x98] sm:$0xff]
        %v572 = vld [vmem:[%s458 + $0xa0] sm:$0xff]
        %v573 = vld [vmem:[%s458 + $0xa8] sm:$0xff]
        %v574 = vld [vmem:[%s458 + $0xb0] sm:$0xff]
        %v575 = vld [vmem:[%s458 + $0xb8] sm:$0xff]
        %v576 = vld [vmem:[%s458 + $0xc0] sm:$0xff]
        %v577 = vld [vmem:[%s458 + $0xc8] sm:$0xff]
        %v578 = vld [vmem:[%s458 + $0xd0] sm:$0xff]
        %v579 = vld [vmem:[%s458 + $0xd8] sm:$0xff]
        %v580 = vld [vmem:[%s458 + $0xe0] sm:$0xff]
        %v581 = vld [vmem:[%s458 + $0xe8] sm:$0xff]
        %v582 = vld [vmem:[%s458 + $0xf0] sm:$0xff]
        %v583 = vld [vmem:[%s458 + $0xf8] sm:$0xff]
        %v584 = vpack.c.bf16 %v521, %v520
        %v585 = vpack.c.bf16 %v523, %v522
        %v586 = vpack.c.bf16 %v525, %v524
        %v587 = vpack.c.bf16 %v527, %v526
        %v588 = vpack.c.bf16 %v529, %v528
        %v589 = vpack.c.bf16 %v531, %v530
        %v590 = vpack.c.bf16 %v533, %v532
        %v591 = vpack.c.bf16 %v535, %v534
        %v592 = vpack.c.bf16 %v537, %v536
        %v593 = vpack.c.bf16 %v539, %v538
        %v594 = vpack.c.bf16 %v541, %v540
        %v595 = vpack.c.bf16 %v543, %v542
        %v596 = vpack.c.bf16 %v545, %v544
        %v597 = vpack.c.bf16 %v547, %v546
        %v598 = vpack.c.bf16 %v549, %v548
        %v599 = vpack.c.bf16 %v551, %v550
        %v600 = vpack.c.bf16 %v553, %v552
        %v601 = vpack.c.bf16 %v555, %v554
        %v602 = vpack.c.bf16 %v557, %v556
        %v603 = vpack.c.bf16 %v559, %v558
        %v604 = vpack.c.bf16 %v561, %v560
        %v605 = vpack.c.bf16 %v563, %v562
        %v606 = vpack.c.bf16 %v565, %v564
        %v607 = vpack.c.bf16 %v567, %v566
        %v608 = vpack.c.bf16 %v569, %v568
        %v609 = vpack.c.bf16 %v571, %v570
        %v610 = vpack.c.bf16 %v573, %v572
        %v611 = vpack.c.bf16 %v575, %v574
        %v612 = vpack.c.bf16 %v577, %v576
        %v613 = vpack.c.bf16 %v579, %v578
        %v614 = vpack.c.bf16 %v581, %v580
        %v615 = vpack.c.bf16 %v583, %v582
        %v616 = vld [vmem:[#allocation8] sm:$0xf]
        %v617 = vld [vmem:[#allocation8 + $0x4] sm:$0xf]
        %v618 = vld [vmem:[#allocation8 + $0x8] sm:$0xf]
        %v619 = vld [vmem:[#allocation8 + $0xc] sm:$0xf]
        %v620 = vld [vmem:[#allocation8 + $0x10] sm:$0xf]
        %v621 = vld [vmem:[#allocation8 + $0x14] sm:$0xf]
        %v622 = vld [vmem:[#allocation8 + $0x18] sm:$0xf]
        %v623 = vld [vmem:[#allocation8 + $0x1c] sm:$0xf]
        %v624 = vld [vmem:[#allocation8 + $0x20] sm:$0xf]
        %v625 = vld [vmem:[#allocation8 + $0x24] sm:$0xf]
        %v626 = vld [vmem:[#allocation8 + $0x28] sm:$0xf]
        %v627 = vld [vmem:[#allocation8 + $0x2c] sm:$0xf]
        %v628 = vld [vmem:[#allocation8 + $0x30] sm:$0xf]
        %v629 = vld [vmem:[#allocation8 + $0x34] sm:$0xf]
        %v630 = vld [vmem:[#allocation8 + $0x38] sm:$0xf]
        %v631 = vld [vmem:[#allocation8 + $0x3c] sm:$0xf]
        %v632 = vld [vmem:[#allocation9] sm:$0xf]
        %v633 = vld [vmem:[#allocation9 + $0x4] sm:$0xf]
        %v634 = vld [vmem:[#allocation9 + $0x8] sm:$0xf]
        %v635 = vld [vmem:[#allocation9 + $0xc] sm:$0xf]
        %v636 = vld [vmem:[#allocation9 + $0x10] sm:$0xf]
        %v637 = vld [vmem:[#allocation9 + $0x14] sm:$0xf]
        %v638 = vld [vmem:[#allocation9 + $0x18] sm:$0xf]
        %v639 = vld [vmem:[#allocation9 + $0x1c] sm:$0xf]
        %v640 = vld [vmem:[#allocation9 + $0x20] sm:$0xf]
        %v641 = vld [vmem:[#allocation9 + $0x24] sm:$0xf]
        %v642 = vld [vmem:[#allocation9 + $0x28] sm:$0xf]
        %v643 = vld [vmem:[#allocation9 + $0x2c] sm:$0xf]
        %v644 = vld [vmem:[#allocation9 + $0x30] sm:$0xf]
        %v645 = vld [vmem:[#allocation9 + $0x34] sm:$0xf]
        %v646 = vld [vmem:[#allocation9 + $0x38] sm:$0xf]
        %v647 = vld [vmem:[#allocation9 + $0x3c] sm:$0xf]
        %v664 = vunpack.c.l.b16 %v632
        %v665 = vunpack.c.l.b16 %v633
        %v666 = vunpack.c.l.b16 %v634
        %v667 = vunpack.c.l.b16 %v635
        %v668 = vunpack.c.l.b16 %v636
        %v669 = vunpack.c.l.b16 %v637
        %v670 = vunpack.c.l.b16 %v638
        %v671 = vunpack.c.l.b16 %v639
        %v672 = vunpack.c.l.b16 %v640
        %v673 = vunpack.c.l.b16 %v641
        %v674 = vunpack.c.l.b16 %v642
        %v675 = vunpack.c.l.b16 %v643
        %v676 = vunpack.c.l.b16 %v644
        %v677 = vunpack.c.l.b16 %v645
        %v678 = vunpack.c.l.b16 %v646
        %v679 = vunpack.c.l.b16 %v647
        %v680 = vpack.c.b16 %v665, %v664
        %v681 = vpack.c.b16 %v667, %v666
        %v682 = vpack.c.b16 %v669, %v668
        %v683 = vpack.c.b16 %v671, %v670
        %v684 = vpack.c.b16 %v673, %v672
        %v685 = vpack.c.b16 %v675, %v674
        %v686 = vpack.c.b16 %v677, %v676
        %v687 = vpack.c.b16 %v679, %v678
        %696 = vmatprep.subr.bf16.mxu0 0
        %697 = vmatpush1.bf16.msra.mxu0 %v680
        %698 = vmatprep.subr.bf16.mxu0 0
        %699 = vmatpush1.bf16.msra.mxu0 %v681
        %700 = vmatprep.subr.bf16.mxu0 0
        %701 = vmatpush1.bf16.msra.mxu0 %v682
        %702 = vmatprep.subr.bf16.mxu0 0
        %703 = vmatpush1.bf16.msra.mxu0 %v683
        %704 = vmatprep.subr.bf16.mxu0 0
        %705 = vmatpush1.bf16.msra.mxu0 %v684
        %706 = vmatprep.subr.bf16.mxu0 0
        %707 = vmatpush1.bf16.msra.mxu0 %v685
        %708 = vmatprep.subr.bf16.mxu0 0
        %709 = vmatpush1.bf16.msra.mxu0 %v686
        %710 = vmatprep.subr.bf16.mxu0 0
        %711 = vmatpush1.bf16.msra.mxu0 %v687
        %712 = vmatprep.subr.bf16.mxu0 0
        %713 = vmatpush1.bf16.msra.mxu0 0
        %714 = vmatprep.subr.bf16.mxu0 0
        %715 = vmatpush1.bf16.msra.mxu0 0
        %716 = vmatprep.subr.bf16.mxu0 0
        %717 = vmatpush1.bf16.msra.mxu0 0
        %718 = vmatprep.subr.bf16.mxu0 0
        %719 = vmatpush1.bf16.msra.mxu0 0
        %720 = vmatprep.subr.bf16.mxu0 0
        %721 = vmatpush1.bf16.msra.mxu0 0
        %722 = vmatprep.subr.bf16.mxu0 0
        %723 = vmatpush1.bf16.msra.mxu0 0
        %724 = vmatprep.subr.bf16.mxu0 0
        %725 = vmatpush1.bf16.msra.mxu0 0
        %726 = vmatprep.subr.bf16.mxu0 0
        %727 = vmatpush1.bf16.msra.mxu0 0
        %728 = vmatprep.mubr.bf16.mxu0 0
        %729 = vmatmul.mubr.bf16.gmra.mrb[0].mxu0 %v600
        %v730 = vpop.f32.mrb[0].mxu0
        %v731 = vadd.f32 0.0, %v730
        %v732 = vpop.f32.mrb[0].mxu0
        %v733 = vpop.f32.mrb[0].mxu0
        %v734 = vadd.f32 0.0, %v733
        %v735 = vpop.f32.mrb[0].mxu0
        %736 = vmatprep.mubr.bf16.mxu0 0
        %737 = vmatmul.mubr.bf16.gmra.mrb[0].mxu0 %v601
        %v738 = vpop.f32.mrb[0].mxu0
        %v739 = vadd.f32 0.0, %v738
        %v740 = vpop.f32.mrb[0].mxu0
        %v741 = vpop.f32.mrb[0].mxu0
        %v742 = vadd.f32 0.0, %v741
        %v743 = vpop.f32.mrb[0].mxu0
        %744 = vmatprep.mubr.bf16.mxu0 0
        %745 = vmatmul.mubr.bf16.gmra.mrb[0].mxu0 %v602
        %v746 = vpop.f32.mrb[0].mxu0
        %v747 = vadd.f32 0.0, %v746
        %v748 = vpop.f32.mrb[0].mxu0
        %v749 = vpop.f32.mrb[0].mxu0
        %v750 = vadd.f32 0.0, %v749
        %v751 = vpop.f32.mrb[0].mxu0
        %752 = vmatprep.mubr.bf16.mxu0 0
        %753 = vmatmul.mubr.bf16.gmra.mrb[0].mxu0 %v603
        %v754 = vpop.f32.mrb[0].mxu0
        %v755 = vadd.f32 0.0, %v754
        %v756 = vpop.f32.mrb[0].mxu0
        %v757 = vpop.f32.mrb[0].mxu0
        %v758 = vadd.f32 0.0, %v757
        %v759 = vpop.f32.mrb[0].mxu0
        %760 = vmatprep.mubr.bf16.mxu0 0
        %761 = vmatmul.mubr.bf16.gmra.mrb[0].mxu0 %v604
        %v762 = vpop.f32.mrb[0].mxu0
        %v763 = vadd.f32 0.0, %v762
        %v764 = vpop.f32.mrb[0].mxu0
        %v765 = vpop.f32.mrb[0].mxu0
        %v766 = vadd.f32 0.0, %v765
        %v767 = vpop.f32.mrb[0].mxu0
        %768 = vmatprep.mubr.bf16.mxu0 0
        %769 = vmatmul.mubr.bf16.gmra.mrb[0].mxu0 %v605
        %v770 = vpop.f32.mrb[0].mxu0
        %v771 = vadd.f32 0.0, %v770
        %v772 = vpop.f32.mrb[0].mxu0
        %v773 = vpop.f32.mrb[0].mxu0
        %v774 = vadd.f32 0.0, %v773
        %v775 = vpop.f32.mrb[0].mxu0
        %776 = vmatprep.mubr.bf16.mxu0 0
        %777 = vmatmul.mubr.bf16.gmra.mrb[0].mxu0 %v606
        %v778 = vpop.f32.mrb[0].mxu0
        %v779 = vadd.f32 0.0, %v778
        %v780 = vpop.f32.mrb[0].mxu0
        %v781 = vpop.f32.mrb[0].mxu0
        %v782 = vadd.f32 0.0, %v781
        %v783 = vpop.f32.mrb[0].mxu0
        %784 = vmatprep.mubr.bf16.mxu0 0
        %785 = vmatmul.mubr.bf16.gmra.mrb[0].mxu0 %v607
        %v786 = vpop.f32.mrb[0].mxu0
        %v787 = vadd.f32 0.0, %v786
        %v788 = vpop.f32.mrb[0].mxu0
        %v789 = vpop.f32.mrb[0].mxu0
        %v790 = vadd.f32 0.0, %v789
        %v791 = vpop.f32.mrb[0].mxu0
        %792 = vmatprep.mubr.bf16.mxu0 0
        %793 = vmatmul.mubr.bf16.gmra.mrb[0].mxu0 %v608
        %v794 = vpop.f32.mrb[0].mxu0
        %v795 = vadd.f32 0.0, %v794
        %v796 = vpop.f32.mrb[0].mxu0
        %v797 = vpop.f32.mrb[0].mxu0
        %v798 = vadd.f32 0.0, %v797
        %v799 = vpop.f32.mrb[0].mxu0
        %800 = vmatprep.mubr.bf16.mxu0 0
        %801 = vmatmul.mubr.bf16.gmra.mrb[0].mxu0 %v609
        %v802 = vpop.f32.mrb[0].mxu0
        %v803 = vadd.f32 0.0, %v802
        %v804 = vpop.f32.mrb[0].mxu0
        %v805 = vpop.f32.mrb[0].mxu0
        %v806 = vadd.f32 0.0, %v805
        %v807 = vpop.f32.mrb[0].mxu0
        %808 = vmatprep.mubr.bf16.mxu0 0
        %809 = vmatmul.mubr.bf16.gmra.mrb[0].mxu0 %v610
        %v810 = vpop.f32.mrb[0].mxu0
        %v811 = vadd.f32 0.0, %v810
        %v812 = vpop.f32.mrb[0].mxu0
        %v813 = vpop.f32.mrb[0].mxu0
        %v814 = vadd.f32 0.0, %v813
        %v815 = vpop.f32.mrb[0].mxu0
        %816 = vmatprep.mubr.bf16.mxu0 0
        %817 = vmatmul.mubr.bf16.gmra.mrb[0].mxu0 %v611
        %v818 = vpop.f32.mrb[0].mxu0
        %v819 = vadd.f32 0.0, %v818
        %v820 = vpop.f32.mrb[0].mxu0
        %v821 = vpop.f32.mrb[0].mxu0
        %v822 = vadd.f32 0.0, %v821
        %v823 = vpop.f32.mrb[0].mxu0
        %824 = vmatprep.mubr.bf16.mxu0 0
        %825 = vmatmul.mubr.bf16.gmra.mrb[0].mxu0 %v612
        %v826 = vpop.f32.mrb[0].mxu0
        %v827 = vadd.f32 0.0, %v826
        %v828 = vpop.f32.mrb[0].mxu0
        %v829 = vpop.f32.mrb[0].mxu0
        %v830 = vadd.f32 0.0, %v829
        %v831 = vpop.f32.mrb[0].mxu0
        %832 = vmatprep.mubr.bf16.mxu0 0
        %833 = vmatmul.mubr.bf16.gmra.mrb[0].mxu0 %v613
        %v834 = vpop.f32.mrb[0].mxu0
        %v835 = vadd.f32 0.0, %v834
        %v836 = vpop.f32.mrb[0].mxu0
        %v837 = vpop.f32.mrb[0].mxu0
        %v838 = vadd.f32 0.0, %v837
        %v839 = vpop.f32.mrb[0].mxu0
        %840 = vmatprep.mubr.bf16.mxu0 0
        %841 = vmatmul.mubr.bf16.gmra.mrb[0].mxu0 %v614
        %v842 = vpop.f32.mrb[0].mxu0
        %v843 = vadd.f32 0.0, %v842
        %v844 = vpop.f32.mrb[0].mxu0
        %v845 = vpop.f32.mrb[0].mxu0
        %v846 = vadd.f32 0.0, %v845
        %v847 = vpop.f32.mrb[0].mxu0
        %848 = vmatprep.mubr.bf16.mxu0 0
        %849 = vmatmul.mubr.bf16.gmra.mrb[0].mxu0 %v615
        %v850 = vpop.f32.mrb[0].mxu0
        %v851 = vadd.f32 0.0, %v850
        %v852 = vpop.f32.mrb[0].mxu0
        %v853 = vpop.f32.mrb[0].mxu0
        %v854 = vadd.f32 0.0, %v853
        %v855 = vpop.f32.mrb[0].mxu0
        %856 = vdwg.mxu0
        %v873 = vunpack.c.l.b16 %v616
        %v874 = vunpack.c.l.b16 %v617
        %v875 = vunpack.c.l.b16 %v618
        %v876 = vunpack.c.l.b16 %v619
        %v877 = vunpack.c.l.b16 %v620
        %v878 = vunpack.c.l.b16 %v621
        %v879 = vunpack.c.l.b16 %v622
        %v880 = vunpack.c.l.b16 %v623
        %v881 = vunpack.c.l.b16 %v624
        %v882 = vunpack.c.l.b16 %v625
        %v883 = vunpack.c.l.b16 %v626
        %v884 = vunpack.c.l.b16 %v627
        %v885 = vunpack.c.l.b16 %v628
        %v886 = vunpack.c.l.b16 %v629
        %v887 = vunpack.c.l.b16 %v630
        %v888 = vunpack.c.l.b16 %v631
        %v889 = vpack.c.b16 %v874, %v873
        %v890 = vpack.c.b16 %v876, %v875
        %v891 = vpack.c.b16 %v878, %v877
        %v892 = vpack.c.b16 %v880, %v879
        %v893 = vpack.c.b16 %v882, %v881
        %v894 = vpack.c.b16 %v884, %v883
        %v895 = vpack.c.b16 %v886, %v885
        %v896 = vpack.c.b16 %v888, %v887
        %905 = vmatprep.subr.bf16.mxu0 0
        %906 = vmatpush1.bf16.msra.mxu0 %v889
        %907 = vmatprep.subr.bf16.mxu0 0
        %908 = vmatpush1.bf16.msra.mxu0 %v890
        %909 = vmatprep.subr.bf16.mxu0 0
        %910 = vmatpush1.bf16.msra.mxu0 %v891
        %911 = vmatprep.subr.bf16.mxu0 0
        %912 = vmatpush1.bf16.msra.mxu0 %v892
        %913 = vmatprep.subr.bf16.mxu0 0
        %914 = vmatpush1.bf16.msra.mxu0 %v893
        %915 = vmatprep.subr.bf16.mxu0 0
        %916 = vmatpush1.bf16.msra.mxu0 %v894
        %917 = vmatprep.subr.bf16.mxu0 0
        %918 = vmatpush1.bf16.msra.mxu0 %v895
        %919 = vmatprep.subr.bf16.mxu0 0
        %920 = vmatpush1.bf16.msra.mxu0 %v896
        %921 = vmatprep.subr.bf16.mxu0 0
        %922 = vmatpush1.bf16.msra.mxu0 0
        %923 = vmatprep.subr.bf16.mxu0 0
        %924 = vmatpush1.bf16.msra.mxu0 0
        %925 = vmatprep.subr.bf16.mxu0 0
        %926 = vmatpush1.bf16.msra.mxu0 0
        %927 = vmatprep.subr.bf16.mxu0 0
        %928 = vmatpush1.bf16.msra.mxu0 0
        %929 = vmatprep.subr.bf16.mxu0 0
        %930 = vmatpush1.bf16.msra.mxu0 0
        %931 = vmatprep.subr.bf16.mxu0 0
        %932 = vmatpush1.bf16.msra.mxu0 0
        %933 = vmatprep.subr.bf16.mxu0 0
        %934 = vmatpush1.bf16.msra.mxu0 0
        %935 = vmatprep.subr.bf16.mxu0 0
        %936 = vmatpush1.bf16.msra.mxu0 0
        %937 = vmatprep.mubr.bf16.mxu0 0
        %938 = vmatmul.mubr.bf16.gmra.mrb[0].mxu0 %v584
        %v939 = vpop.f32.mrb[0].mxu0
        %v940 = vadd.f32 %v731, %v939
        %v941 = vpop.f32.mrb[0].mxu0
        %v942 = vpop.f32.mrb[0].mxu0
        %v943 = vadd.f32 %v734, %v942
        %v944 = vpop.f32.mrb[0].mxu0
        %945 = vmatprep.mubr.bf16.mxu0 0
        %946 = vmatmul.mubr.bf16.gmra.mrb[0].mxu0 %v585
        %v947 = vpop.f32.mrb[0].mxu0
        %v948 = vadd.f32 %v739, %v947
        %v949 = vpop.f32.mrb[0].mxu0
        %v950 = vpop.f32.mrb[0].mxu0
        %v951 = vadd.f32 %v742, %v950
        %v952 = vpop.f32.mrb[0].mxu0
        %953 = vmatprep.mubr.bf16.mxu0 0
        %954 = vmatmul.mubr.bf16.gmra.mrb[0].mxu0 %v586
        %v955 = vpop.f32.mrb[0].mxu0
        %v956 = vadd.f32 %v747, %v955
        %v957 = vpop.f32.mrb[0].mxu0
        %v958 = vpop.f32.mrb[0].mxu0
        %v959 = vadd.f32 %v750, %v958
        %v960 = vpop.f32.mrb[0].mxu0
        %961 = vmatprep.mubr.bf16.mxu0 0
        %962 = vmatmul.mubr.bf16.gmra.mrb[0].mxu0 %v587
        %v963 = vpop.f32.mrb[0].mxu0
        %v964 = vadd.f32 %v755, %v963
        %v965 = vpop.f32.mrb[0].mxu0
        %v966 = vpop.f32.mrb[0].mxu0
        %v967 = vadd.f32 %v758, %v966
        %v968 = vpop.f32.mrb[0].mxu0
        %969 = vmatprep.mubr.bf16.mxu0 0
        %970 = vmatmul.mubr.bf16.gmra.mrb[0].mxu0 %v588
        %v971 = vpop.f32.mrb[0].mxu0
        %v972 = vadd.f32 %v763, %v971
        %v973 = vpop.f32.mrb[0].mxu0
        %v974 = vpop.f32.mrb[0].mxu0
        %v975 = vadd.f32 %v766, %v974
        %v976 = vpop.f32.mrb[0].mxu0
        %977 = vmatprep.mubr.bf16.mxu0 0
        %978 = vmatmul.mubr.bf16.gmra.mrb[0].mxu0 %v589
        %v979 = vpop.f32.mrb[0].mxu0
        %v980 = vadd.f32 %v771, %v979
        %v981 = vpop.f32.mrb[0].mxu0
        %v982 = vpop.f32.mrb[0].mxu0
        %v983 = vadd.f32 %v774, %v982
        %v984 = vpop.f32.mrb[0].mxu0
        %985 = vmatprep.mubr.bf16.mxu0 0
        %986 = vmatmul.mubr.bf16.gmra.mrb[0].mxu0 %v590
        %v987 = vpop.f32.mrb[0].mxu0
        %v988 = vadd.f32 %v779, %v987
        %v989 = vpop.f32.mrb[0].mxu0
        %v990 = vpop.f32.mrb[0].mxu0
        %v991 = vadd.f32 %v782, %v990
        %v992 = vpop.f32.mrb[0].mxu0
        %993 = vmatprep.mubr.bf16.mxu0 0
        %994 = vmatmul.mubr.bf16.gmra.mrb[0].mxu0 %v591
        %v995 = vpop.f32.mrb[0].mxu0
        %v996 = vadd.f32 %v787, %v995
        %v997 = vpop.f32.mrb[0].mxu0
        %v998 = vpop.f32.mrb[0].mxu0
        %v999 = vadd.f32 %v790, %v998
        %v1000 = vpop.f32.mrb[0].mxu0
        %1001 = vmatprep.mubr.bf16.mxu0 0
        %1002 = vmatmul.mubr.bf16.gmra.mrb[0].mxu0 %v592
        %v1003 = vpop.f32.mrb[0].mxu0
        %v1004 = vadd.f32 %v795, %v1003
        %v1005 = vpop.f32.mrb[0].mxu0
        %v1006 = vpop.f32.mrb[0].mxu0
        %v1007 = vadd.f32 %v798, %v1006
        %v1008 = vpop.f32.mrb[0].mxu0
        %1009 = vmatprep.mubr.bf16.mxu0 0
        %1010 = vmatmul.mubr.bf16.gmra.mrb[0].mxu0 %v593
        %v1011 = vpop.f32.mrb[0].mxu0
        %v1012 = vadd.f32 %v803, %v1011
        %v1013 = vpop.f32.mrb[0].mxu0
        %v1014 = vpop.f32.mrb[0].mxu0
        %v1015 = vadd.f32 %v806, %v1014
        %v1016 = vpop.f32.mrb[0].mxu0
        %1017 = vmatprep.mubr.bf16.mxu0 0
        %1018 = vmatmul.mubr.bf16.gmra.mrb[0].mxu0 %v594
        %v1019 = vpop.f32.mrb[0].mxu0
        %v1020 = vadd.f32 %v811, %v1019
        %v1021 = vpop.f32.mrb[0].mxu0
        %v1022 = vpop.f32.mrb[0].mxu0
        %v1023 = vadd.f32 %v814, %v1022
        %v1024 = vpop.f32.mrb[0].mxu0
        %1025 = vmatprep.mubr.bf16.mxu0 0
        %1026 = vmatmul.mubr.bf16.gmra.mrb[0].mxu0 %v595
        %v1027 = vpop.f32.mrb[0].mxu0
        %v1028 = vadd.f32 %v819, %v1027
        %v1029 = vpop.f32.mrb[0].mxu0
        %v1030 = vpop.f32.mrb[0].mxu0
        %v1031 = vadd.f32 %v822, %v1030
        %v1032 = vpop.f32.mrb[0].mxu0
        %1033 = vmatprep.mubr.bf16.mxu0 0
        %1034 = vmatmul.mubr.bf16.gmra.mrb[0].mxu0 %v596
        %v1035 = vpop.f32.mrb[0].mxu0
        %v1036 = vadd.f32 %v827, %v1035
        %v1037 = vpop.f32.mrb[0].mxu0
        %v1038 = vpop.f32.mrb[0].mxu0
        %v1039 = vadd.f32 %v830, %v1038
        %v1040 = vpop.f32.mrb[0].mxu0
        %1041 = vmatprep.mubr.bf16.mxu0 0
        %1042 = vmatmul.mubr.bf16.gmra.mrb[0].mxu0 %v597
        %v1043 = vpop.f32.mrb[0].mxu0
        %v1044 = vadd.f32 %v835, %v1043
        %v1045 = vpop.f32.mrb[0].mxu0
        %v1046 = vpop.f32.mrb[0].mxu0
        %v1047 = vadd.f32 %v838, %v1046
        %v1048 = vpop.f32.mrb[0].mxu0
        %1049 = vmatprep.mubr.bf16.mxu0 0
        %1050 = vmatmul.mubr.bf16.gmra.mrb[0].mxu0 %v598
        %v1051 = vpop.f32.mrb[0].mxu0
        %v1052 = vadd.f32 %v843, %v1051
        %v1053 = vpop.f32.mrb[0].mxu0
        %v1054 = vpop.f32.mrb[0].mxu0
        %v1055 = vadd.f32 %v846, %v1054
        %v1056 = vpop.f32.mrb[0].mxu0
        %1057 = vmatprep.mubr.bf16.mxu0 0
        %1058 = vmatmul.mubr.bf16.gmra.mrb[0].mxu0 %v599
        %v1059 = vpop.f32.mrb[0].mxu0
        %v1060 = vadd.f32 %v851, %v1059
        %v1061 = vpop.f32.mrb[0].mxu0
        %v1062 = vpop.f32.mrb[0].mxu0
        %v1063 = vadd.f32 %v854, %v1062
        %v1064 = vpop.f32.mrb[0].mxu0
        %1065 = vdwg.mxu0
        %v1066 = vld [vmem:[%s4] sm:$0x1]
        %v1068 = vlaneseq
        %v1069 = vshrl.u32 %v1068, 7
        %v1070 = vsub.s32 0, %v1069
        %v1071 = vrot.slane %v1066, %v1070
        %v1073 = vadd.f32 %v940, %v1071
        %v1074 = vadd.f32 %v943, %v1071
        %v1075 = vadd.f32 %v948, %v1071
        %v1076 = vadd.f32 %v951, %v1071
        %v1077 = vadd.f32 %v956, %v1071
        %v1078 = vadd.f32 %v959, %v1071
        %v1079 = vadd.f32 %v964, %v1071
        %v1080 = vadd.f32 %v967, %v1071
        %v1081 = vadd.f32 %v972, %v1071
        %v1082 = vadd.f32 %v975, %v1071
        %v1083 = vadd.f32 %v980, %v1071
        %v1084 = vadd.f32 %v983, %v1071
        %v1085 = vadd.f32 %v988, %v1071
        %v1086 = vadd.f32 %v991, %v1071
        %v1087 = vadd.f32 %v996, %v1071
        %v1088 = vadd.f32 %v999, %v1071
        %v1089 = vadd.f32 %v1004, %v1071
        %v1090 = vadd.f32 %v1007, %v1071
        %v1091 = vadd.f32 %v1012, %v1071
        %v1092 = vadd.f32 %v1015, %v1071
        %v1093 = vadd.f32 %v1020, %v1071
        %v1094 = vadd.f32 %v1023, %v1071
        %v1095 = vadd.f32 %v1028, %v1071
        %v1096 = vadd.f32 %v1031, %v1071
        %v1097 = vadd.f32 %v1036, %v1071
        %v1098 = vadd.f32 %v1039, %v1071
        %v1099 = vadd.f32 %v1044, %v1071
        %v1100 = vadd.f32 %v1047, %v1071
        %v1101 = vadd.f32 %v1052, %v1071
        %v1102 = vadd.f32 %v1055, %v1071
        %v1103 = vadd.f32 %v1060, %v1071
        %v1104 = vadd.f32 %v1063, %v1071
        %v1105 = vmax.f32 %v1073, 0.0
        %v1106 = vmax.f32 %v1074, 0.0
        %v1107 = vmax.f32 %v1075, 0.0
        %v1108 = vmax.f32 %v1076, 0.0
        %v1109 = vmax.f32 %v1077, 0.0
        %v1110 = vmax.f32 %v1078, 0.0
        %v1111 = vmax.f32 %v1079, 0.0
        %v1112 = vmax.f32 %v1080, 0.0
        %v1113 = vmax.f32 %v1081, 0.0
        %v1114 = vmax.f32 %v1082, 0.0
        %v1115 = vmax.f32 %v1083, 0.0
        %v1116 = vmax.f32 %v1084, 0.0
        %v1117 = vmax.f32 %v1085, 0.0
        %v1118 = vmax.f32 %v1086, 0.0
        %v1119 = vmax.f32 %v1087, 0.0
        %v1120 = vmax.f32 %v1088, 0.0
        %v1121 = vmax.f32 %v1089, 0.0
        %v1122 = vmax.f32 %v1090, 0.0
        %v1123 = vmax.f32 %v1091, 0.0
        %v1124 = vmax.f32 %v1092, 0.0
        %v1125 = vmax.f32 %v1093, 0.0
        %v1126 = vmax.f32 %v1094, 0.0
        %v1127 = vmax.f32 %v1095, 0.0
        %v1128 = vmax.f32 %v1096, 0.0
        %v1129 = vmax.f32 %v1097, 0.0
        %v1130 = vmax.f32 %v1098, 0.0
        %v1131 = vmax.f32 %v1099, 0.0
        %v1132 = vmax.f32 %v1100, 0.0
        %v1133 = vmax.f32 %v1101, 0.0
        %v1134 = vmax.f32 %v1102, 0.0
        %v1135 = vmax.f32 %v1103, 0.0
        %v1136 = vmax.f32 %v1104, 0.0
        %v1137 = vpack.c.bf16 %v1106, %v1105
        %v1138 = vpack.c.bf16 %v1108, %v1107
        %v1139 = vpack.c.bf16 %v1110, %v1109
        %v1140 = vpack.c.bf16 %v1112, %v1111
        %v1141 = vpack.c.bf16 %v1114, %v1113
        %v1142 = vpack.c.bf16 %v1116, %v1115
        %v1143 = vpack.c.bf16 %v1118, %v1117
        %v1144 = vpack.c.bf16 %v1120, %v1119
        %v1145 = vpack.c.bf16 %v1122, %v1121
        %v1146 = vpack.c.bf16 %v1124, %v1123
        %v1147 = vpack.c.bf16 %v1126, %v1125
        %v1148 = vpack.c.bf16 %v1128, %v1127
        %v1149 = vpack.c.bf16 %v1130, %v1129
        %v1150 = vpack.c.bf16 %v1132, %v1131
        %v1151 = vpack.c.bf16 %v1134, %v1133
        %v1152 = vpack.c.bf16 %v1136, %v1135
        %v1153 = vld [vmem:[#allocation11] sm:$0xf]
        %v1154 = vld [vmem:[#allocation11 + $0x4] sm:$0xf]
        %v1155 = vld [vmem:[#allocation11 + $0x8] sm:$0xf]
        %v1156 = vld [vmem:[#allocation11 + $0xc] sm:$0xf]
        %v1157 = vld [vmem:[#allocation11 + $0x10] sm:$0xf]
        %v1158 = vld [vmem:[#allocation11 + $0x14] sm:$0xf]
        %v1159 = vld [vmem:[#allocation11 + $0x18] sm:$0xf]
        %v1160 = vld [vmem:[#allocation11 + $0x1c] sm:$0xf]
        %v1161 = vld [vmem:[#allocation11 + $0x20] sm:$0xf]
        %v1162 = vld [vmem:[#allocation11 + $0x24] sm:$0xf]
        %v1163 = vld [vmem:[#allocation11 + $0x28] sm:$0xf]
        %v1164 = vld [vmem:[#allocation11 + $0x2c] sm:$0xf]
        %v1165 = vld [vmem:[#allocation11 + $0x30] sm:$0xf]
        %v1166 = vld [vmem:[#allocation11 + $0x34] sm:$0xf]
        %v1167 = vld [vmem:[#allocation11 + $0x38] sm:$0xf]
        %v1168 = vld [vmem:[#allocation11 + $0x3c] sm:$0xf]
        %v1169 = vld [vmem:[%s6] sm:$0x1]
        %v1171 = vlaneseq
        %v1172 = vshrl.u32 %v1171, 7
        %v1173 = vsub.s32 0, %v1172
        %v1174 = vrot.slane %v1169, %v1173
        %v1192 = vunpack.c.l.b16 %v1153
        %v1193 = vunpack.c.l.b16 %v1154
        %v1194 = vunpack.c.l.b16 %v1155
        %v1195 = vunpack.c.l.b16 %v1156
        %v1196 = vunpack.c.l.b16 %v1157
        %v1197 = vunpack.c.l.b16 %v1158
        %v1198 = vunpack.c.l.b16 %v1159
        %v1199 = vunpack.c.l.b16 %v1160
        %v1200 = vunpack.c.l.b16 %v1161
        %v1201 = vunpack.c.l.b16 %v1162
        %v1202 = vunpack.c.l.b16 %v1163
        %v1203 = vunpack.c.l.b16 %v1164
        %v1204 = vunpack.c.l.b16 %v1165
        %v1205 = vunpack.c.l.b16 %v1166
        %v1206 = vunpack.c.l.b16 %v1167
        %v1207 = vunpack.c.l.b16 %v1168
        %v1208 = vpack.c.b16 %v1193, %v1192
        %v1209 = vpack.c.b16 %v1195, %v1194
        %v1210 = vpack.c.b16 %v1197, %v1196
        %v1211 = vpack.c.b16 %v1199, %v1198
        %v1212 = vpack.c.b16 %v1201, %v1200
        %v1213 = vpack.c.b16 %v1203, %v1202
        %v1214 = vpack.c.b16 %v1205, %v1204
        %v1215 = vpack.c.b16 %v1207, %v1206
        %1224 = vmatprep.subr.bf16.mxu0 0
        %1225 = vmatpush1.bf16.msra.mxu0 %v1208
        %1226 = vmatprep.subr.bf16.mxu0 0
        %1227 = vmatpush1.bf16.msra.mxu0 %v1209
        %1228 = vmatprep.subr.bf16.mxu0 0
        %1229 = vmatpush1.bf16.msra.mxu0 %v1210
        %1230 = vmatprep.subr.bf16.mxu0 0
        %1231 = vmatpush1.bf16.msra.mxu0 %v1211
        %1232 = vmatprep.subr.bf16.mxu0 0
        %1233 = vmatpush1.bf16.msra.mxu0 %v1212
        %1234 = vmatprep.subr.bf16.mxu0 0
        %1235 = vmatpush1.bf16.msra.mxu0 %v1213
        %1236 = vmatprep.subr.bf16.mxu0 0
        %1237 = vmatpush1.bf16.msra.mxu0 %v1214
        %1238 = vmatprep.subr.bf16.mxu0 0
        %1239 = vmatpush1.bf16.msra.mxu0 %v1215
        %1240 = vmatprep.subr.bf16.mxu0 0
        %1241 = vmatpush1.bf16.msra.mxu0 0
        %1242 = vmatprep.subr.bf16.mxu0 0
        %1243 = vmatpush1.bf16.msra.mxu0 0
        %1244 = vmatprep.subr.bf16.mxu0 0
        %1245 = vmatpush1.bf16.msra.mxu0 0
        %1246 = vmatprep.subr.bf16.mxu0 0
        %1247 = vmatpush1.bf16.msra.mxu0 0
        %1248 = vmatprep.subr.bf16.mxu0 0
        %1249 = vmatpush1.bf16.msra.mxu0 0
        %1250 = vmatprep.subr.bf16.mxu0 0
        %1251 = vmatpush1.bf16.msra.mxu0 0
        %1252 = vmatprep.subr.bf16.mxu0 0
        %1253 = vmatpush1.bf16.msra.mxu0 0
        %1254 = vmatprep.subr.bf16.mxu0 0
        %1255 = vmatpush1.bf16.msra.mxu0 0
        %1256 = vmatprep.mubr.bf16.mxu0 0
        %1257 = vmatmul.mubr.bf16.gmra.mrb[0].mxu0 %v1137
        %v1258 = vpop.f32.mrb[0].mxu0
        %v1259 = vadd.f32 %v1174, %v1258
        %v1260 = vpop.f32.mrb[0].mxu0
        %v1261 = vpop.f32.mrb[0].mxu0
        %v1262 = vadd.f32 %v1174, %v1261
        %v1263 = vpop.f32.mrb[0].mxu0
        %1264 = vmatprep.mubr.bf16.mxu0 0
        %1265 = vmatmul.mubr.bf16.gmra.mrb[0].mxu0 %v1138
        %v1266 = vpop.f32.mrb[0].mxu0
        %v1267 = vadd.f32 %v1174, %v1266
        %v1268 = vpop.f32.mrb[0].mxu0
        %v1269 = vpop.f32.mrb[0].mxu0
        %v1270 = vadd.f32 %v1174, %v1269
        %v1271 = vpop.f32.mrb[0].mxu0
        %1272 = vmatprep.mubr.bf16.mxu0 0
        %1273 = vmatmul.mubr.bf16.gmra.mrb[0].mxu0 %v1139
        %v1274 = vpop.f32.mrb[0].mxu0
        %v1275 = vadd.f32 %v1174, %v1274
        %v1276 = vpop.f32.mrb[0].mxu0
        %v1277 = vpop.f32.mrb[0].mxu0
        %v1278 = vadd.f32 %v1174, %v1277
        %v1279 = vpop.f32.mrb[0].mxu0
        %1280 = vmatprep.mubr.bf16.mxu0 0
        %1281 = vmatmul.mubr.bf16.gmra.mrb[0].mxu0 %v1140
        %v1282 = vpop.f32.mrb[0].mxu0
        %v1283 = vadd.f32 %v1174, %v1282
        %v1284 = vpop.f32.mrb[0].mxu0
        %v1285 = vpop.f32.mrb[0].mxu0
        %v1286 = vadd.f32 %v1174, %v1285
        %v1287 = vpop.f32.mrb[0].mxu0
        %1288 = vmatprep.mubr.bf16.mxu0 0
        %1289 = vmatmul.mubr.bf16.gmra.mrb[0].mxu0 %v1141
        %v1290 = vpop.f32.mrb[0].mxu0
        %v1291 = vadd.f32 %v1174, %v1290
        %v1292 = vpop.f32.mrb[0].mxu0
        %v1293 = vpop.f32.mrb[0].mxu0
        %v1294 = vadd.f32 %v1174, %v1293
        %v1295 = vpop.f32.mrb[0].mxu0
        %1296 = vmatprep.mubr.bf16.mxu0 0
        %1297 = vmatmul.mubr.bf16.gmra.mrb[0].mxu0 %v1142
        %v1298 = vpop.f32.mrb[0].mxu0
        %v1299 = vadd.f32 %v1174, %v1298
        %v1300 = vpop.f32.mrb[0].mxu0
        %v1301 = vpop.f32.mrb[0].mxu0
        %v1302 = vadd.f32 %v1174, %v1301
        %v1303 = vpop.f32.mrb[0].mxu0
        %1304 = vmatprep.mubr.bf16.mxu0 0
        %1305 = vmatmul.mubr.bf16.gmra.mrb[0].mxu0 %v1143
        %v1306 = vpop.f32.mrb[0].mxu0
        %v1307 = vadd.f32 %v1174, %v1306
        %v1308 = vpop.f32.mrb[0].mxu0
        %v1309 = vpop.f32.mrb[0].mxu0
        %v1310 = vadd.f32 %v1174, %v1309
        %v1311 = vpop.f32.mrb[0].mxu0
        %1312 = vmatprep.mubr.bf16.mxu0 0
        %1313 = vmatmul.mubr.bf16.gmra.mrb[0].mxu0 %v1144
        %v1314 = vpop.f32.mrb[0].mxu0
        %v1315 = vadd.f32 %v1174, %v1314
        %v1316 = vpop.f32.mrb[0].mxu0
        %v1317 = vpop.f32.mrb[0].mxu0
        %v1318 = vadd.f32 %v1174, %v1317
        %v1319 = vpop.f32.mrb[0].mxu0
        %1320 = vmatprep.mubr.bf16.mxu0 0
        %1321 = vmatmul.mubr.bf16.gmra.mrb[0].mxu0 %v1145
        %v1322 = vpop.f32.mrb[0].mxu0
        %v1323 = vadd.f32 %v1174, %v1322
        %v1324 = vpop.f32.mrb[0].mxu0
        %v1325 = vpop.f32.mrb[0].mxu0
        %v1326 = vadd.f32 %v1174, %v1325
        %v1327 = vpop.f32.mrb[0].mxu0
        %1328 = vmatprep.mubr.bf16.mxu0 0
        %1329 = vmatmul.mubr.bf16.gmra.mrb[0].mxu0 %v1146
        %v1330 = vpop.f32.mrb[0].mxu0
        %v1331 = vadd.f32 %v1174, %v1330
        %v1332 = vpop.f32.mrb[0].mxu0
        %v1333 = vpop.f32.mrb[0].mxu0
        %v1334 = vadd.f32 %v1174, %v1333
        %v1335 = vpop.f32.mrb[0].mxu0
        %1336 = vmatprep.mubr.bf16.mxu0 0
        %1337 = vmatmul.mubr.bf16.gmra.mrb[0].mxu0 %v1147
        %v1338 = vpop.f32.mrb[0].mxu0
        %v1339 = vadd.f32 %v1174, %v1338
        %v1340 = vpop.f32.mrb[0].mxu0
        %v1341 = vpop.f32.mrb[0].mxu0
        %v1342 = vadd.f32 %v1174, %v1341
        %v1343 = vpop.f32.mrb[0].mxu0
        %1344 = vmatprep.mubr.bf16.mxu0 0
        %1345 = vmatmul.mubr.bf16.gmra.mrb[0].mxu0 %v1148
        %v1346 = vpop.f32.mrb[0].mxu0
        %v1347 = vadd.f32 %v1174, %v1346
        %v1348 = vpop.f32.mrb[0].mxu0
        %v1349 = vpop.f32.mrb[0].mxu0
        %v1350 = vadd.f32 %v1174, %v1349
        %v1351 = vpop.f32.mrb[0].mxu0
        %1352 = vmatprep.mubr.bf16.mxu0 0
        %1353 = vmatmul.mubr.bf16.gmra.mrb[0].mxu0 %v1149
        %v1354 = vpop.f32.mrb[0].mxu0
        %v1355 = vadd.f32 %v1174, %v1354
        %v1356 = vpop.f32.mrb[0].mxu0
        %v1357 = vpop.f32.mrb[0].mxu0
        %v1358 = vadd.f32 %v1174, %v1357
        %v1359 = vpop.f32.mrb[0].mxu0
        %1360 = vmatprep.mubr.bf16.mxu0 0
        %1361 = vmatmul.mubr.bf16.gmra.mrb[0].mxu0 %v1150
        %v1362 = vpop.f32.mrb[0].mxu0
        %v1363 = vadd.f32 %v1174, %v1362
        %v1364 = vpop.f32.mrb[0].mxu0
        %v1365 = vpop.f32.mrb[0].mxu0
        %v1366 = vadd.f32 %v1174, %v1365
        %v1367 = vpop.f32.mrb[0].mxu0
        %1368 = vmatprep.mubr.bf16.mxu0 0
        %1369 = vmatmul.mubr.bf16.gmra.mrb[0].mxu0 %v1151
        %v1370 = vpop.f32.mrb[0].mxu0
        %v1371 = vadd.f32 %v1174, %v1370
        %v1372 = vpop.f32.mrb[0].mxu0
        %v1373 = vpop.f32.mrb[0].mxu0
        %v1374 = vadd.f32 %v1174, %v1373
        %v1375 = vpop.f32.mrb[0].mxu0
        %1376 = vmatprep.mubr.bf16.mxu0 0
        %1377 = vmatmul.mubr.bf16.gmra.mrb[0].mxu0 %v1152
        %v1378 = vpop.f32.mrb[0].mxu0
        %v1379 = vadd.f32 %v1174, %v1378
        %v1380 = vpop.f32.mrb[0].mxu0
        %v1381 = vpop.f32.mrb[0].mxu0
        %v1382 = vadd.f32 %v1174, %v1381
        %v1383 = vpop.f32.mrb[0].mxu0
        %1384 = vdwg.mxu0
        %v1385 = vmax.f32 %v1259, 0.0
        %v1386 = vmax.f32 %v1262, 0.0
        %v1387 = vmax.f32 %v1267, 0.0
        %v1388 = vmax.f32 %v1270, 0.0
        %v1389 = vmax.f32 %v1275, 0.0
        %v1390 = vmax.f32 %v1278, 0.0
        %v1391 = vmax.f32 %v1283, 0.0
        %v1392 = vmax.f32 %v1286, 0.0
        %v1393 = vmax.f32 %v1291, 0.0
        %v1394 = vmax.f32 %v1294, 0.0
        %v1395 = vmax.f32 %v1299, 0.0
        %v1396 = vmax.f32 %v1302, 0.0
        %v1397 = vmax.f32 %v1307, 0.0
        %v1398 = vmax.f32 %v1310, 0.0
        %v1399 = vmax.f32 %v1315, 0.0
        %v1400 = vmax.f32 %v1318, 0.0
        %v1401 = vmax.f32 %v1323, 0.0
        %v1402 = vmax.f32 %v1326, 0.0
        %v1403 = vmax.f32 %v1331, 0.0
        %v1404 = vmax.f32 %v1334, 0.0
        %v1405 = vmax.f32 %v1339, 0.0
        %v1406 = vmax.f32 %v1342, 0.0
        %v1407 = vmax.f32 %v1347, 0.0
        %v1408 = vmax.f32 %v1350, 0.0
        %v1409 = vmax.f32 %v1355, 0.0
        %v1410 = vmax.f32 %v1358, 0.0
        %v1411 = vmax.f32 %v1363, 0.0
        %v1412 = vmax.f32 %v1366, 0.0
        %v1413 = vmax.f32 %v1371, 0.0
        %v1414 = vmax.f32 %v1374, 0.0
        %v1415 = vmax.f32 %v1379, 0.0
        %v1416 = vmax.f32 %v1382, 0.0
        %v1417 = vld [vmem:[%s7] sm:$0x1]
        %v1419 = vlaneseq
        %v1420 = vshrl.u32 %v1419, 7
        %v1421 = vsub.s32 0, %v1420
        %v1422 = vrot.slane %v1417, %v1421
        %v1424 = vmul.f32 %v1385, %v1422
        %v1425 = vmul.f32 %v1386, %v1422
        %v1426 = vmul.f32 %v1387, %v1422
        %v1427 = vmul.f32 %v1388, %v1422
        %v1428 = vmul.f32 %v1389, %v1422
        %v1429 = vmul.f32 %v1390, %v1422
        %v1430 = vmul.f32 %v1391, %v1422
        %v1431 = vmul.f32 %v1392, %v1422
        %v1432 = vmul.f32 %v1393, %v1422
        %v1433 = vmul.f32 %v1394, %v1422
        %v1434 = vmul.f32 %v1395, %v1422
        %v1435 = vmul.f32 %v1396, %v1422
        %v1436 = vmul.f32 %v1397, %v1422
        %v1437 = vmul.f32 %v1398, %v1422
        %v1438 = vmul.f32 %v1399, %v1422
        %v1439 = vmul.f32 %v1400, %v1422
        %v1440 = vmul.f32 %v1401, %v1422
        %v1441 = vmul.f32 %v1402, %v1422
        %v1442 = vmul.f32 %v1403, %v1422
        %v1443 = vmul.f32 %v1404, %v1422
        %v1444 = vmul.f32 %v1405, %v1422
        %v1445 = vmul.f32 %v1406, %v1422
        %v1446 = vmul.f32 %v1407, %v1422
        %v1447 = vmul.f32 %v1408, %v1422
        %v1448 = vmul.f32 %v1409, %v1422
        %v1449 = vmul.f32 %v1410, %v1422
        %v1450 = vmul.f32 %v1411, %v1422
        %v1451 = vmul.f32 %v1412, %v1422
        %v1452 = vmul.f32 %v1413, %v1422
        %v1453 = vmul.f32 %v1414, %v1422
        %v1454 = vmul.f32 %v1415, %v1422
        %v1455 = vmul.f32 %v1416, %v1422
        %1456 = vadd.xlane.f32.xlu0 %v1424
        %v1457 = vpop.xlane.xlu0 %1456
        %1458 = vadd.xlane.f32.xlu0 %v1425
        %v1459 = vpop.xlane.xlu0 %1458
        %1460 = vadd.xlane.f32.xlu0 %v1426
        %v1461 = vpop.xlane.xlu0 %1460
        %1462 = vadd.xlane.f32.xlu0 %v1427
        %v1463 = vpop.xlane.xlu0 %1462
        %1464 = vadd.xlane.f32.xlu0 %v1428
        %v1465 = vpop.xlane.xlu0 %1464
        %1466 = vadd.xlane.f32.xlu0 %v1429
        %v1467 = vpop.xlane.xlu0 %1466
        %1468 = vadd.xlane.f32.xlu0 %v1430
        %v1469 = vpop.xlane.xlu0 %1468
        %1470 = vadd.xlane.f32.xlu0 %v1431
        %v1471 = vpop.xlane.xlu0 %1470
        %1472 = vadd.xlane.f32.xlu0 %v1432
        %v1473 = vpop.xlane.xlu0 %1472
        %1474 = vadd.xlane.f32.xlu0 %v1433
        %v1475 = vpop.xlane.xlu0 %1474
        %1476 = vadd.xlane.f32.xlu0 %v1434
        %v1477 = vpop.xlane.xlu0 %1476
        %1478 = vadd.xlane.f32.xlu0 %v1435
        %v1479 = vpop.xlane.xlu0 %1478
        %1480 = vadd.xlane.f32.xlu0 %v1436
        %v1481 = vpop.xlane.xlu0 %1480
        %1482 = vadd.xlane.f32.xlu0 %v1437
        %v1483 = vpop.xlane.xlu0 %1482
        %1484 = vadd.xlane.f32.xlu0 %v1438
        %v1485 = vpop.xlane.xlu0 %1484
        %1486 = vadd.xlane.f32.xlu0 %v1439
        %v1487 = vpop.xlane.xlu0 %1486
        %1488 = vadd.xlane.f32.xlu0 %v1440
        %v1489 = vpop.xlane.xlu0 %1488
        %1490 = vadd.xlane.f32.xlu0 %v1441
        %v1491 = vpop.xlane.xlu0 %1490
        %1492 = vadd.xlane.f32.xlu0 %v1442
        %v1493 = vpop.xlane.xlu0 %1492
        %1494 = vadd.xlane.f32.xlu0 %v1443
        %v1495 = vpop.xlane.xlu0 %1494
        %1496 = vadd.xlane.f32.xlu0 %v1444
        %v1497 = vpop.xlane.xlu0 %1496
        %1498 = vadd.xlane.f32.xlu0 %v1445
        %v1499 = vpop.xlane.xlu0 %1498
        %1500 = vadd.xlane.f32.xlu0 %v1446
        %v1501 = vpop.xlane.xlu0 %1500
        %1502 = vadd.xlane.f32.xlu0 %v1447
        %v1503 = vpop.xlane.xlu0 %1502
        %1504 = vadd.xlane.f32.xlu0 %v1448
        %v1505 = vpop.xlane.xlu0 %1504
        %1506 = vadd.xlane.f32.xlu0 %v1449
        %v1507 = vpop.xlane.xlu0 %1506
        %1508 = vadd.xlane.f32.xlu0 %v1450
        %v1509 = vpop.xlane.xlu0 %1508
        %1510 = vadd.xlane.f32.xlu0 %v1451
        %v1511 = vpop.xlane.xlu0 %1510
        %1512 = vadd.xlane.f32.xlu0 %v1452
        %v1513 = vpop.xlane.xlu0 %1512
        %1514 = vadd.xlane.f32.xlu0 %v1453
        %v1515 = vpop.xlane.xlu0 %1514
        %1516 = vadd.xlane.f32.xlu0 %v1454
        %v1517 = vpop.xlane.xlu0 %1516
        %1518 = vadd.xlane.f32.xlu0 %v1455
        %v1519 = vpop.xlane.xlu0 %1518
        %v1520 = vld [vmem:[%s8] sm:$0x1]
        %v1522 = vlaneseq
        %v1523 = vshrl.u32 %v1522, 7
        %v1524 = vsub.s32 0, %v1523
        %v1525 = vrot.slane %v1520, %v1524
        %v1527 = vmul.f32 %v520, %v1525
        %v1528 = vmul.f32 %v521, %v1525
        %v1529 = vmul.f32 %v522, %v1525
        %v1530 = vmul.f32 %v523, %v1525
        %v1531 = vmul.f32 %v524, %v1525
        %v1532 = vmul.f32 %v525, %v1525
        %v1533 = vmul.f32 %v526, %v1525
        %v1534 = vmul.f32 %v527, %v1525
        %v1535 = vmul.f32 %v528, %v1525
        %v1536 = vmul.f32 %v529, %v1525
        %v1537 = vmul.f32 %v530, %v1525
        %v1538 = vmul.f32 %v531, %v1525
        %v1539 = vmul.f32 %v532, %v1525
        %v1540 = vmul.f32 %v533, %v1525
        %v1541 = vmul.f32 %v534, %v1525
        %v1542 = vmul.f32 %v535, %v1525
        %v1543 = vmul.f32 %v536, %v1525
        %v1544 = vmul.f32 %v537, %v1525
        %v1545 = vmul.f32 %v538, %v1525
        %v1546 = vmul.f32 %v539, %v1525
        %v1547 = vmul.f32 %v540, %v1525
        %v1548 = vmul.f32 %v541, %v1525
        %v1549 = vmul.f32 %v542, %v1525
        %v1550 = vmul.f32 %v543, %v1525
        %v1551 = vmul.f32 %v544, %v1525
        %v1552 = vmul.f32 %v545, %v1525
        %v1553 = vmul.f32 %v546, %v1525
        %v1554 = vmul.f32 %v547, %v1525
        %v1555 = vmul.f32 %v548, %v1525
        %v1556 = vmul.f32 %v549, %v1525
        %v1557 = vmul.f32 %v550, %v1525
        %v1558 = vmul.f32 %v551, %v1525
        %1559 = vadd.xlane.f32.xlu0 %v1527
        %v1560 = vpop.xlane.xlu0 %1559
        %1561 = vadd.xlane.f32.xlu0 %v1528
        %v1562 = vpop.xlane.xlu0 %1561
        %1563 = vadd.xlane.f32.xlu0 %v1529
        %v1564 = vpop.xlane.xlu0 %1563
        %1565 = vadd.xlane.f32.xlu0 %v1530
        %v1566 = vpop.xlane.xlu0 %1565
        %1567 = vadd.xlane.f32.xlu0 %v1531
        %v1568 = vpop.xlane.xlu0 %1567
        %1569 = vadd.xlane.f32.xlu0 %v1532
        %v1570 = vpop.xlane.xlu0 %1569
        %1571 = vadd.xlane.f32.xlu0 %v1533
        %v1572 = vpop.xlane.xlu0 %1571
        %1573 = vadd.xlane.f32.xlu0 %v1534
        %v1574 = vpop.xlane.xlu0 %1573
        %1575 = vadd.xlane.f32.xlu0 %v1535
        %v1576 = vpop.xlane.xlu0 %1575
        %1577 = vadd.xlane.f32.xlu0 %v1536
        %v1578 = vpop.xlane.xlu0 %1577
        %1579 = vadd.xlane.f32.xlu0 %v1537
        %v1580 = vpop.xlane.xlu0 %1579
        %1581 = vadd.xlane.f32.xlu0 %v1538
        %v1582 = vpop.xlane.xlu0 %1581
        %1583 = vadd.xlane.f32.xlu0 %v1539
        %v1584 = vpop.xlane.xlu0 %1583
        %1585 = vadd.xlane.f32.xlu0 %v1540
        %v1586 = vpop.xlane.xlu0 %1585
        %1587 = vadd.xlane.f32.xlu0 %v1541
        %v1588 = vpop.xlane.xlu0 %1587
        %1589 = vadd.xlane.f32.xlu0 %v1542
        %v1590 = vpop.xlane.xlu0 %1589
        %1591 = vadd.xlane.f32.xlu0 %v1543
        %v1592 = vpop.xlane.xlu0 %1591
        %1593 = vadd.xlane.f32.xlu0 %v1544
        %v1594 = vpop.xlane.xlu0 %1593
        %1595 = vadd.xlane.f32.xlu0 %v1545
        %v1596 = vpop.xlane.xlu0 %1595
        %1597 = vadd.xlane.f32.xlu0 %v1546
        %v1598 = vpop.xlane.xlu0 %1597
        %1599 = vadd.xlane.f32.xlu0 %v1547
        %v1600 = vpop.xlane.xlu0 %1599
        %1601 = vadd.xlane.f32.xlu0 %v1548
        %v1602 = vpop.xlane.xlu0 %1601
        %1603 = vadd.xlane.f32.xlu0 %v1549
        %v1604 = vpop.xlane.xlu0 %1603
        %1605 = vadd.xlane.f32.xlu0 %v1550
        %v1606 = vpop.xlane.xlu0 %1605
        %1607 = vadd.xlane.f32.xlu0 %v1551
        %v1608 = vpop.xlane.xlu0 %1607
        %1609 = vadd.xlane.f32.xlu0 %v1552
        %v1610 = vpop.xlane.xlu0 %1609
        %1611 = vadd.xlane.f32.xlu0 %v1553
        %v1612 = vpop.xlane.xlu0 %1611
        %1613 = vadd.xlane.f32.xlu0 %v1554
        %v1614 = vpop.xlane.xlu0 %1613
        %1615 = vadd.xlane.f32.xlu0 %v1555
        %v1616 = vpop.xlane.xlu0 %1615
        %1617 = vadd.xlane.f32.xlu0 %v1556
        %v1618 = vpop.xlane.xlu0 %1617
        %1619 = vadd.xlane.f32.xlu0 %v1557
        %v1620 = vpop.xlane.xlu0 %1619
        %1621 = vadd.xlane.f32.xlu0 %v1558
        %v1622 = vpop.xlane.xlu0 %1621
        %v1623 = vmul.f32 %v552, %v1525
        %v1624 = vmul.f32 %v553, %v1525
        %v1625 = vmul.f32 %v554, %v1525
        %v1626 = vmul.f32 %v555, %v1525
        %v1627 = vmul.f32 %v556, %v1525
        %v1628 = vmul.f32 %v557, %v1525
        %v1629 = vmul.f32 %v558, %v1525
        %v1630 = vmul.f32 %v559, %v1525
        %v1631 = vmul.f32 %v560, %v1525
        %v1632 = vmul.f32 %v561, %v1525
        %v1633 = vmul.f32 %v562, %v1525
        %v1634 = vmul.f32 %v563, %v1525
        %v1635 = vmul.f32 %v564, %v1525
        %v1636 = vmul.f32 %v565, %v1525
        %v1637 = vmul.f32 %v566, %v1525
        %v1638 = vmul.f32 %v567, %v1525
        %v1639 = vmul.f32 %v568, %v1525
        %v1640 = vmul.f32 %v569, %v1525
        %v1641 = vmul.f32 %v570, %v1525
        %v1642 = vmul.f32 %v571, %v1525
        %v1643 = vmul.f32 %v572, %v1525
        %v1644 = vmul.f32 %v573, %v1525
        %v1645 = vmul.f32 %v574, %v1525
        %v1646 = vmul.f32 %v575, %v1525
        %v1647 = vmul.f32 %v576, %v1525
        %v1648 = vmul.f32 %v577, %v1525
        %v1649 = vmul.f32 %v578, %v1525
        %v1650 = vmul.f32 %v579, %v1525
        %v1651 = vmul.f32 %v580, %v1525
        %v1652 = vmul.f32 %v581, %v1525
        %v1653 = vmul.f32 %v582, %v1525
        %v1654 = vmul.f32 %v583, %v1525
        %1655 = vadd.xlane.f32.xlu0 %v1623
        %v1656 = vpop.xlane.xlu0 %1655
        %1657 = vadd.xlane.f32.xlu0 %v1624
        %v1658 = vpop.xlane.xlu0 %1657
        %1659 = vadd.xlane.f32.xlu0 %v1625
        %v1660 = vpop.xlane.xlu0 %1659
        %1661 = vadd.xlane.f32.xlu0 %v1626
        %v1662 = vpop.xlane.xlu0 %1661
        %1663 = vadd.xlane.f32.xlu0 %v1627
        %v1664 = vpop.xlane.xlu0 %1663
        %1665 = vadd.xlane.f32.xlu0 %v1628
        %v1666 = vpop.xlane.xlu0 %1665
        %1667 = vadd.xlane.f32.xlu0 %v1629
        %v1668 = vpop.xlane.xlu0 %1667
        %1669 = vadd.xlane.f32.xlu0 %v1630
        %v1670 = vpop.xlane.xlu0 %1669
        %1671 = vadd.xlane.f32.xlu0 %v1631
        %v1672 = vpop.xlane.xlu0 %1671
        %1673 = vadd.xlane.f32.xlu0 %v1632
        %v1674 = vpop.xlane.xlu0 %1673
        %1675 = vadd.xlane.f32.xlu0 %v1633
        %v1676 = vpop.xlane.xlu0 %1675
        %1677 = vadd.xlane.f32.xlu0 %v1634
        %v1678 = vpop.xlane.xlu0 %1677
        %1679 = vadd.xlane.f32.xlu0 %v1635
        %v1680 = vpop.xlane.xlu0 %1679
        %1681 = vadd.xlane.f32.xlu0 %v1636
        %v1682 = vpop.xlane.xlu0 %1681
        %1683 = vadd.xlane.f32.xlu0 %v1637
        %v1684 = vpop.xlane.xlu0 %1683
        %1685 = vadd.xlane.f32.xlu0 %v1638
        %v1686 = vpop.xlane.xlu0 %1685
        %1687 = vadd.xlane.f32.xlu0 %v1639
        %v1688 = vpop.xlane.xlu0 %1687
        %1689 = vadd.xlane.f32.xlu0 %v1640
        %v1690 = vpop.xlane.xlu0 %1689
        %1691 = vadd.xlane.f32.xlu0 %v1641
        %v1692 = vpop.xlane.xlu0 %1691
        %1693 = vadd.xlane.f32.xlu0 %v1642
        %v1694 = vpop.xlane.xlu0 %1693
        %1695 = vadd.xlane.f32.xlu0 %v1643
        %v1696 = vpop.xlane.xlu0 %1695
        %1697 = vadd.xlane.f32.xlu0 %v1644
        %v1698 = vpop.xlane.xlu0 %1697
        %1699 = vadd.xlane.f32.xlu0 %v1645
        %v1700 = vpop.xlane.xlu0 %1699
        %1701 = vadd.xlane.f32.xlu0 %v1646
        %v1702 = vpop.xlane.xlu0 %1701
        %1703 = vadd.xlane.f32.xlu0 %v1647
        %v1704 = vpop.xlane.xlu0 %1703
        %1705 = vadd.xlane.f32.xlu0 %v1648
        %v1706 = vpop.xlane.xlu0 %1705
        %1707 = vadd.xlane.f32.xlu0 %v1649
        %v1708 = vpop.xlane.xlu0 %1707
        %1709 = vadd.xlane.f32.xlu0 %v1650
        %v1710 = vpop.xlane.xlu0 %1709
        %1711 = vadd.xlane.f32.xlu0 %v1651
        %v1712 = vpop.xlane.xlu0 %1711
        %1713 = vadd.xlane.f32.xlu0 %v1652
        %v1714 = vpop.xlane.xlu0 %1713
        %1715 = vadd.xlane.f32.xlu0 %v1653
        %v1716 = vpop.xlane.xlu0 %1715
        %1717 = vadd.xlane.f32.xlu0 %v1654
        %v1718 = vpop.xlane.xlu0 %1717
        %s1719 = sld [smem:[#allocation2]]
        %v1720 = vadd.f32 %v1457, %v1560
        %v1721 = vadd.f32 %v1459, %v1562
        %v1722 = vadd.f32 %v1461, %v1564
        %v1723 = vadd.f32 %v1463, %v1566
        %v1724 = vadd.f32 %v1465, %v1568
        %v1725 = vadd.f32 %v1467, %v1570
        %v1726 = vadd.f32 %v1469, %v1572
        %v1727 = vadd.f32 %v1471, %v1574
        %v1728 = vadd.f32 %v1473, %v1576
        %v1729 = vadd.f32 %v1475, %v1578
        %v1730 = vadd.f32 %v1477, %v1580
        %v1731 = vadd.f32 %v1479, %v1582
        %v1732 = vadd.f32 %v1481, %v1584
        %v1733 = vadd.f32 %v1483, %v1586
        %v1734 = vadd.f32 %v1485, %v1588
        %v1735 = vadd.f32 %v1487, %v1590
        %v1736 = vadd.f32 %v1489, %v1592
        %v1737 = vadd.f32 %v1491, %v1594
        %v1738 = vadd.f32 %v1493, %v1596
        %v1739 = vadd.f32 %v1495, %v1598
        %v1740 = vadd.f32 %v1497, %v1600
        %v1741 = vadd.f32 %v1499, %v1602
        %v1742 = vadd.f32 %v1501, %v1604
        %v1743 = vadd.f32 %v1503, %v1606
        %v1744 = vadd.f32 %v1505, %v1608
        %v1745 = vadd.f32 %v1507, %v1610
        %v1746 = vadd.f32 %v1509, %v1612
        %v1747 = vadd.f32 %v1511, %v1614
        %v1748 = vadd.f32 %v1513, %v1616
        %v1749 = vadd.f32 %v1515, %v1618
        %v1750 = vadd.f32 %v1517, %v1620
        %v1751 = vadd.f32 %v1519, %v1622
        %v1752 = vstv %s1719
        %v1753 = vadd.f32 %v1720, %v1752
        %v1754 = vadd.f32 %v1721, %v1752
        %v1755 = vadd.f32 %v1722, %v1752
        %v1756 = vadd.f32 %v1723, %v1752
        %v1757 = vadd.f32 %v1724, %v1752
        %v1758 = vadd.f32 %v1725, %v1752
        %v1759 = vadd.f32 %v1726, %v1752
        %v1760 = vadd.f32 %v1727, %v1752
        %v1761 = vadd.f32 %v1728, %v1752
        %v1762 = vadd.f32 %v1729, %v1752
        %v1763 = vadd.f32 %v1730, %v1752
        %v1764 = vadd.f32 %v1731, %v1752
        %v1765 = vadd.f32 %v1732, %v1752
        %v1766 = vadd.f32 %v1733, %v1752
        %v1767 = vadd.f32 %v1734, %v1752
        %v1768 = vadd.f32 %v1735, %v1752
        %v1769 = vadd.f32 %v1736, %v1752
        %v1770 = vadd.f32 %v1737, %v1752
        %v1771 = vadd.f32 %v1738, %v1752
        %v1772 = vadd.f32 %v1739, %v1752
        %v1773 = vadd.f32 %v1740, %v1752
        %v1774 = vadd.f32 %v1741, %v1752
        %v1775 = vadd.f32 %v1742, %v1752
        %v1776 = vadd.f32 %v1743, %v1752
        %v1777 = vadd.f32 %v1744, %v1752
        %v1778 = vadd.f32 %v1745, %v1752
        %v1779 = vadd.f32 %v1746, %v1752
        %v1780 = vadd.f32 %v1747, %v1752
        %v1781 = vadd.f32 %v1748, %v1752
        %v1782 = vadd.f32 %v1749, %v1752
        %v1783 = vadd.f32 %v1750, %v1752
        %v1784 = vadd.f32 %v1751, %v1752
        %v1785 = vmul.f32 %v1753, 0.44444445
        %v1786 = vmul.f32 %v1754, 0.44444445
        %v1787 = vmul.f32 %v1755, 0.44444445
        %v1788 = vmul.f32 %v1756, 0.44444445
        %v1789 = vmul.f32 %v1757, 0.44444445
        %v1790 = vmul.f32 %v1758, 0.44444445
        %v1791 = vmul.f32 %v1759, 0.44444445
        %v1792 = vmul.f32 %v1760, 0.44444445
        %v1793 = vmul.f32 %v1761, 0.44444445
        %v1794 = vmul.f32 %v1762, 0.44444445
        %v1795 = vmul.f32 %v1763, 0.44444445
        %v1796 = vmul.f32 %v1764, 0.44444445
        %v1797 = vmul.f32 %v1765, 0.44444445
        %v1798 = vmul.f32 %v1766, 0.44444445
        %v1799 = vmul.f32 %v1767, 0.44444445
        %v1800 = vmul.f32 %v1768, 0.44444445
        %v1801 = vmul.f32 %v1769, 0.44444445
        %v1802 = vmul.f32 %v1770, 0.44444445
        %v1803 = vmul.f32 %v1771, 0.44444445
        %v1804 = vmul.f32 %v1772, 0.44444445
        %v1805 = vmul.f32 %v1773, 0.44444445
        %v1806 = vmul.f32 %v1774, 0.44444445
        %v1807 = vmul.f32 %v1775, 0.44444445
        %v1808 = vmul.f32 %v1776, 0.44444445
        %v1809 = vmul.f32 %v1777, 0.44444445
        %v1810 = vmul.f32 %v1778, 0.44444445
        %v1811 = vmul.f32 %v1779, 0.44444445
        %v1812 = vmul.f32 %v1780, 0.44444445
        %v1813 = vmul.f32 %v1781, 0.44444445
        %v1814 = vmul.f32 %v1782, 0.44444445
        %v1815 = vmul.f32 %v1783, 0.44444445
        %v1816 = vmul.f32 %v1784, 0.44444445
        %v1817 = vadd.f32 %v1785, 1e-08
        %v1818 = vadd.f32 %v1786, 1e-08
        %v1819 = vadd.f32 %v1787, 1e-08
        %v1820 = vadd.f32 %v1788, 1e-08
        %v1821 = vadd.f32 %v1789, 1e-08
        %v1822 = vadd.f32 %v1790, 1e-08
        %v1823 = vadd.f32 %v1791, 1e-08
        %v1824 = vadd.f32 %v1792, 1e-08
        %v1825 = vadd.f32 %v1793, 1e-08
        %v1826 = vadd.f32 %v1794, 1e-08
        %v1827 = vadd.f32 %v1795, 1e-08
        %v1828 = vadd.f32 %v1796, 1e-08
        %v1829 = vadd.f32 %v1797, 1e-08
        %v1830 = vadd.f32 %v1798, 1e-08
        %v1831 = vadd.f32 %v1799, 1e-08
        %v1832 = vadd.f32 %v1800, 1e-08
        %v1833 = vadd.f32 %v1801, 1e-08
        %v1834 = vadd.f32 %v1802, 1e-08
        %v1835 = vadd.f32 %v1803, 1e-08
        %v1836 = vadd.f32 %v1804, 1e-08
        %v1837 = vadd.f32 %v1805, 1e-08
        %v1838 = vadd.f32 %v1806, 1e-08
        %v1839 = vadd.f32 %v1807, 1e-08
        %v1840 = vadd.f32 %v1808, 1e-08
        %v1841 = vadd.f32 %v1809, 1e-08
        %v1842 = vadd.f32 %v1810, 1e-08
        %v1843 = vadd.f32 %v1811, 1e-08
        %v1844 = vadd.f32 %v1812, 1e-08
        %v1845 = vadd.f32 %v1813, 1e-08
        %v1846 = vadd.f32 %v1814, 1e-08
        %v1847 = vadd.f32 %v1815, 1e-08
        %v1848 = vadd.f32 %v1816, 1e-08
        %v1849 = vadd.f32 %v1457, %v1656
        %v1850 = vadd.f32 %v1459, %v1658
        %v1851 = vadd.f32 %v1461, %v1660
        %v1852 = vadd.f32 %v1463, %v1662
        %v1853 = vadd.f32 %v1465, %v1664
        %v1854 = vadd.f32 %v1467, %v1666
        %v1855 = vadd.f32 %v1469, %v1668
        %v1856 = vadd.f32 %v1471, %v1670
        %v1857 = vadd.f32 %v1473, %v1672
        %v1858 = vadd.f32 %v1475, %v1674
        %v1859 = vadd.f32 %v1477, %v1676
        %v1860 = vadd.f32 %v1479, %v1678
        %v1861 = vadd.f32 %v1481, %v1680
        %v1862 = vadd.f32 %v1483, %v1682
        %v1863 = vadd.f32 %v1485, %v1684
        %v1864 = vadd.f32 %v1487, %v1686
        %v1865 = vadd.f32 %v1489, %v1688
        %v1866 = vadd.f32 %v1491, %v1690
        %v1867 = vadd.f32 %v1493, %v1692
        %v1868 = vadd.f32 %v1495, %v1694
        %v1869 = vadd.f32 %v1497, %v1696
        %v1870 = vadd.f32 %v1499, %v1698
        %v1871 = vadd.f32 %v1501, %v1700
        %v1872 = vadd.f32 %v1503, %v1702
        %v1873 = vadd.f32 %v1505, %v1704
        %v1874 = vadd.f32 %v1507, %v1706
        %v1875 = vadd.f32 %v1509, %v1708
        %v1876 = vadd.f32 %v1511, %v1710
        %v1877 = vadd.f32 %v1513, %v1712
        %v1878 = vadd.f32 %v1515, %v1714
        %v1879 = vadd.f32 %v1517, %v1716
        %v1880 = vadd.f32 %v1519, %v1718
        %v1881 = vadd.f32 %v1849, %v1752
        %v1882 = vadd.f32 %v1850, %v1752
        %v1883 = vadd.f32 %v1851, %v1752
        %v1884 = vadd.f32 %v1852, %v1752
        %v1885 = vadd.f32 %v1853, %v1752
        %v1886 = vadd.f32 %v1854, %v1752
        %v1887 = vadd.f32 %v1855, %v1752
        %v1888 = vadd.f32 %v1856, %v1752
        %v1889 = vadd.f32 %v1857, %v1752
        %v1890 = vadd.f32 %v1858, %v1752
        %v1891 = vadd.f32 %v1859, %v1752
        %v1892 = vadd.f32 %v1860, %v1752
        %v1893 = vadd.f32 %v1861, %v1752
        %v1894 = vadd.f32 %v1862, %v1752
        %v1895 = vadd.f32 %v1863, %v1752
        %v1896 = vadd.f32 %v1864, %v1752
        %v1897 = vadd.f32 %v1865, %v1752
        %v1898 = vadd.f32 %v1866, %v1752
        %v1899 = vadd.f32 %v1867, %v1752
        %v1900 = vadd.f32 %v1868, %v1752
        %v1901 = vadd.f32 %v1869, %v1752
        %v1902 = vadd.f32 %v1870, %v1752
        %v1903 = vadd.f32 %v1871, %v1752
        %v1904 = vadd.f32 %v1872, %v1752
        %v1905 = vadd.f32 %v1873, %v1752
        %v1906 = vadd.f32 %v1874, %v1752
        %v1907 = vadd.f32 %v1875, %v1752
        %v1908 = vadd.f32 %v1876, %v1752
        %v1909 = vadd.f32 %v1877, %v1752
        %v1910 = vadd.f32 %v1878, %v1752
        %v1911 = vadd.f32 %v1879, %v1752
        %v1912 = vadd.f32 %v1880, %v1752
        %v1913 = vmul.f32 %v1881, 0.44444445
        %v1914 = vmul.f32 %v1882, 0.44444445
        %v1915 = vmul.f32 %v1883, 0.44444445
        %v1916 = vmul.f32 %v1884, 0.44444445
        %v1917 = vmul.f32 %v1885, 0.44444445
        %v1918 = vmul.f32 %v1886, 0.44444445
        %v1919 = vmul.f32 %v1887, 0.44444445
        %v1920 = vmul.f32 %v1888, 0.44444445
        %v1921 = vmul.f32 %v1889, 0.44444445
        %v1922 = vmul.f32 %v1890, 0.44444445
        %v1923 = vmul.f32 %v1891, 0.44444445
        %v1924 = vmul.f32 %v1892, 0.44444445
        %v1925 = vmul.f32 %v1893, 0.44444445
        %v1926 = vmul.f32 %v1894, 0.44444445
        %v1927 = vmul.f32 %v1895, 0.44444445
        %v1928 = vmul.f32 %v1896, 0.44444445
        %v1929 = vmul.f32 %v1897, 0.44444445
        %v1930 = vmul.f32 %v1898, 0.44444445
        %v1931 = vmul.f32 %v1899, 0.44444445
        %v1932 = vmul.f32 %v1900, 0.44444445
        %v1933 = vmul.f32 %v1901, 0.44444445
        %v1934 = vmul.f32 %v1902, 0.44444445
        %v1935 = vmul.f32 %v1903, 0.44444445
        %v1936 = vmul.f32 %v1904, 0.44444445
        %v1937 = vmul.f32 %v1905, 0.44444445
        %v1938 = vmul.f32 %v1906, 0.44444445
        %v1939 = vmul.f32 %v1907, 0.44444445
        %v1940 = vmul.f32 %v1908, 0.44444445
        %v1941 = vmul.f32 %v1909, 0.44444445
        %v1942 = vmul.f32 %v1910, 0.44444445
        %v1943 = vmul.f32 %v1911, 0.44444445
        %v1944 = vmul.f32 %v1912, 0.44444445
        %v1945 = vadd.f32 %v1913, 1e-08
        %v1946 = vadd.f32 %v1914, 1e-08
        %v1947 = vadd.f32 %v1915, 1e-08
        %v1948 = vadd.f32 %v1916, 1e-08
        %v1949 = vadd.f32 %v1917, 1e-08
        %v1950 = vadd.f32 %v1918, 1e-08
        %v1951 = vadd.f32 %v1919, 1e-08
        %v1952 = vadd.f32 %v1920, 1e-08
        %v1953 = vadd.f32 %v1921, 1e-08
        %v1954 = vadd.f32 %v1922, 1e-08
        %v1955 = vadd.f32 %v1923, 1e-08
        %v1956 = vadd.f32 %v1924, 1e-08
        %v1957 = vadd.f32 %v1925, 1e-08
        %v1958 = vadd.f32 %v1926, 1e-08
        %v1959 = vadd.f32 %v1927, 1e-08
        %v1960 = vadd.f32 %v1928, 1e-08
        %v1961 = vadd.f32 %v1929, 1e-08
        %v1962 = vadd.f32 %v1930, 1e-08
        %v1963 = vadd.f32 %v1931, 1e-08
        %v1964 = vadd.f32 %v1932, 1e-08
        %v1965 = vadd.f32 %v1933, 1e-08
        %v1966 = vadd.f32 %v1934, 1e-08
        %v1967 = vadd.f32 %v1935, 1e-08
        %v1968 = vadd.f32 %v1936, 1e-08
        %v1969 = vadd.f32 %v1937, 1e-08
        %v1970 = vadd.f32 %v1938, 1e-08
        %v1971 = vadd.f32 %v1939, 1e-08
        %v1972 = vadd.f32 %v1940, 1e-08
        %v1973 = vadd.f32 %v1941, 1e-08
        %v1974 = vadd.f32 %v1942, 1e-08
        %v1975 = vadd.f32 %v1943, 1e-08
        %v1976 = vadd.f32 %v1944, 1e-08
        %v1977 = vmax.f32 %v1817, %v1945
        %v1978 = vmax.f32 %v1818, %v1946
        %v1979 = vmax.f32 %v1819, %v1947
        %v1980 = vmax.f32 %v1820, %v1948
        %v1981 = vmax.f32 %v1821, %v1949
        %v1982 = vmax.f32 %v1822, %v1950
        %v1983 = vmax.f32 %v1823, %v1951
        %v1984 = vmax.f32 %v1824, %v1952
        %v1985 = vmax.f32 %v1825, %v1953
        %v1986 = vmax.f32 %v1826, %v1954
        %v1987 = vmax.f32 %v1827, %v1955
        %v1988 = vmax.f32 %v1828, %v1956
        %v1989 = vmax.f32 %v1829, %v1957
        %v1990 = vmax.f32 %v1830, %v1958
        %v1991 = vmax.f32 %v1831, %v1959
        %v1992 = vmax.f32 %v1832, %v1960
        %v1993 = vmax.f32 %v1833, %v1961
        %v1994 = vmax.f32 %v1834, %v1962
        %v1995 = vmax.f32 %v1835, %v1963
        %v1996 = vmax.f32 %v1836, %v1964
        %v1997 = vmax.f32 %v1837, %v1965
        %v1998 = vmax.f32 %v1838, %v1966
        %v1999 = vmax.f32 %v1839, %v1967
        %v2000 = vmax.f32 %v1840, %v1968
        %v2001 = vmax.f32 %v1841, %v1969
        %v2002 = vmax.f32 %v1842, %v1970
        %v2003 = vmax.f32 %v1843, %v1971
        %v2004 = vmax.f32 %v1844, %v1972
        %v2005 = vmax.f32 %v1845, %v1973
        %v2006 = vmax.f32 %v1846, %v1974
        %v2007 = vmax.f32 %v1847, %v1975
        %v2008 = vmax.f32 %v1848, %v1976
        %v2009 = vsub.f32 %v1817, %v1977
        %v2010 = vsub.f32 %v1818, %v1978
        %v2011 = vsub.f32 %v1819, %v1979
        %v2012 = vsub.f32 %v1820, %v1980
        %v2013 = vsub.f32 %v1821, %v1981
        %v2014 = vsub.f32 %v1822, %v1982
        %v2015 = vsub.f32 %v1823, %v1983
        %v2016 = vsub.f32 %v1824, %v1984
        %v2017 = vsub.f32 %v1825, %v1985
        %v2018 = vsub.f32 %v1826, %v1986
        %v2019 = vsub.f32 %v1827, %v1987
        %v2020 = vsub.f32 %v1828, %v1988
        %v2021 = vsub.f32 %v1829, %v1989
        %v2022 = vsub.f32 %v1830, %v1990
        %v2023 = vsub.f32 %v1831, %v1991
        %v2024 = vsub.f32 %v1832, %v1992
        %v2025 = vsub.f32 %v1833, %v1993
        %v2026 = vsub.f32 %v1834, %v1994
        %v2027 = vsub.f32 %v1835, %v1995
        %v2028 = vsub.f32 %v1836, %v1996
        %v2029 = vsub.f32 %v1837, %v1997
        %v2030 = vsub.f32 %v1838, %v1998
        %v2031 = vsub.f32 %v1839, %v1999
        %v2032 = vsub.f32 %v1840, %v2000
        %v2033 = vsub.f32 %v1841, %v2001
        %v2034 = vsub.f32 %v1842, %v2002
        %v2035 = vsub.f32 %v1843, %v2003
        %v2036 = vsub.f32 %v1844, %v2004
        %v2037 = vsub.f32 %v1845, %v2005
        %v2038 = vsub.f32 %v1846, %v2006
        %v2039 = vsub.f32 %v1847, %v2007
        %v2040 = vsub.f32 %v1848, %v2008
        %v2041 = vmul.f32 %v2009, 1.442695
        %v2042 = vpow.pop %v2041
        %v2043 = vmul.f32 %v2010, 1.442695
        %v2044 = vpow.pop %v2043
        %v2045 = vmul.f32 %v2011, 1.442695
        %v2046 = vpow.pop %v2045
        %v2047 = vmul.f32 %v2012, 1.442695
        %v2048 = vpow.pop %v2047
        %v2049 = vmul.f32 %v2013, 1.442695
        %v2050 = vpow.pop %v2049
        %v2051 = vmul.f32 %v2014, 1.442695
        %v2052 = vpow.pop %v2051
        %v2053 = vmul.f32 %v2015, 1.442695
        %v2054 = vpow.pop %v2053
        %v2055 = vmul.f32 %v2016, 1.442695
        %v2056 = vpow.pop %v2055
        %v2057 = vmul.f32 %v2017, 1.442695
        %v2058 = vpow.pop %v2057
        %v2059 = vmul.f32 %v2018, 1.442695
        %v2060 = vpow.pop %v2059
        %v2061 = vmul.f32 %v2019, 1.442695
        %v2062 = vpow.pop %v2061
        %v2063 = vmul.f32 %v2020, 1.442695
        %v2064 = vpow.pop %v2063
        %v2065 = vmul.f32 %v2021, 1.442695
        %v2066 = vpow.pop %v2065
        %v2067 = vmul.f32 %v2022, 1.442695
        %v2068 = vpow.pop %v2067
        %v2069 = vmul.f32 %v2023, 1.442695
        %v2070 = vpow.pop %v2069
        %v2071 = vmul.f32 %v2024, 1.442695
        %v2072 = vpow.pop %v2071
        %v2073 = vmul.f32 %v2025, 1.442695
        %v2074 = vpow.pop %v2073
        %v2075 = vmul.f32 %v2026, 1.442695
        %v2076 = vpow.pop %v2075
        %v2077 = vmul.f32 %v2027, 1.442695
        %v2078 = vpow.pop %v2077
        %v2079 = vmul.f32 %v2028, 1.442695
        %v2080 = vpow.pop %v2079
        %v2081 = vmul.f32 %v2029, 1.442695
        %v2082 = vpow.pop %v2081
        %v2083 = vmul.f32 %v2030, 1.442695
        %v2084 = vpow.pop %v2083
        %v2085 = vmul.f32 %v2031, 1.442695
        %v2086 = vpow.pop %v2085
        %v2087 = vmul.f32 %v2032, 1.442695
        %v2088 = vpow.pop %v2087
        %v2089 = vmul.f32 %v2033, 1.442695
        %v2090 = vpow.pop %v2089
        %v2091 = vmul.f32 %v2034, 1.442695
        %v2092 = vpow.pop %v2091
        %v2093 = vmul.f32 %v2035, 1.442695
        %v2094 = vpow.pop %v2093
        %v2095 = vmul.f32 %v2036, 1.442695
        %v2096 = vpow.pop %v2095
        %v2097 = vmul.f32 %v2037, 1.442695
        %v2098 = vpow.pop %v2097
        %v2099 = vmul.f32 %v2038, 1.442695
        %v2100 = vpow.pop %v2099
        %v2101 = vmul.f32 %v2039, 1.442695
        %v2102 = vpow.pop %v2101
        %v2103 = vmul.f32 %v2040, 1.442695
        %v2104 = vpow.pop %v2103
        %v2105 = vsub.f32 %v1945, %v1977
        %v2106 = vsub.f32 %v1946, %v1978
        %v2107 = vsub.f32 %v1947, %v1979
        %v2108 = vsub.f32 %v1948, %v1980
        %v2109 = vsub.f32 %v1949, %v1981
        %v2110 = vsub.f32 %v1950, %v1982
        %v2111 = vsub.f32 %v1951, %v1983
        %v2112 = vsub.f32 %v1952, %v1984
        %v2113 = vsub.f32 %v1953, %v1985
        %v2114 = vsub.f32 %v1954, %v1986
        %v2115 = vsub.f32 %v1955, %v1987
        %v2116 = vsub.f32 %v1956, %v1988
        %v2117 = vsub.f32 %v1957, %v1989
        %v2118 = vsub.f32 %v1958, %v1990
        %v2119 = vsub.f32 %v1959, %v1991
        %v2120 = vsub.f32 %v1960, %v1992
        %v2121 = vsub.f32 %v1961, %v1993
        %v2122 = vsub.f32 %v1962, %v1994
        %v2123 = vsub.f32 %v1963, %v1995
        %v2124 = vsub.f32 %v1964, %v1996
        %v2125 = vsub.f32 %v1965, %v1997
        %v2126 = vsub.f32 %v1966, %v1998
        %v2127 = vsub.f32 %v1967, %v1999
        %v2128 = vsub.f32 %v1968, %v2000
        %v2129 = vsub.f32 %v1969, %v2001
        %v2130 = vsub.f32 %v1970, %v2002
        %v2131 = vsub.f32 %v1971, %v2003
        %v2132 = vsub.f32 %v1972, %v2004
        %v2133 = vsub.f32 %v1973, %v2005
        %v2134 = vsub.f32 %v1974, %v2006
        %v2135 = vsub.f32 %v1975, %v2007
        %v2136 = vsub.f32 %v1976, %v2008
        %v2137 = vmul.f32 %v2105, 1.442695
        %v2138 = vpow.pop %v2137
        %v2139 = vmul.f32 %v2106, 1.442695
        %v2140 = vpow.pop %v2139
        %v2141 = vmul.f32 %v2107, 1.442695
        %v2142 = vpow.pop %v2141
        %v2143 = vmul.f32 %v2108, 1.442695
        %v2144 = vpow.pop %v2143
        %v2145 = vmul.f32 %v2109, 1.442695
        %v2146 = vpow.pop %v2145
        %v2147 = vmul.f32 %v2110, 1.442695
        %v2148 = vpow.pop %v2147
        %v2149 = vmul.f32 %v2111, 1.442695
        %v2150 = vpow.pop %v2149
        %v2151 = vmul.f32 %v2112, 1.442695
        %v2152 = vpow.pop %v2151
        %v2153 = vmul.f32 %v2113, 1.442695
        %v2154 = vpow.pop %v2153
        %v2155 = vmul.f32 %v2114, 1.442695
        %v2156 = vpow.pop %v2155
        %v2157 = vmul.f32 %v2115, 1.442695
        %v2158 = vpow.pop %v2157
        %v2159 = vmul.f32 %v2116, 1.442695
        %v2160 = vpow.pop %v2159
        %v2161 = vmul.f32 %v2117, 1.442695
        %v2162 = vpow.pop %v2161
        %v2163 = vmul.f32 %v2118, 1.442695
        %v2164 = vpow.pop %v2163
        %v2165 = vmul.f32 %v2119, 1.442695
        %v2166 = vpow.pop %v2165
        %v2167 = vmul.f32 %v2120, 1.442695
        %v2168 = vpow.pop %v2167
        %v2169 = vmul.f32 %v2121, 1.442695
        %v2170 = vpow.pop %v2169
        %v2171 = vmul.f32 %v2122, 1.442695
        %v2172 = vpow.pop %v2171
        %v2173 = vmul.f32 %v2123, 1.442695
        %v2174 = vpow.pop %v2173
        %v2175 = vmul.f32 %v2124, 1.442695
        %v2176 = vpow.pop %v2175
        %v2177 = vmul.f32 %v2125, 1.442695
        %v2178 = vpow.pop %v2177
        %v2179 = vmul.f32 %v2126, 1.442695
        %v2180 = vpow.pop %v2179
        %v2181 = vmul.f32 %v2127, 1.442695
        %v2182 = vpow.pop %v2181
        %v2183 = vmul.f32 %v2128, 1.442695
        %v2184 = vpow.pop %v2183
        %v2185 = vmul.f32 %v2129, 1.442695
        %v2186 = vpow.pop %v2185
        %v2187 = vmul.f32 %v2130, 1.442695
        %v2188 = vpow.pop %v2187
        %v2189 = vmul.f32 %v2131, 1.442695
        %v2190 = vpow.pop %v2189
        %v2191 = vmul.f32 %v2132, 1.442695
        %v2192 = vpow.pop %v2191
        %v2193 = vmul.f32 %v2133, 1.442695
        %v2194 = vpow.pop %v2193
        %v2195 = vmul.f32 %v2134, 1.442695
        %v2196 = vpow.pop %v2195
        %v2197 = vmul.f32 %v2135, 1.442695
        %v2198 = vpow.pop %v2197
        %v2199 = vmul.f32 %v2136, 1.442695
        %v2200 = vpow.pop %v2199
        %v2201 = vadd.f32 %v2042, %v2138
        %v2202 = vadd.f32 %v2044, %v2140
        %v2203 = vadd.f32 %v2046, %v2142
        %v2204 = vadd.f32 %v2048, %v2144
        %v2205 = vadd.f32 %v2050, %v2146
        %v2206 = vadd.f32 %v2052, %v2148
        %v2207 = vadd.f32 %v2054, %v2150
        %v2208 = vadd.f32 %v2056, %v2152
        %v2209 = vadd.f32 %v2058, %v2154
        %v2210 = vadd.f32 %v2060, %v2156
        %v2211 = vadd.f32 %v2062, %v2158
        %v2212 = vadd.f32 %v2064, %v2160
        %v2213 = vadd.f32 %v2066, %v2162
        %v2214 = vadd.f32 %v2068, %v2164
        %v2215 = vadd.f32 %v2070, %v2166
        %v2216 = vadd.f32 %v2072, %v2168
        %v2217 = vadd.f32 %v2074, %v2170
        %v2218 = vadd.f32 %v2076, %v2172
        %v2219 = vadd.f32 %v2078, %v2174
        %v2220 = vadd.f32 %v2080, %v2176
        %v2221 = vadd.f32 %v2082, %v2178
        %v2222 = vadd.f32 %v2084, %v2180
        %v2223 = vadd.f32 %v2086, %v2182
        %v2224 = vadd.f32 %v2088, %v2184
        %v2225 = vadd.f32 %v2090, %v2186
        %v2226 = vadd.f32 %v2092, %v2188
        %v2227 = vadd.f32 %v2094, %v2190
        %v2228 = vadd.f32 %v2096, %v2192
        %v2229 = vadd.f32 %v2098, %v2194
        %v2230 = vadd.f32 %v2100, %v2196
        %v2231 = vadd.f32 %v2102, %v2198
        %v2232 = vadd.f32 %v2104, %v2200
        %v2233 = vrcp.pop %v2201
        %v2234 = vrcp.pop %v2202
        %v2235 = vrcp.pop %v2203
        %v2236 = vrcp.pop %v2204
        %v2237 = vrcp.pop %v2205
        %v2238 = vrcp.pop %v2206
        %v2239 = vrcp.pop %v2207
        %v2240 = vrcp.pop %v2208
        %v2241 = vrcp.pop %v2209
        %v2242 = vrcp.pop %v2210
        %v2243 = vrcp.pop %v2211
        %v2244 = vrcp.pop %v2212
        %v2245 = vrcp.pop %v2213
        %v2246 = vrcp.pop %v2214
        %v2247 = vrcp.pop %v2215
        %v2248 = vrcp.pop %v2216
        %v2249 = vrcp.pop %v2217
        %v2250 = vrcp.pop %v2218
        %v2251 = vrcp.pop %v2219
        %v2252 = vrcp.pop %v2220
        %v2253 = vrcp.pop %v2221
        %v2254 = vrcp.pop %v2222
        %v2255 = vrcp.pop %v2223
        %v2256 = vrcp.pop %v2224
        %v2257 = vrcp.pop %v2225
        %v2258 = vrcp.pop %v2226
        %v2259 = vrcp.pop %v2227
        %v2260 = vrcp.pop %v2228
        %v2261 = vrcp.pop %v2229
        %v2262 = vrcp.pop %v2230
        %v2263 = vrcp.pop %v2231
        %v2264 = vrcp.pop %v2232
        %v2265 = vmul.f32 %v2042, %v2233
        %v2266 = vmul.f32 %v2044, %v2234
        %v2267 = vmul.f32 %v2046, %v2235
        %v2268 = vmul.f32 %v2048, %v2236
        %v2269 = vmul.f32 %v2050, %v2237
        %v2270 = vmul.f32 %v2052, %v2238
        %v2271 = vmul.f32 %v2054, %v2239
        %v2272 = vmul.f32 %v2056, %v2240
        %v2273 = vmul.f32 %v2058, %v2241
        %v2274 = vmul.f32 %v2060, %v2242
        %v2275 = vmul.f32 %v2062, %v2243
        %v2276 = vmul.f32 %v2064, %v2244
        %v2277 = vmul.f32 %v2066, %v2245
        %v2278 = vmul.f32 %v2068, %v2246
        %v2279 = vmul.f32 %v2070, %v2247
        %v2280 = vmul.f32 %v2072, %v2248
        %v2281 = vmul.f32 %v2074, %v2249
        %v2282 = vmul.f32 %v2076, %v2250
        %v2283 = vmul.f32 %v2078, %v2251
        %v2284 = vmul.f32 %v2080, %v2252
        %v2285 = vmul.f32 %v2082, %v2253
        %v2286 = vmul.f32 %v2084, %v2254
        %v2287 = vmul.f32 %v2086, %v2255
        %v2288 = vmul.f32 %v2088, %v2256
        %v2289 = vmul.f32 %v2090, %v2257
        %v2290 = vmul.f32 %v2092, %v2258
        %v2291 = vmul.f32 %v2094, %v2259
        %v2292 = vmul.f32 %v2096, %v2260
        %v2293 = vmul.f32 %v2098, %v2261
        %v2294 = vmul.f32 %v2100, %v2262
        %v2295 = vmul.f32 %v2102, %v2263
        %v2296 = vmul.f32 %v2104, %v2264
        %v2297 = vmul.f32 %v2138, %v2233
        %v2298 = vmul.f32 %v2140, %v2234
        %v2299 = vmul.f32 %v2142, %v2235
        %v2300 = vmul.f32 %v2144, %v2236
        %v2301 = vmul.f32 %v2146, %v2237
        %v2302 = vmul.f32 %v2148, %v2238
        %v2303 = vmul.f32 %v2150, %v2239
        %v2304 = vmul.f32 %v2152, %v2240
        %v2305 = vmul.f32 %v2154, %v2241
        %v2306 = vmul.f32 %v2156, %v2242
        %v2307 = vmul.f32 %v2158, %v2243
        %v2308 = vmul.f32 %v2160, %v2244
        %v2309 = vmul.f32 %v2162, %v2245
        %v2310 = vmul.f32 %v2164, %v2246
        %v2311 = vmul.f32 %v2166, %v2247
        %v2312 = vmul.f32 %v2168, %v2248
        %v2313 = vmul.f32 %v2170, %v2249
        %v2314 = vmul.f32 %v2172, %v2250
        %v2315 = vmul.f32 %v2174, %v2251
        %v2316 = vmul.f32 %v2176, %v2252
        %v2317 = vmul.f32 %v2178, %v2253
        %v2318 = vmul.f32 %v2180, %v2254
        %v2319 = vmul.f32 %v2182, %v2255
        %v2320 = vmul.f32 %v2184, %v2256
        %v2321 = vmul.f32 %v2186, %v2257
        %v2322 = vmul.f32 %v2188, %v2258
        %v2323 = vmul.f32 %v2190, %v2259
        %v2324 = vmul.f32 %v2192, %v2260
        %v2325 = vmul.f32 %v2194, %v2261
        %v2326 = vmul.f32 %v2196, %v2262
        %v2327 = vmul.f32 %v2198, %v2263
        %v2328 = vmul.f32 %v2200, %v2264
        %v2329 = vmul.f32 %v2265, %v520
        %v2330 = vmul.f32 %v2266, %v521
        %v2331 = vmul.f32 %v2267, %v522
        %v2332 = vmul.f32 %v2268, %v523
        %v2333 = vmul.f32 %v2269, %v524
        %v2334 = vmul.f32 %v2270, %v525
        %v2335 = vmul.f32 %v2271, %v526
        %v2336 = vmul.f32 %v2272, %v527
        %v2337 = vmul.f32 %v2273, %v528
        %v2338 = vmul.f32 %v2274, %v529
        %v2339 = vmul.f32 %v2275, %v530
        %v2340 = vmul.f32 %v2276, %v531
        %v2341 = vmul.f32 %v2277, %v532
        %v2342 = vmul.f32 %v2278, %v533
        %v2343 = vmul.f32 %v2279, %v534
        %v2344 = vmul.f32 %v2280, %v535
        %v2345 = vmul.f32 %v2281, %v536
        %v2346 = vmul.f32 %v2282, %v537
        %v2347 = vmul.f32 %v2283, %v538
        %v2348 = vmul.f32 %v2284, %v539
        %v2349 = vmul.f32 %v2285, %v540
        %v2350 = vmul.f32 %v2286, %v541
        %v2351 = vmul.f32 %v2287, %v542
        %v2352 = vmul.f32 %v2288, %v543
        %v2353 = vmul.f32 %v2289, %v544
        %v2354 = vmul.f32 %v2290, %v545
        %v2355 = vmul.f32 %v2291, %v546
        %v2356 = vmul.f32 %v2292, %v547
        %v2357 = vmul.f32 %v2293, %v548
        %v2358 = vmul.f32 %v2294, %v549
        %v2359 = vmul.f32 %v2295, %v550
        %v2360 = vmul.f32 %v2296, %v551
        %v2361 = vmul.f32 %v2297, %v552
        %v2362 = vmul.f32 %v2298, %v553
        %v2363 = vmul.f32 %v2299, %v554
        %v2364 = vmul.f32 %v2300, %v555
        %v2365 = vmul.f32 %v2301, %v556
        %v2366 = vmul.f32 %v2302, %v557
        %v2367 = vmul.f32 %v2303, %v558
        %v2368 = vmul.f32 %v2304, %v559
        %v2369 = vmul.f32 %v2305, %v560
        %v2370 = vmul.f32 %v2306, %v561
        %v2371 = vmul.f32 %v2307, %v562
        %v2372 = vmul.f32 %v2308, %v563
        %v2373 = vmul.f32 %v2309, %v564
        %v2374 = vmul.f32 %v2310, %v565
        %v2375 = vmul.f32 %v2311, %v566
        %v2376 = vmul.f32 %v2312, %v567
        %v2377 = vmul.f32 %v2313, %v568
        %v2378 = vmul.f32 %v2314, %v569
        %v2379 = vmul.f32 %v2315, %v570
        %v2380 = vmul.f32 %v2316, %v571
        %v2381 = vmul.f32 %v2317, %v572
        %v2382 = vmul.f32 %v2318, %v573
        %v2383 = vmul.f32 %v2319, %v574
        %v2384 = vmul.f32 %v2320, %v575
        %v2385 = vmul.f32 %v2321, %v576
        %v2386 = vmul.f32 %v2322, %v577
        %v2387 = vmul.f32 %v2323, %v578
        %v2388 = vmul.f32 %v2324, %v579
        %v2389 = vmul.f32 %v2325, %v580
        %v2390 = vmul.f32 %v2326, %v581
        %v2391 = vmul.f32 %v2327, %v582
        %v2392 = vmul.f32 %v2328, %v583
        %v2393 = vadd.f32 %v2329, %v2361
        %v2394 = vadd.f32 %v2330, %v2362
        %v2395 = vadd.f32 %v2331, %v2363
        %v2396 = vadd.f32 %v2332, %v2364
        %v2397 = vadd.f32 %v2333, %v2365
        %v2398 = vadd.f32 %v2334, %v2366
        %v2399 = vadd.f32 %v2335, %v2367
        %v2400 = vadd.f32 %v2336, %v2368
        %v2401 = vadd.f32 %v2337, %v2369
        %v2402 = vadd.f32 %v2338, %v2370
        %v2403 = vadd.f32 %v2339, %v2371
        %v2404 = vadd.f32 %v2340, %v2372
        %v2405 = vadd.f32 %v2341, %v2373
        %v2406 = vadd.f32 %v2342, %v2374
        %v2407 = vadd.f32 %v2343, %v2375
        %v2408 = vadd.f32 %v2344, %v2376
        %v2409 = vadd.f32 %v2345, %v2377
        %v2410 = vadd.f32 %v2346, %v2378
        %v2411 = vadd.f32 %v2347, %v2379
        %v2412 = vadd.f32 %v2348, %v2380
        %v2413 = vadd.f32 %v2349, %v2381
        %v2414 = vadd.f32 %v2350, %v2382
        %v2415 = vadd.f32 %v2351, %v2383
        %v2416 = vadd.f32 %v2352, %v2384
        %v2417 = vadd.f32 %v2353, %v2385
        %v2418 = vadd.f32 %v2354, %v2386
        %v2419 = vadd.f32 %v2355, %v2387
        %v2420 = vadd.f32 %v2356, %v2388
        %v2421 = vadd.f32 %v2357, %v2389
        %v2422 = vadd.f32 %v2358, %v2390
        %v2423 = vadd.f32 %v2359, %v2391
        %v2424 = vadd.f32 %v2360, %v2392
        %2425 = vadd.xlane.f32.xlu0 %v2393
        %v2426 = vpop.xlane.xlu0 %2425
        %2427 = vadd.xlane.f32.xlu0 %v2394
        %v2428 = vpop.xlane.xlu0 %2427
        %2429 = vadd.xlane.f32.xlu0 %v2395
        %v2430 = vpop.xlane.xlu0 %2429
        %2431 = vadd.xlane.f32.xlu0 %v2396
        %v2432 = vpop.xlane.xlu0 %2431
        %2433 = vadd.xlane.f32.xlu0 %v2397
        %v2434 = vpop.xlane.xlu0 %2433
        %2435 = vadd.xlane.f32.xlu0 %v2398
        %v2436 = vpop.xlane.xlu0 %2435
        %2437 = vadd.xlane.f32.xlu0 %v2399
        %v2438 = vpop.xlane.xlu0 %2437
        %2439 = vadd.xlane.f32.xlu0 %v2400
        %v2440 = vpop.xlane.xlu0 %2439
        %2441 = vadd.xlane.f32.xlu0 %v2401
        %v2442 = vpop.xlane.xlu0 %2441
        %2443 = vadd.xlane.f32.xlu0 %v2402
        %v2444 = vpop.xlane.xlu0 %2443
        %2445 = vadd.xlane.f32.xlu0 %v2403
        %v2446 = vpop.xlane.xlu0 %2445
        %2447 = vadd.xlane.f32.xlu0 %v2404
        %v2448 = vpop.xlane.xlu0 %2447
        %2449 = vadd.xlane.f32.xlu0 %v2405
        %v2450 = vpop.xlane.xlu0 %2449
        %2451 = vadd.xlane.f32.xlu0 %v2406
        %v2452 = vpop.xlane.xlu0 %2451
        %2453 = vadd.xlane.f32.xlu0 %v2407
        %v2454 = vpop.xlane.xlu0 %2453
        %2455 = vadd.xlane.f32.xlu0 %v2408
        %v2456 = vpop.xlane.xlu0 %2455
        %2457 = vadd.xlane.f32.xlu0 %v2409
        %v2458 = vpop.xlane.xlu0 %2457
        %2459 = vadd.xlane.f32.xlu0 %v2410
        %v2460 = vpop.xlane.xlu0 %2459
        %2461 = vadd.xlane.f32.xlu0 %v2411
        %v2462 = vpop.xlane.xlu0 %2461
        %2463 = vadd.xlane.f32.xlu0 %v2412
        %v2464 = vpop.xlane.xlu0 %2463
        %2465 = vadd.xlane.f32.xlu0 %v2413
        %v2466 = vpop.xlane.xlu0 %2465
        %2467 = vadd.xlane.f32.xlu0 %v2414
        %v2468 = vpop.xlane.xlu0 %2467
        %2469 = vadd.xlane.f32.xlu0 %v2415
        %v2470 = vpop.xlane.xlu0 %2469
        %2471 = vadd.xlane.f32.xlu0 %v2416
        %v2472 = vpop.xlane.xlu0 %2471
        %2473 = vadd.xlane.f32.xlu0 %v2417
        %v2474 = vpop.xlane.xlu0 %2473
        %2475 = vadd.xlane.f32.xlu0 %v2418
        %v2476 = vpop.xlane.xlu0 %2475
        %2477 = vadd.xlane.f32.xlu0 %v2419
        %v2478 = vpop.xlane.xlu0 %2477
        %2479 = vadd.xlane.f32.xlu0 %v2420
        %v2480 = vpop.xlane.xlu0 %2479
        %2481 = vadd.xlane.f32.xlu0 %v2421
        %v2482 = vpop.xlane.xlu0 %2481
        %2483 = vadd.xlane.f32.xlu0 %v2422
        %v2484 = vpop.xlane.xlu0 %2483
        %2485 = vadd.xlane.f32.xlu0 %v2423
        %v2486 = vpop.xlane.xlu0 %2485
        %2487 = vadd.xlane.f32.xlu0 %v2424
        %v2488 = vpop.xlane.xlu0 %2487
        %v2489 = vrcp.pop 128.0
        %v2490 = vmul.f32 %v2426, %v2489
        %v2491 = vmul.f32 %v2428, %v2489
        %v2492 = vmul.f32 %v2430, %v2489
        %v2493 = vmul.f32 %v2432, %v2489
        %v2494 = vmul.f32 %v2434, %v2489
        %v2495 = vmul.f32 %v2436, %v2489
        %v2496 = vmul.f32 %v2438, %v2489
        %v2497 = vmul.f32 %v2440, %v2489
        %v2498 = vmul.f32 %v2442, %v2489
        %v2499 = vmul.f32 %v2444, %v2489
        %v2500 = vmul.f32 %v2446, %v2489
        %v2501 = vmul.f32 %v2448, %v2489
        %v2502 = vmul.f32 %v2450, %v2489
        %v2503 = vmul.f32 %v2452, %v2489
        %v2504 = vmul.f32 %v2454, %v2489
        %v2505 = vmul.f32 %v2456, %v2489
        %v2506 = vmul.f32 %v2458, %v2489
        %v2507 = vmul.f32 %v2460, %v2489
        %v2508 = vmul.f32 %v2462, %v2489
        %v2509 = vmul.f32 %v2464, %v2489
        %v2510 = vmul.f32 %v2466, %v2489
        %v2511 = vmul.f32 %v2468, %v2489
        %v2512 = vmul.f32 %v2470, %v2489
        %v2513 = vmul.f32 %v2472, %v2489
        %v2514 = vmul.f32 %v2474, %v2489
        %v2515 = vmul.f32 %v2476, %v2489
        %v2516 = vmul.f32 %v2478, %v2489
        %v2517 = vmul.f32 %v2480, %v2489
        %v2518 = vmul.f32 %v2482, %v2489
        %v2519 = vmul.f32 %v2484, %v2489
        %v2520 = vmul.f32 %v2486, %v2489
        %v2521 = vmul.f32 %v2488, %v2489
        %v2522 = vsub.f32 %v2393, %v2490
        %v2523 = vsub.f32 %v2394, %v2491
        %v2524 = vsub.f32 %v2395, %v2492
        %v2525 = vsub.f32 %v2396, %v2493
        %v2526 = vsub.f32 %v2397, %v2494
        %v2527 = vsub.f32 %v2398, %v2495
        %v2528 = vsub.f32 %v2399, %v2496
        %v2529 = vsub.f32 %v2400, %v2497
        %v2530 = vsub.f32 %v2401, %v2498
        %v2531 = vsub.f32 %v2402, %v2499
        %v2532 = vsub.f32 %v2403, %v2500
        %v2533 = vsub.f32 %v2404, %v2501
        %v2534 = vsub.f32 %v2405, %v2502
        %v2535 = vsub.f32 %v2406, %v2503
        %v2536 = vsub.f32 %v2407, %v2504
        %v2537 = vsub.f32 %v2408, %v2505
        %v2538 = vsub.f32 %v2409, %v2506
        %v2539 = vsub.f32 %v2410, %v2507
        %v2540 = vsub.f32 %v2411, %v2508
        %v2541 = vsub.f32 %v2412, %v2509
        %v2542 = vsub.f32 %v2413, %v2510
        %v2543 = vsub.f32 %v2414, %v2511
        %v2544 = vsub.f32 %v2415, %v2512
        %v2545 = vsub.f32 %v2416, %v2513
        %v2546 = vsub.f32 %v2417, %v2514
        %v2547 = vsub.f32 %v2418, %v2515
        %v2548 = vsub.f32 %v2419, %v2516
        %v2549 = vsub.f32 %v2420, %v2517
        %v2550 = vsub.f32 %v2421, %v2518
        %v2551 = vsub.f32 %v2422, %v2519
        %v2552 = vsub.f32 %v2423, %v2520
        %v2553 = vsub.f32 %v2424, %v2521
        %v2554 = vmul.f32 %v2522, %v2522
        %v2555 = vmul.f32 %v2523, %v2523
        %v2556 = vmul.f32 %v2524, %v2524
        %v2557 = vmul.f32 %v2525, %v2525
        %v2558 = vmul.f32 %v2526, %v2526
        %v2559 = vmul.f32 %v2527, %v2527
        %v2560 = vmul.f32 %v2528, %v2528
        %v2561 = vmul.f32 %v2529, %v2529
        %v2562 = vmul.f32 %v2530, %v2530
        %v2563 = vmul.f32 %v2531, %v2531
        %v2564 = vmul.f32 %v2532, %v2532
        %v2565 = vmul.f32 %v2533, %v2533
        %v2566 = vmul.f32 %v2534, %v2534
        %v2567 = vmul.f32 %v2535, %v2535
        %v2568 = vmul.f32 %v2536, %v2536
        %v2569 = vmul.f32 %v2537, %v2537
        %v2570 = vmul.f32 %v2538, %v2538
        %v2571 = vmul.f32 %v2539, %v2539
        %v2572 = vmul.f32 %v2540, %v2540
        %v2573 = vmul.f32 %v2541, %v2541
        %v2574 = vmul.f32 %v2542, %v2542
        %v2575 = vmul.f32 %v2543, %v2543
        %v2576 = vmul.f32 %v2544, %v2544
        %v2577 = vmul.f32 %v2545, %v2545
        %v2578 = vmul.f32 %v2546, %v2546
        %v2579 = vmul.f32 %v2547, %v2547
        %v2580 = vmul.f32 %v2548, %v2548
        %v2581 = vmul.f32 %v2549, %v2549
        %v2582 = vmul.f32 %v2550, %v2550
        %v2583 = vmul.f32 %v2551, %v2551
        %v2584 = vmul.f32 %v2552, %v2552
        %v2585 = vmul.f32 %v2553, %v2553
        %2586 = vadd.xlane.f32.xlu0 %v2554
        %v2587 = vpop.xlane.xlu0 %2586
        %2588 = vadd.xlane.f32.xlu0 %v2555
        %v2589 = vpop.xlane.xlu0 %2588
        %2590 = vadd.xlane.f32.xlu0 %v2556
        %v2591 = vpop.xlane.xlu0 %2590
        %2592 = vadd.xlane.f32.xlu0 %v2557
        %v2593 = vpop.xlane.xlu0 %2592
        %2594 = vadd.xlane.f32.xlu0 %v2558
        %v2595 = vpop.xlane.xlu0 %2594
        %2596 = vadd.xlane.f32.xlu0 %v2559
        %v2597 = vpop.xlane.xlu0 %2596
        %2598 = vadd.xlane.f32.xlu0 %v2560
        %v2599 = vpop.xlane.xlu0 %2598
        %2600 = vadd.xlane.f32.xlu0 %v2561
        %v2601 = vpop.xlane.xlu0 %2600
        %2602 = vadd.xlane.f32.xlu0 %v2562
        %v2603 = vpop.xlane.xlu0 %2602
        %2604 = vadd.xlane.f32.xlu0 %v2563
        %v2605 = vpop.xlane.xlu0 %2604
        %2606 = vadd.xlane.f32.xlu0 %v2564
        %v2607 = vpop.xlane.xlu0 %2606
        %2608 = vadd.xlane.f32.xlu0 %v2565
        %v2609 = vpop.xlane.xlu0 %2608
        %2610 = vadd.xlane.f32.xlu0 %v2566
        %v2611 = vpop.xlane.xlu0 %2610
        %2612 = vadd.xlane.f32.xlu0 %v2567
        %v2613 = vpop.xlane.xlu0 %2612
        %2614 = vadd.xlane.f32.xlu0 %v2568
        %v2615 = vpop.xlane.xlu0 %2614
        %2616 = vadd.xlane.f32.xlu0 %v2569
        %v2617 = vpop.xlane.xlu0 %2616
        %2618 = vadd.xlane.f32.xlu0 %v2570
        %v2619 = vpop.xlane.xlu0 %2618
        %2620 = vadd.xlane.f32.xlu0 %v2571
        %v2621 = vpop.xlane.xlu0 %2620
        %2622 = vadd.xlane.f32.xlu0 %v2572
        %v2623 = vpop.xlane.xlu0 %2622
        %2624 = vadd.xlane.f32.xlu0 %v2573
        %v2625 = vpop.xlane.xlu0 %2624
        %2626 = vadd.xlane.f32.xlu0 %v2574
        %v2627 = vpop.xlane.xlu0 %2626
        %2628 = vadd.xlane.f32.xlu0 %v2575
        %v2629 = vpop.xlane.xlu0 %2628
        %2630 = vadd.xlane.f32.xlu0 %v2576
        %v2631 = vpop.xlane.xlu0 %2630
        %2632 = vadd.xlane.f32.xlu0 %v2577
        %v2633 = vpop.xlane.xlu0 %2632
        %2634 = vadd.xlane.f32.xlu0 %v2578
        %v2635 = vpop.xlane.xlu0 %2634
        %2636 = vadd.xlane.f32.xlu0 %v2579
        %v2637 = vpop.xlane.xlu0 %2636
        %2638 = vadd.xlane.f32.xlu0 %v2580
        %v2639 = vpop.xlane.xlu0 %2638
        %2640 = vadd.xlane.f32.xlu0 %v2581
        %v2641 = vpop.xlane.xlu0 %2640
        %2642 = vadd.xlane.f32.xlu0 %v2582
        %v2643 = vpop.xlane.xlu0 %2642
        %2644 = vadd.xlane.f32.xlu0 %v2583
        %v2645 = vpop.xlane.xlu0 %2644
        %2646 = vadd.xlane.f32.xlu0 %v2584
        %v2647 = vpop.xlane.xlu0 %2646
        %2648 = vadd.xlane.f32.xlu0 %v2585
        %v2649 = vpop.xlane.xlu0 %2648
        %v2650 = vmul.f32 %v2587, %v2489
        %v2651 = vmul.f32 %v2589, %v2489
        %v2652 = vmul.f32 %v2591, %v2489
        %v2653 = vmul.f32 %v2593, %v2489
        %v2654 = vmul.f32 %v2595, %v2489
        %v2655 = vmul.f32 %v2597, %v2489
        %v2656 = vmul.f32 %v2599, %v2489
        %v2657 = vmul.f32 %v2601, %v2489
        %v2658 = vmul.f32 %v2603, %v2489
        %v2659 = vmul.f32 %v2605, %v2489
        %v2660 = vmul.f32 %v2607, %v2489
        %v2661 = vmul.f32 %v2609, %v2489
        %v2662 = vmul.f32 %v2611, %v2489
        %v2663 = vmul.f32 %v2613, %v2489
        %v2664 = vmul.f32 %v2615, %v2489
        %v2665 = vmul.f32 %v2617, %v2489
        %v2666 = vmul.f32 %v2619, %v2489
        %v2667 = vmul.f32 %v2621, %v2489
        %v2668 = vmul.f32 %v2623, %v2489
        %v2669 = vmul.f32 %v2625, %v2489
        %v2670 = vmul.f32 %v2627, %v2489
        %v2671 = vmul.f32 %v2629, %v2489
        %v2672 = vmul.f32 %v2631, %v2489
        %v2673 = vmul.f32 %v2633, %v2489
        %v2674 = vmul.f32 %v2635, %v2489
        %v2675 = vmul.f32 %v2637, %v2489
        %v2676 = vmul.f32 %v2639, %v2489
        %v2677 = vmul.f32 %v2641, %v2489
        %v2678 = vmul.f32 %v2643, %v2489
        %v2679 = vmul.f32 %v2645, %v2489
        %v2680 = vmul.f32 %v2647, %v2489
        %v2681 = vmul.f32 %v2649, %v2489
        %v2682 = vadd.f32 %v2650, 1e-06
        %v2683 = vadd.f32 %v2651, 1e-06
        %v2684 = vadd.f32 %v2652, 1e-06
        %v2685 = vadd.f32 %v2653, 1e-06
        %v2686 = vadd.f32 %v2654, 1e-06
        %v2687 = vadd.f32 %v2655, 1e-06
        %v2688 = vadd.f32 %v2656, 1e-06
        %v2689 = vadd.f32 %v2657, 1e-06
        %v2690 = vadd.f32 %v2658, 1e-06
        %v2691 = vadd.f32 %v2659, 1e-06
        %v2692 = vadd.f32 %v2660, 1e-06
        %v2693 = vadd.f32 %v2661, 1e-06
        %v2694 = vadd.f32 %v2662, 1e-06
        %v2695 = vadd.f32 %v2663, 1e-06
        %v2696 = vadd.f32 %v2664, 1e-06
        %v2697 = vadd.f32 %v2665, 1e-06
        %v2698 = vadd.f32 %v2666, 1e-06
        %v2699 = vadd.f32 %v2667, 1e-06
        %v2700 = vadd.f32 %v2668, 1e-06
        %v2701 = vadd.f32 %v2669, 1e-06
        %v2702 = vadd.f32 %v2670, 1e-06
        %v2703 = vadd.f32 %v2671, 1e-06
        %v2704 = vadd.f32 %v2672, 1e-06
        %v2705 = vadd.f32 %v2673, 1e-06
        %v2706 = vadd.f32 %v2674, 1e-06
        %v2707 = vadd.f32 %v2675, 1e-06
        %v2708 = vadd.f32 %v2676, 1e-06
        %v2709 = vadd.f32 %v2677, 1e-06
        %v2710 = vadd.f32 %v2678, 1e-06
        %v2711 = vadd.f32 %v2679, 1e-06
        %v2712 = vadd.f32 %v2680, 1e-06
        %v2713 = vadd.f32 %v2681, 1e-06
        %v2714 = vrsqrt.pop %v2682
        %v2715 = vrsqrt.pop %v2683
        %v2716 = vrsqrt.pop %v2684
        %v2717 = vrsqrt.pop %v2685
        %v2718 = vrsqrt.pop %v2686
        %v2719 = vrsqrt.pop %v2687
        %v2720 = vrsqrt.pop %v2688
        %v2721 = vrsqrt.pop %v2689
        %v2722 = vrsqrt.pop %v2690
        %v2723 = vrsqrt.pop %v2691
        %v2724 = vrsqrt.pop %v2692
        %v2725 = vrsqrt.pop %v2693
        %v2726 = vrsqrt.pop %v2694
        %v2727 = vrsqrt.pop %v2695
        %v2728 = vrsqrt.pop %v2696
        %v2729 = vrsqrt.pop %v2697
        %v2730 = vrsqrt.pop %v2698
        %v2731 = vrsqrt.pop %v2699
        %v2732 = vrsqrt.pop %v2700
        %v2733 = vrsqrt.pop %v2701
        %v2734 = vrsqrt.pop %v2702
        %v2735 = vrsqrt.pop %v2703
        %v2736 = vrsqrt.pop %v2704
        %v2737 = vrsqrt.pop %v2705
        %v2738 = vrsqrt.pop %v2706
        %v2739 = vrsqrt.pop %v2707
        %v2740 = vrsqrt.pop %v2708
        %v2741 = vrsqrt.pop %v2709
        %v2742 = vrsqrt.pop %v2710
        %v2743 = vrsqrt.pop %v2711
        %v2744 = vrsqrt.pop %v2712
        %v2745 = vrsqrt.pop %v2713
        %v2746 = vmul.f32 %v2522, %v2714
        %v2747 = vmul.f32 %v2523, %v2715
        %v2748 = vmul.f32 %v2524, %v2716
        %v2749 = vmul.f32 %v2525, %v2717
        %v2750 = vmul.f32 %v2526, %v2718
        %v2751 = vmul.f32 %v2527, %v2719
        %v2752 = vmul.f32 %v2528, %v2720
        %v2753 = vmul.f32 %v2529, %v2721
        %v2754 = vmul.f32 %v2530, %v2722
        %v2755 = vmul.f32 %v2531, %v2723
        %v2756 = vmul.f32 %v2532, %v2724
        %v2757 = vmul.f32 %v2533, %v2725
        %v2758 = vmul.f32 %v2534, %v2726
        %v2759 = vmul.f32 %v2535, %v2727
        %v2760 = vmul.f32 %v2536, %v2728
        %v2761 = vmul.f32 %v2537, %v2729
        %v2762 = vmul.f32 %v2538, %v2730
        %v2763 = vmul.f32 %v2539, %v2731
        %v2764 = vmul.f32 %v2540, %v2732
        %v2765 = vmul.f32 %v2541, %v2733
        %v2766 = vmul.f32 %v2542, %v2734
        %v2767 = vmul.f32 %v2543, %v2735
        %v2768 = vmul.f32 %v2544, %v2736
        %v2769 = vmul.f32 %v2545, %v2737
        %v2770 = vmul.f32 %v2546, %v2738
        %v2771 = vmul.f32 %v2547, %v2739
        %v2772 = vmul.f32 %v2548, %v2740
        %v2773 = vmul.f32 %v2549, %v2741
        %v2774 = vmul.f32 %v2550, %v2742
        %v2775 = vmul.f32 %v2551, %v2743
        %v2776 = vmul.f32 %v2552, %v2744
        %v2777 = vmul.f32 %v2553, %v2745
        %v2778 = vld [vmem:[%s10] sm:$0x1]
        %v2780 = vlaneseq
        %v2781 = vshrl.u32 %v2780, 7
        %v2782 = vsub.s32 0, %v2781
        %v2783 = vrot.slane %v2778, %v2782
        %v2785 = vmul.f32 %v2746, %v2783
        %v2786 = vmul.f32 %v2747, %v2783
        %v2787 = vmul.f32 %v2748, %v2783
        %v2788 = vmul.f32 %v2749, %v2783
        %v2789 = vmul.f32 %v2750, %v2783
        %v2790 = vmul.f32 %v2751, %v2783
        %v2791 = vmul.f32 %v2752, %v2783
        %v2792 = vmul.f32 %v2753, %v2783
        %v2793 = vmul.f32 %v2754, %v2783
        %v2794 = vmul.f32 %v2755, %v2783
        %v2795 = vmul.f32 %v2756, %v2783
        %v2796 = vmul.f32 %v2757, %v2783
        %v2797 = vmul.f32 %v2758, %v2783
        %v2798 = vmul.f32 %v2759, %v2783
        %v2799 = vmul.f32 %v2760, %v2783
        %v2800 = vmul.f32 %v2761, %v2783
        %v2801 = vmul.f32 %v2762, %v2783
        %v2802 = vmul.f32 %v2763, %v2783
        %v2803 = vmul.f32 %v2764, %v2783
        %v2804 = vmul.f32 %v2765, %v2783
        %v2805 = vmul.f32 %v2766, %v2783
        %v2806 = vmul.f32 %v2767, %v2783
        %v2807 = vmul.f32 %v2768, %v2783
        %v2808 = vmul.f32 %v2769, %v2783
        %v2809 = vmul.f32 %v2770, %v2783
        %v2810 = vmul.f32 %v2771, %v2783
        %v2811 = vmul.f32 %v2772, %v2783
        %v2812 = vmul.f32 %v2773, %v2783
        %v2813 = vmul.f32 %v2774, %v2783
        %v2814 = vmul.f32 %v2775, %v2783
        %v2815 = vmul.f32 %v2776, %v2783
        %v2816 = vmul.f32 %v2777, %v2783
        %v2817 = vld [vmem:[%s11] sm:$0x1]
        %v2819 = vlaneseq
        %v2820 = vshrl.u32 %v2819, 7
        %v2821 = vsub.s32 0, %v2820
        %v2822 = vrot.slane %v2817, %v2821
        %v2824 = vadd.f32 %v2785, %v2822
        %v2825 = vadd.f32 %v2786, %v2822
        %v2826 = vadd.f32 %v2787, %v2822
        %v2827 = vadd.f32 %v2788, %v2822
        %v2828 = vadd.f32 %v2789, %v2822
        %v2829 = vadd.f32 %v2790, %v2822
        %v2830 = vadd.f32 %v2791, %v2822
        %v2831 = vadd.f32 %v2792, %v2822
        %v2832 = vadd.f32 %v2793, %v2822
        %v2833 = vadd.f32 %v2794, %v2822
        %v2834 = vadd.f32 %v2795, %v2822
        %v2835 = vadd.f32 %v2796, %v2822
        %v2836 = vadd.f32 %v2797, %v2822
        %v2837 = vadd.f32 %v2798, %v2822
        %v2838 = vadd.f32 %v2799, %v2822
        %v2839 = vadd.f32 %v2800, %v2822
        %v2840 = vadd.f32 %v2801, %v2822
        %v2841 = vadd.f32 %v2802, %v2822
        %v2842 = vadd.f32 %v2803, %v2822
        %v2843 = vadd.f32 %v2804, %v2822
        %v2844 = vadd.f32 %v2805, %v2822
        %v2845 = vadd.f32 %v2806, %v2822
        %v2846 = vadd.f32 %v2807, %v2822
        %v2847 = vadd.f32 %v2808, %v2822
        %v2848 = vadd.f32 %v2809, %v2822
        %v2849 = vadd.f32 %v2810, %v2822
        %v2850 = vadd.f32 %v2811, %v2822
        %v2851 = vadd.f32 %v2812, %v2822
        %v2852 = vadd.f32 %v2813, %v2822
        %v2853 = vadd.f32 %v2814, %v2822
        %v2854 = vadd.f32 %v2815, %v2822
        %v2855 = vadd.f32 %v2816, %v2822
        %2856 = vst [vmem:[%s515] sm:$0xff] %v2824
        %2857 = vst [vmem:[%s515 + $0x8] sm:$0xff] %v2825
        %2858 = vst [vmem:[%s515 + $0x10] sm:$0xff] %v2826
        %2859 = vst [vmem:[%s515 + $0x18] sm:$0xff] %v2827
        %2860 = vst [vmem:[%s515 + $0x20] sm:$0xff] %v2828
        %2861 = vst [vmem:[%s515 + $0x28] sm:$0xff] %v2829
        %2862 = vst [vmem:[%s515 + $0x30] sm:$0xff] %v2830
        %2863 = vst [vmem:[%s515 + $0x38] sm:$0xff] %v2831
        %2864 = vst [vmem:[%s515 + $0x40] sm:$0xff] %v2832
        %2865 = vst [vmem:[%s515 + $0x48] sm:$0xff] %v2833
        %2866 = vst [vmem:[%s515 + $0x50] sm:$0xff] %v2834
        %2867 = vst [vmem:[%s515 + $0x58] sm:$0xff] %v2835
        %2868 = vst [vmem:[%s515 + $0x60] sm:$0xff] %v2836
        %2869 = vst [vmem:[%s515 + $0x68] sm:$0xff] %v2837
        %2870 = vst [vmem:[%s515 + $0x70] sm:$0xff] %v2838
        %2871 = vst [vmem:[%s515 + $0x78] sm:$0xff] %v2839
        %2872 = vst [vmem:[%s515 + $0x80] sm:$0xff] %v2840
        %2873 = vst [vmem:[%s515 + $0x88] sm:$0xff] %v2841
        %2874 = vst [vmem:[%s515 + $0x90] sm:$0xff] %v2842
        %2875 = vst [vmem:[%s515 + $0x98] sm:$0xff] %v2843
        %2876 = vst [vmem:[%s515 + $0xa0] sm:$0xff] %v2844
        %2877 = vst [vmem:[%s515 + $0xa8] sm:$0xff] %v2845
        %2878 = vst [vmem:[%s515 + $0xb0] sm:$0xff] %v2846
        %2879 = vst [vmem:[%s515 + $0xb8] sm:$0xff] %v2847
        %2880 = vst [vmem:[%s515 + $0xc0] sm:$0xff] %v2848
        %2881 = vst [vmem:[%s515 + $0xc8] sm:$0xff] %v2849
        %2882 = vst [vmem:[%s515 + $0xd0] sm:$0xff] %v2850
        %2883 = vst [vmem:[%s515 + $0xd8] sm:$0xff] %v2851
        %2884 = vst [vmem:[%s515 + $0xe0] sm:$0xff] %v2852
        %2885 = vst [vmem:[%s515 + $0xe8] sm:$0xff] %v2853
        %2886 = vst [vmem:[%s515 + $0xf0] sm:$0xff] %v2854
        %2887 = vst [vmem:[%s515 + $0xf8] sm:$0xff] %v2855
        %s2888 = sand.u32 %s304, 1
        %s2889 = scalar_lea.sflag [#allocation5], %s2888
        %s2890 = sand.u32 %s304, 1
        %s2891 = smul.addr %s2890, 256
        %s2892 = scalar_lea.vmem [#allocation12], %s2891
        // Predicated region
        $region89: #{tpu_custom_call.1} parent=67 // pred_check
          %p2893 = pneg %p314
        $region90: #{tpu_custom_call.1} parent=67 // pred_check_branch
          %2895 = sbr.rel (%p2893) target = $region92
        $region91: #{tpu_custom_call.1} parent=67 // pred_region
          %s2896 = smul.u32 32, %s34
          %s2898 = ssub.s32 4096, 4096
          %2899 = vsyncadd %s2889, %s2898
          %s2900 = smul.addr %s2896, 128
          %s2901 = scalar_lea.hbm %s12, %s2900
          %s2902 = sshll.u32 %s2892, 4
          %s2903 = int_to_ptr.vmem [resolvable:$true] %s2902
          %2908 = dma.vmem_to_hbm [thread:$0]  %s2903, 4096, %s2901, %s2889, 128, 128, 8
        $region92: #{tpu_custom_call.1} parent=67 // pred_fallthru
          _
      $region68: #{tpu_custom_call.1} parent=5 // pred_fallthru
        _
      %p2909 = scmp.le.s32.totalorder 2, %s29
      // Predicated region
      $region93: #{tpu_custom_call.1} parent=5 // pred_check
        %p2910 = pneg %p2909
      $region94: #{tpu_custom_call.1} parent=5 // pred_check_branch
        %2912 = sbr.rel (%p2910) target = $region96
      $region95: #{tpu_custom_call.1} parent=5 // pred_region
        %s2913 = ssub.s32 %s29, 2
        // Predicated region
        $region97: #{tpu_custom_call.1} parent=95 // pred_check
          %p2914 = pneg %p320
        $region98: #{tpu_custom_call.1} parent=95 // pred_check_branch
          %2916 = sbr.rel (%p2914) target = $region100
        $region99: #{tpu_custom_call.1} parent=95 // pred_region
          %s2917 = sand.u32 %s305, 1
          %s2918 = scalar_lea.sflag [#allocation5], %s2917
          %s2919 = sand.u32 %s305, 1
          %s2920 = smul.addr %s2919, 256
          %s2921 = scalar_lea.vmem [#allocation12], %s2920
          %2922 = dma.done %s2918, 4096
        $region100: #{tpu_custom_call.1} parent=95 // pred_fallthru
          _
      $region96: #{tpu_custom_call.1} parent=5 // pred_fallthru
        _
    $region6: #{tpu_custom_call.1} parent=1 // loop_footer
      %s33 = sadd.s32 1, %s29
    $region7: #{tpu_custom_call.1} parent=1 // loop_footer_branch
      %28 = sbr.rel target = $region3
    $region8: #{tpu_custom_call.1} parent=1 // loop_exit
      _
    %2923 = vsyncpa [#allocation4], 1
    %s2924 = scalar_lea.sflag [#allocation4], 1
    %2925 = vsyncpa %s2924, 1
    %2926 = vsyncpa [#allocation7], 1
    %s2927 = scalar_lea.sflag [#allocation7], 1
    %2928 = vsyncpa %s2927, 1
    %2929 = vsyncpa [#allocation10], 1
    %2930 = vsyncpa [#allocation5], 1
    %s2931 = scalar_lea.sflag [#allocation5], 1
    %2932 = vsyncpa %s2931, 1

</llo_original>
